<compile_context>
chip_gen: v7x
topology: tpu7x:2x2x1
jax: 0.10.0
libtpu: 0.0.40
codegen_flags: <defaults>
</compile_context>

<pallas_src>
import functools

import jax
import jax.numpy as jnp
from jax.experimental import pallas as pl
from jax.experimental.pallas import tpu as pltpu


# ----------------------------------------------------------------------------
# Single fused kernel: embedding + GRU stack + fc.
# refs = (ids, emb, [wih, whh, b] * num_layers, fc_w, fc_b, out)
# ----------------------------------------------------------------------------
def fused_forward_kernel(*refs, num_layers, seq_len, batch):
    ids_ref, emb_ref = refs[0], refs[1]
    fcw_ref, fcb_ref, out_ref = refs[-3], refs[-2], refs[-1]
    layer_refs = [refs[2 + 3 * l: 2 + 3 * (l + 1)] for l in range(num_layers)]

    sb = seq_len * batch
    vocab = emb_ref.shape[0]

    # ---- embedding lookup as a one-hot x table matmul (single MXU pass,
    #      no gather op inside the kernel; HIGHEST precision keeps it ~exact) ----
    ids = ids_ref[...]                                               # (SB, 1) int32
    vocab_iota = jax.lax.broadcasted_iota(jnp.int32, (sb, vocab), 1)
    onehot = (ids == vocab_iota).astype(jnp.float32)                 # (SB, V)
    x = jnp.dot(onehot, emb_ref[...],
                preferred_element_type=jnp.float32,
                precision=jax.lax.Precision.HIGHEST)                 # (SB, E)

    def run_gru_layer(x_flat, wih_ref, whh_ref, b_ref):
        # Hoisted, time-parallel input projections: one (SB,in)x(in,H) matmul
        # per gate instead of S tiny ones on the serial recurrence path.
        gi_r = jnp.dot(x_flat, wih_ref[0], preferred_element_type=jnp.float32) + b_ref[0]
        gi_z = jnp.dot(x_flat, wih_ref[1], preferred_element_type=jnp.float32) + b_ref[1]
        gi_n = jnp.dot(x_flat, wih_ref[2], preferred_element_type=jnp.float32) + b_ref[2]

        w_hr, w_hz, w_hn = whh_ref[0], whh_ref[1], whh_ref[2]
        b_hn = b_ref[3]
        hidden = w_hr.shape[-1]

        h = jnp.zeros((batch, hidden), jnp.float32)
        outs = []
        # Static unroll of the recurrence (seq_len is small & compile-time
        # known): every slice is static, zero per-step grid/pipeline overhead.
        for t in range(seq_len):
            lo = t * batch
            gh_r = jnp.dot(h, w_hr, preferred_element_type=jnp.float32)
            gh_z = jnp.dot(h, w_hz, preferred_element_type=jnp.float32)
            gh_n = jnp.dot(h, w_hn, preferred_element_type=jnp.float32) + b_hn
            r = jax.nn.sigmoid(gi_r[lo:lo + batch, :] + gh_r)
            z = jax.nn.sigmoid(gi_z[lo:lo + batch, :] + gh_z)
            n = jnp.tanh(gi_n[lo:lo + batch, :] + r * gh_n)
            h = (1.0 - z) * n + z * h
            outs.append(h)
        return jnp.concatenate(outs, axis=0)                         # (SB, H)

    for (wih_ref, whh_ref, b_ref) in layer_refs:
        x = run_gru_layer(x, wih_ref, whh_ref, b_ref)

    # ---- final projection: one matmul + bias, single store at the end ----
    out_ref[...] = (jnp.dot(x, fcw_ref[...], preferred_element_type=jnp.float32)
                    + fcb_ref[...])


# ----------------------------------------------------------------------------
# Parameter construction (deterministic, PyTorch-default-style uniform init),
# pre-arranged into the per-gate / pre-combined-bias layout the kernel wants.
# num_heads / dropout are accepted for signature parity but unused (the
# reference forward never applies them).
# ----------------------------------------------------------------------------
def init_params(key, vocab_size, embed_size, hidden_size, num_layers):
    params = {}
    k_emb, key = jax.random.split(key)
    params["embedding"] = jax.random.normal(
        k_emb, (vocab_size, embed_size), jnp.float32)

    H = hidden_size
    bound = 1.0 / (hidden_size ** 0.5)
    layers = []
    for layer in range(num_layers):
        in_size = embed_size if layer == 0 else hidden_size
        k1, k2, k3, k4, key = jax.random.split(key, 5)
        wih = jax.random.uniform(k1, (3 * H, in_size), jnp.float32, -bound, bound)
        whh = jax.random.uniform(k2, (3 * H, H), jnp.float32, -bound, bound)
        bih = jax.random.uniform(k3, (3 * H,), jnp.float32, -bound, bound)
        bhh = jax.random.uniform(k4, (3 * H,), jnp.float32, -bound, bound)
        # Per-gate transposed weights, gate order [r, z, n], gate axis leading.
        wih_g = jnp.stack([wih[0:H].T, wih[H:2 * H].T, wih[2 * H:3 * H].T], axis=0)  # (3, in, H)
        whh_g = jnp.stack([whh[0:H].T, whh[H:2 * H].T, whh[2 * H:3 * H].T], axis=0)  # (3, H, H)
        # Biases: r/z combined (bih+bhh); n-gate kept split (r gates bhh_n path).
        b = jnp.stack([
            (bih[0:H] + bhh[0:H]).reshape(1, H),
            (bih[H:2 * H] + bhh[H:2 * H]).reshape(1, H),
            bih[2 * H:3 * H].reshape(1, H),
            bhh[2 * H:3 * H].reshape(1, H),
        ], axis=0)                                                                   # (4, 1, H)
        layers.append(dict(wih=wih_g, whh=whh_g, b=b))
    params["layers"] = layers

    kf1, kf2, key = jax.random.split(key, 3)
    fc_bound = 1.0 / (hidden_size ** 0.5)
    w_fc = jax.random.uniform(kf1, (vocab_size, hidden_size), jnp.float32,
                              -fc_bound, fc_bound)
    b_fc = jax.random.uniform(kf2, (vocab_size,), jnp.float32, -fc_bound, fc_bound)
    params["fc_w_t"] = w_fc.T                    # (H, V)
    params["fc_b"] = b_fc.reshape(1, -1)         # (1, V)
    return params


# ----------------------------------------------------------------------------
# Forward wrapper: one pallas_call for the whole model.
# ----------------------------------------------------------------------------
def llama_model_simple_forward(params, x_ids):
    """x_ids: (seq_len, batch) int32 -> logits (seq_len, batch, vocab) f32."""
    S, B = x_ids.shape
    V, E = params["embedding"].shape
    H = params["layers"][0]["whh"].shape[-1]
    num_layers = len(params["layers"])
    SB = S * B

    ids2d = x_ids.reshape(SB, 1).astype(jnp.int32)

    in_specs = [
        pl.BlockSpec((SB, 1), lambda i: (0, 0)),             # token ids
        pl.BlockSpec((V, E), lambda i: (0, 0)),              # embedding table
    ]
    layer_args = []
    for layer in params["layers"]:
        in_size = layer["wih"].shape[1]
        in_specs += [
            pl.BlockSpec((3, in_size, H), lambda i: (0, 0, 0)),   # wih (per gate)
            pl.BlockSpec((3, H, H), lambda i: (0, 0, 0)),         # whh (per gate)
            pl.BlockSpec((4, 1, H), lambda i: (0, 0, 0)),         # biases
        ]
        layer_args += [layer["wih"], layer["whh"], layer["b"]]
    in_specs += [
        pl.BlockSpec((H, V), lambda i: (0, 0)),              # fc weight (H, V)
        pl.BlockSpec((1, V), lambda i: (0, 0)),              # fc bias
    ]

    kernel = functools.partial(
        fused_forward_kernel, num_layers=num_layers, seq_len=S, batch=B)

    logits = pl.pallas_call(
        kernel,
        out_shape=jax.ShapeDtypeStruct((SB, V), jnp.float32),
        grid_spec=pltpu.PrefetchScalarGridSpec(
            num_scalar_prefetch=0,
            grid=(1,),                                       # single invocation
            in_specs=in_specs,
            out_specs=pl.BlockSpec((SB, V), lambda i: (0, 0)),
        ),
        compiler_params=pltpu.CompilerParams(
            dimension_semantics=("arbitrary",),
        ),
    )(ids2d, params["embedding"], *layer_args, params["fc_w_t"], params["fc_b"])

    return logits.reshape(S, B, V)


if __name__ == "__main__":
    vocab_size = 64
    embed_size = 32
    hidden_size = 32
    num_layers = 2
    num_heads = 4      # unused by the reference forward
    dropout = 0.0      # unused by the reference forward (eval semantics)
    seq_len, batch = 8, 2

    key = jax.random.PRNGKey(0)
    k_params, k_x = jax.random.split(key)
    params = init_params(k_params, vocab_size, embed_size, hidden_size, num_layers)
    x = jax.random.randint(k_x, (seq_len, batch), 0, vocab_size, dtype=jnp.int32)

    out = llama_model_simple_forward(params, x)
    jax.block_until_ready(out)
    assert out.shape == (seq_len, batch, vocab_size)
    assert bool(jnp.all(jnp.isfinite(out)))
    print("KERNEL_OK")
</pallas_src>

<mosaic_0001>
module attributes {stable_mosaic.version = 11 : i64} {
  func.func @fused_forward_kernel(%arg0: i32, %arg1: memref<16x1xi32, #tpu.memory_space<vmem>>, %arg2: memref<64x32xf32, #tpu.memory_space<vmem>>, %arg3: memref<3x32x32xf32, #tpu.memory_space<vmem>>, %arg4: memref<3x32x32xf32, #tpu.memory_space<vmem>>, %arg5: memref<4x1x32xf32, #tpu.memory_space<vmem>>, %arg6: memref<3x32x32xf32, #tpu.memory_space<vmem>>, %arg7: memref<3x32x32xf32, #tpu.memory_space<vmem>>, %arg8: memref<4x1x32xf32, #tpu.memory_space<vmem>>, %arg9: memref<32x64xf32, #tpu.memory_space<vmem>>, %arg10: memref<1x64xf32, #tpu.memory_space<vmem>>, %arg11: memref<16x64xf32, #tpu.memory_space<vmem>>) attributes {dimension_semantics = [#tpu.dimension_semantics<arbitrary>], iteration_bounds = array<i64: 1>, scalar_prefetch = 0 : i64, scratch_operands = 0 : i64, tpu.core_type = #tpu.core_type<tc>, window_params = [{pipeline_mode = #tpu.pipeline_mode<synchronous>, transform_indices = @transform_0, window_bounds = array<i64: 16, 1>}, {pipeline_mode = #tpu.pipeline_mode<synchronous>, transform_indices = @transform_1, window_bounds = array<i64: 64, 32>}, {pipeline_mode = #tpu.pipeline_mode<synchronous>, transform_indices = @transform_2, window_bounds = array<i64: 3, 32, 32>}, {pipeline_mode = #tpu.pipeline_mode<synchronous>, transform_indices = @transform_3, window_bounds = array<i64: 3, 32, 32>}, {pipeline_mode = #tpu.pipeline_mode<synchronous>, transform_indices = @transform_4, window_bounds = array<i64: 4, 1, 32>}, {pipeline_mode = #tpu.pipeline_mode<synchronous>, transform_indices = @transform_5, window_bounds = array<i64: 3, 32, 32>}, {pipeline_mode = #tpu.pipeline_mode<synchronous>, transform_indices = @transform_6, window_bounds = array<i64: 3, 32, 32>}, {pipeline_mode = #tpu.pipeline_mode<synchronous>, transform_indices = @transform_7, window_bounds = array<i64: 4, 1, 32>}, {pipeline_mode = #tpu.pipeline_mode<synchronous>, transform_indices = @transform_8, window_bounds = array<i64: 32, 64>}, {pipeline_mode = #tpu.pipeline_mode<synchronous>, transform_indices = @transform_9, window_bounds = array<i64: 1, 64>}, {pipeline_mode = #tpu.pipeline_mode<synchronous>, transform_indices = @transform_10, window_bounds = array<i64: 16, 64>}]} {
    %c0 = arith.constant 0 : index
    %c0_0 = arith.constant 0 : index
    %0 = vector.load %arg1[%c0, %c0_0] : memref<16x1xi32, #tpu.memory_space<vmem>>, vector<16x1xi32>
    %1 = tpu.iota {dimensions = array<i32: 1>} : vector<16x64xi32>
    %2 = vector.broadcast %0 : vector<16x1xi32> to vector<16x64xi32>
    %3 = arith.cmpi eq, %2, %1 : vector<16x64xi32>
    %4 = arith.extui %3 : vector<16x64xi1> to vector<16x64xi32>
    %5 = arith.sitofp %4 : vector<16x64xi32> to vector<16x64xf32>
    %c0_1 = arith.constant 0 : index
    %c0_2 = arith.constant 0 : index
    %6 = vector.load %arg2[%c0_1, %c0_2] : memref<64x32xf32, #tpu.memory_space<vmem>>, vector<64x32xf32>
    %cst = arith.constant dense<0.000000e+00> : vector<16x32xf32>
    %7 = tpu.matmul %5, %6, %cst {dimension_numbers = #tpu.dot_dimension_numbers<[1], [0], [0], [1], [0, 0, 1, 1], [], []>, precision = #tpu.contract_precision<fp32>} : vector<16x64xf32>, vector<64x32xf32>, vector<16x32xf32> -> vector<16x32xf32>
    %c0_3 = arith.constant 0 : index
    %c0_4 = arith.constant 0 : index
    %c0_5 = arith.constant 0 : index
    %8 = vector.load %arg3[%c0_3, %c0_4, %c0_5] : memref<3x32x32xf32, #tpu.memory_space<vmem>>, vector<1x32x32xf32>
    %9 = vector.shape_cast %8 : vector<1x32x32xf32> to vector<32x32xf32>
    %cst_6 = arith.constant dense<0.000000e+00> : vector<16x32xf32>
    %10 = tpu.matmul %7, %9, %cst_6 {dimension_numbers = #tpu.dot_dimension_numbers<[1], [0], [0], [1], [0, 0, 1, 1], [], []>} : vector<16x32xf32>, vector<32x32xf32>, vector<16x32xf32> -> vector<16x32xf32>
    %c0_7 = arith.constant 0 : index
    %c0_8 = arith.constant 0 : index
    %c0_9 = arith.constant 0 : index
    %11 = vector.load %arg5[%c0_7, %c0_8, %c0_9] : memref<4x1x32xf32, #tpu.memory_space<vmem>>, vector<1x1x32xf32>
    %12 = vector.shape_cast %11 : vector<1x1x32xf32> to vector<1x32xf32>
    %13 = vector.broadcast %12 : vector<1x32xf32> to vector<16x32xf32>
    %14 = arith.addf %10, %13 : vector<16x32xf32>
    %c1 = arith.constant 1 : index
    %c0_10 = arith.constant 0 : index
    %c0_11 = arith.constant 0 : index
    %15 = vector.load %arg3[%c1, %c0_10, %c0_11] : memref<3x32x32xf32, #tpu.memory_space<vmem>>, vector<1x32x32xf32>
    %16 = vector.shape_cast %15 : vector<1x32x32xf32> to vector<32x32xf32>
    %cst_12 = arith.constant dense<0.000000e+00> : vector<16x32xf32>
    %17 = tpu.matmul %7, %16, %cst_12 {dimension_numbers = #tpu.dot_dimension_numbers<[1], [0], [0], [1], [0, 0, 1, 1], [], []>} : vector<16x32xf32>, vector<32x32xf32>, vector<16x32xf32> -> vector<16x32xf32>
    %c1_13 = arith.constant 1 : index
    %c0_14 = arith.constant 0 : index
    %c0_15 = arith.constant 0 : index
    %18 = vector.load %arg5[%c1_13, %c0_14, %c0_15] : memref<4x1x32xf32, #tpu.memory_space<vmem>>, vector<1x1x32xf32>
    %19 = vector.shape_cast %18 : vector<1x1x32xf32> to vector<1x32xf32>
    %20 = vector.broadcast %19 : vector<1x32xf32> to vector<16x32xf32>
    %21 = arith.addf %17, %20 : vector<16x32xf32>
    %c2 = arith.constant 2 : index
    %c0_16 = arith.constant 0 : index
    %c0_17 = arith.constant 0 : index
    %22 = vector.load %arg3[%c2, %c0_16, %c0_17] : memref<3x32x32xf32, #tpu.memory_space<vmem>>, vector<1x32x32xf32>
    %23 = vector.shape_cast %22 : vector<1x32x32xf32> to vector<32x32xf32>
    %cst_18 = arith.constant dense<0.000000e+00> : vector<16x32xf32>
    %24 = tpu.matmul %7, %23, %cst_18 {dimension_numbers = #tpu.dot_dimension_numbers<[1], [0], [0], [1], [0, 0, 1, 1], [], []>} : vector<16x32xf32>, vector<32x32xf32>, vector<16x32xf32> -> vector<16x32xf32>
    %c2_19 = arith.constant 2 : index
    %c0_20 = arith.constant 0 : index
    %c0_21 = arith.constant 0 : index
    %25 = vector.load %arg5[%c2_19, %c0_20, %c0_21] : memref<4x1x32xf32, #tpu.memory_space<vmem>>, vector<1x1x32xf32>
    %26 = vector.shape_cast %25 : vector<1x1x32xf32> to vector<1x32xf32>
    %27 = vector.broadcast %26 : vector<1x32xf32> to vector<16x32xf32>
    %28 = arith.addf %24, %27 : vector<16x32xf32>
    %c0_22 = arith.constant 0 : index
    %c0_23 = arith.constant 0 : index
    %c0_24 = arith.constant 0 : index
    %29 = vector.load %arg4[%c0_22, %c0_23, %c0_24] : memref<3x32x32xf32, #tpu.memory_space<vmem>>, vector<1x32x32xf32>
    %30 = vector.shape_cast %29 : vector<1x32x32xf32> to vector<32x32xf32>
    %c1_25 = arith.constant 1 : index
    %c0_26 = arith.constant 0 : index
    %c0_27 = arith.constant 0 : index
    %31 = vector.load %arg4[%c1_25, %c0_26, %c0_27] : memref<3x32x32xf32, #tpu.memory_space<vmem>>, vector<1x32x32xf32>
    %32 = vector.shape_cast %31 : vector<1x32x32xf32> to vector<32x32xf32>
    %c2_28 = arith.constant 2 : index
    %c0_29 = arith.constant 0 : index
    %c0_30 = arith.constant 0 : index
    %33 = vector.load %arg4[%c2_28, %c0_29, %c0_30] : memref<3x32x32xf32, #tpu.memory_space<vmem>>, vector<1x32x32xf32>
    %34 = vector.shape_cast %33 : vector<1x32x32xf32> to vector<32x32xf32>
    %c3 = arith.constant 3 : index
    %c0_31 = arith.constant 0 : index
    %c0_32 = arith.constant 0 : index
    %35 = vector.load %arg5[%c3, %c0_31, %c0_32] : memref<4x1x32xf32, #tpu.memory_space<vmem>>, vector<1x1x32xf32>
    %36 = vector.shape_cast %35 : vector<1x1x32xf32> to vector<1x32xf32>
    %cst_33 = arith.constant 0.000000e+00 : f32
    %37 = vector.broadcast %cst_33 : f32 to vector<2x32xf32>
    %cst_34 = arith.constant dense<0.000000e+00> : vector<2x32xf32>
    %38 = tpu.matmul %37, %30, %cst_34 {dimension_numbers = #tpu.dot_dimension_numbers<[1], [0], [0], [1], [0, 0, 1, 1], [], []>} : vector<2x32xf32>, vector<32x32xf32>, vector<2x32xf32> -> vector<2x32xf32>
    %cst_35 = arith.constant dense<0.000000e+00> : vector<2x32xf32>
    %39 = tpu.matmul %37, %32, %cst_35 {dimension_numbers = #tpu.dot_dimension_numbers<[1], [0], [0], [1], [0, 0, 1, 1], [], []>} : vector<2x32xf32>, vector<32x32xf32>, vector<2x32xf32> -> vector<2x32xf32>
    %cst_36 = arith.constant dense<0.000000e+00> : vector<2x32xf32>
    %40 = tpu.matmul %37, %34, %cst_36 {dimension_numbers = #tpu.dot_dimension_numbers<[1], [0], [0], [1], [0, 0, 1, 1], [], []>} : vector<2x32xf32>, vector<32x32xf32>, vector<2x32xf32> -> vector<2x32xf32>
    %41 = vector.broadcast %36 : vector<1x32xf32> to vector<2x32xf32>
    %42 = arith.addf %40, %41 : vector<2x32xf32>
    %43 = vector.extract_strided_slice %14 {offsets = [0, 0], sizes = [2, 32], strides = [1, 1]} : vector<16x32xf32> to vector<2x32xf32>
    %44 = arith.addf %43, %38 : vector<2x32xf32>
    %45 = arith.negf %44 : vector<2x32xf32>
    %46 = math.exp %45 : vector<2x32xf32>
    %cst_37 = arith.constant 1.000000e+00 : f32
    %47 = vector.broadcast %cst_37 : f32 to vector<2x32xf32>
    %48 = arith.addf %47, %46 : vector<2x32xf32>
    %49 = arith.divf %47, %48 : vector<2x32xf32>
    %50 = vector.extract_strided_slice %21 {offsets = [0, 0], sizes = [2, 32], strides = [1, 1]} : vector<16x32xf32> to vector<2x32xf32>
    %51 = arith.addf %50, %39 : vector<2x32xf32>
    %52 = arith.negf %51 : vector<2x32xf32>
    %53 = math.exp %52 : vector<2x32xf32>
    %cst_38 = arith.constant 1.000000e+00 : f32
    %54 = vector.broadcast %cst_38 : f32 to vector<2x32xf32>
    %55 = arith.addf %54, %53 : vector<2x32xf32>
    %56 = arith.divf %54, %55 : vector<2x32xf32>
    %57 = vector.extract_strided_slice %28 {offsets = [0, 0], sizes = [2, 32], strides = [1, 1]} : vector<16x32xf32> to vector<2x32xf32>
    %58 = arith.mulf %49, %42 : vector<2x32xf32>
    %59 = arith.addf %57, %58 : vector<2x32xf32>
    %60 = math.tanh %59 : vector<2x32xf32>
    %cst_39 = arith.constant 1.000000e+00 : f32
    %61 = vector.broadcast %cst_39 : f32 to vector<2x32xf32>
    %62 = arith.subf %61, %56 : vector<2x32xf32>
    %63 = arith.mulf %62, %60 : vector<2x32xf32>
    %64 = arith.mulf %56, %37 : vector<2x32xf32>
    %65 = arith.addf %63, %64 : vector<2x32xf32>
    %cst_40 = arith.constant dense<0.000000e+00> : vector<2x32xf32>
    %66 = tpu.matmul %65, %30, %cst_40 {dimension_numbers = #tpu.dot_dimension_numbers<[1], [0], [0], [1], [0, 0, 1, 1], [], []>} : vector<2x32xf32>, vector<32x32xf32>, vector<2x32xf32> -> vector<2x32xf32>
    %cst_41 = arith.constant dense<0.000000e+00> : vector<2x32xf32>
    %67 = tpu.matmul %65, %32, %cst_41 {dimension_numbers = #tpu.dot_dimension_numbers<[1], [0], [0], [1], [0, 0, 1, 1], [], []>} : vector<2x32xf32>, vector<32x32xf32>, vector<2x32xf32> -> vector<2x32xf32>
    %cst_42 = arith.constant dense<0.000000e+00> : vector<2x32xf32>
    %68 = tpu.matmul %65, %34, %cst_42 {dimension_numbers = #tpu.dot_dimension_numbers<[1], [0], [0], [1], [0, 0, 1, 1], [], []>} : vector<2x32xf32>, vector<32x32xf32>, vector<2x32xf32> -> vector<2x32xf32>
    %69 = vector.broadcast %36 : vector<1x32xf32> to vector<2x32xf32>
    %70 = arith.addf %68, %69 : vector<2x32xf32>
    %71 = vector.extract_strided_slice %14 {offsets = [2, 0], sizes = [2, 32], strides = [1, 1]} : vector<16x32xf32> to vector<2x32xf32>
    %72 = arith.addf %71, %66 : vector<2x32xf32>
    %73 = arith.negf %72 : vector<2x32xf32>
    %74 = math.exp %73 : vector<2x32xf32>
    %cst_43 = arith.constant 1.000000e+00 : f32
    %75 = vector.broadcast %cst_43 : f32 to vector<2x32xf32>
    %76 = arith.addf %75, %74 : vector<2x32xf32>
    %77 = arith.divf %75, %76 : vector<2x32xf32>
    %78 = vector.extract_strided_slice %21 {offsets = [2, 0], sizes = [2, 32], strides = [1, 1]} : vector<16x32xf32> to vector<2x32xf32>
    %79 = arith.addf %78, %67 : vector<2x32xf32>
    %80 = arith.negf %79 : vector<2x32xf32>
    %81 = math.exp %80 : vector<2x32xf32>
    %cst_44 = arith.constant 1.000000e+00 : f32
    %82 = vector.broadcast %cst_44 : f32 to vector<2x32xf32>
    %83 = arith.addf %82, %81 : vector<2x32xf32>
    %84 = arith.divf %82, %83 : vector<2x32xf32>
    %85 = vector.extract_strided_slice %28 {offsets = [2, 0], sizes = [2, 32], strides = [1, 1]} : vector<16x32xf32> to vector<2x32xf32>
    %86 = arith.mulf %77, %70 : vector<2x32xf32>
    %87 = arith.addf %85, %86 : vector<2x32xf32>
    %88 = math.tanh %87 : vector<2x32xf32>
    %cst_45 = arith.constant 1.000000e+00 : f32
    %89 = vector.broadcast %cst_45 : f32 to vector<2x32xf32>
    %90 = arith.subf %89, %84 : vector<2x32xf32>
    %91 = arith.mulf %90, %88 : vector<2x32xf32>
    %92 = arith.mulf %84, %65 : vector<2x32xf32>
    %93 = arith.addf %91, %92 : vector<2x32xf32>
    %cst_46 = arith.constant dense<0.000000e+00> : vector<2x32xf32>
    %94 = tpu.matmul %93, %30, %cst_46 {dimension_numbers = #tpu.dot_dimension_numbers<[1], [0], [0], [1], [0, 0, 1, 1], [], []>} : vector<2x32xf32>, vector<32x32xf32>, vector<2x32xf32> -> vector<2x32xf32>
    %cst_47 = arith.constant dense<0.000000e+00> : vector<2x32xf32>
    %95 = tpu.matmul %93, %32, %cst_47 {dimension_numbers = #tpu.dot_dimension_numbers<[1], [0], [0], [1], [0, 0, 1, 1], [], []>} : vector<2x32xf32>, vector<32x32xf32>, vector<2x32xf32> -> vector<2x32xf32>
    %cst_48 = arith.constant dense<0.000000e+00> : vector<2x32xf32>
    %96 = tpu.matmul %93, %34, %cst_48 {dimension_numbers = #tpu.dot_dimension_numbers<[1], [0], [0], [1], [0, 0, 1, 1], [], []>} : vector<2x32xf32>, vector<32x32xf32>, vector<2x32xf32> -> vector<2x32xf32>
    %97 = vector.broadcast %36 : vector<1x32xf32> to vector<2x32xf32>
    %98 = arith.addf %96, %97 : vector<2x32xf32>
    %99 = vector.extract_strided_slice %14 {offsets = [4, 0], sizes = [2, 32], strides = [1, 1]} : vector<16x32xf32> to vector<2x32xf32>
    %100 = arith.addf %99, %94 : vector<2x32xf32>
    %101 = arith.negf %100 : vector<2x32xf32>
    %102 = math.exp %101 : vector<2x32xf32>
    %cst_49 = arith.constant 1.000000e+00 : f32
    %103 = vector.broadcast %cst_49 : f32 to vector<2x32xf32>
    %104 = arith.addf %103, %102 : vector<2x32xf32>
    %105 = arith.divf %103, %104 : vector<2x32xf32>
    %106 = vector.extract_strided_slice %21 {offsets = [4, 0], sizes = [2, 32], strides = [1, 1]} : vector<16x32xf32> to vector<2x32xf32>
    %107 = arith.addf %106, %95 : vector<2x32xf32>
    %108 = arith.negf %107 : vector<2x32xf32>
    %109 = math.exp %108 : vector<2x32xf32>
    %cst_50 = arith.constant 1.000000e+00 : f32
    %110 = vector.broadcast %cst_50 : f32 to vector<2x32xf32>
    %111 = arith.addf %110, %109 : vector<2x32xf32>
    %112 = arith.divf %110, %111 : vector<2x32xf32>
    %113 = vector.extract_strided_slice %28 {offsets = [4, 0], sizes = [2, 32], strides = [1, 1]} : vector<16x32xf32> to vector<2x32xf32>
    %114 = arith.mulf %105, %98 : vector<2x32xf32>
    %115 = arith.addf %113, %114 : vector<2x32xf32>
    %116 = math.tanh %115 : vector<2x32xf32>
    %cst_51 = arith.constant 1.000000e+00 : f32
    %117 = vector.broadcast %cst_51 : f32 to vector<2x32xf32>
    %118 = arith.subf %117, %112 : vector<2x32xf32>
    %119 = arith.mulf %118, %116 : vector<2x32xf32>
    %120 = arith.mulf %112, %93 : vector<2x32xf32>
    %121 = arith.addf %119, %120 : vector<2x32xf32>
    %cst_52 = arith.constant dense<0.000000e+00> : vector<2x32xf32>
    %122 = tpu.matmul %121, %30, %cst_52 {dimension_numbers = #tpu.dot_dimension_numbers<[1], [0], [0], [1], [0, 0, 1, 1], [], []>} : vector<2x32xf32>, vector<32x32xf32>, vector<2x32xf32> -> vector<2x32xf32>
    %cst_53 = arith.constant dense<0.000000e+00> : vector<2x32xf32>
    %123 = tpu.matmul %121, %32, %cst_53 {dimension_numbers = #tpu.dot_dimension_numbers<[1], [0], [0], [1], [0, 0, 1, 1], [], []>} : vector<2x32xf32>, vector<32x32xf32>, vector<2x32xf32> -> vector<2x32xf32>
    %cst_54 = arith.constant dense<0.000000e+00> : vector<2x32xf32>
    %124 = tpu.matmul %121, %34, %cst_54 {dimension_numbers = #tpu.dot_dimension_numbers<[1], [0], [0], [1], [0, 0, 1, 1], [], []>} : vector<2x32xf32>, vector<32x32xf32>, vector<2x32xf32> -> vector<2x32xf32>
    %125 = vector.broadcast %36 : vector<1x32xf32> to vector<2x32xf32>
    %126 = arith.addf %124, %125 : vector<2x32xf32>
    %127 = vector.extract_strided_slice %14 {offsets = [6, 0], sizes = [2, 32], strides = [1, 1]} : vector<16x32xf32> to vector<2x32xf32>
    %128 = arith.addf %127, %122 : vector<2x32xf32>
    %129 = arith.negf %128 : vector<2x32xf32>
    %130 = math.exp %129 : vector<2x32xf32>
    %cst_55 = arith.constant 1.000000e+00 : f32
    %131 = vector.broadcast %cst_55 : f32 to vector<2x32xf32>
    %132 = arith.addf %131, %130 : vector<2x32xf32>
    %133 = arith.divf %131, %132 : vector<2x32xf32>
    %134 = vector.extract_strided_slice %21 {offsets = [6, 0], sizes = [2, 32], strides = [1, 1]} : vector<16x32xf32> to vector<2x32xf32>
    %135 = arith.addf %134, %123 : vector<2x32xf32>
    %136 = arith.negf %135 : vector<2x32xf32>
    %137 = math.exp %136 : vector<2x32xf32>
    %cst_56 = arith.constant 1.000000e+00 : f32
    %138 = vector.broadcast %cst_56 : f32 to vector<2x32xf32>
    %139 = arith.addf %138, %137 : vector<2x32xf32>
    %140 = arith.divf %138, %139 : vector<2x32xf32>
    %141 = vector.extract_strided_slice %28 {offsets = [6, 0], sizes = [2, 32], strides = [1, 1]} : vector<16x32xf32> to vector<2x32xf32>
    %142 = arith.mulf %133, %126 : vector<2x32xf32>
    %143 = arith.addf %141, %142 : vector<2x32xf32>
    %144 = math.tanh %143 : vector<2x32xf32>
    %cst_57 = arith.constant 1.000000e+00 : f32
    %145 = vector.broadcast %cst_57 : f32 to vector<2x32xf32>
    %146 = arith.subf %145, %140 : vector<2x32xf32>
    %147 = arith.mulf %146, %144 : vector<2x32xf32>
    %148 = arith.mulf %140, %121 : vector<2x32xf32>
    %149 = arith.addf %147, %148 : vector<2x32xf32>
    %cst_58 = arith.constant dense<0.000000e+00> : vector<2x32xf32>
    %150 = tpu.matmul %149, %30, %cst_58 {dimension_numbers = #tpu.dot_dimension_numbers<[1], [0], [0], [1], [0, 0, 1, 1], [], []>} : vector<2x32xf32>, vector<32x32xf32>, vector<2x32xf32> -> vector<2x32xf32>
    %cst_59 = arith.constant dense<0.000000e+00> : vector<2x32xf32>
    %151 = tpu.matmul %149, %32, %cst_59 {dimension_numbers = #tpu.dot_dimension_numbers<[1], [0], [0], [1], [0, 0, 1, 1], [], []>} : vector<2x32xf32>, vector<32x32xf32>, vector<2x32xf32> -> vector<2x32xf32>
    %cst_60 = arith.constant dense<0.000000e+00> : vector<2x32xf32>
    %152 = tpu.matmul %149, %34, %cst_60 {dimension_numbers = #tpu.dot_dimension_numbers<[1], [0], [0], [1], [0, 0, 1, 1], [], []>} : vector<2x32xf32>, vector<32x32xf32>, vector<2x32xf32> -> vector<2x32xf32>
    %153 = vector.broadcast %36 : vector<1x32xf32> to vector<2x32xf32>
    %154 = arith.addf %152, %153 : vector<2x32xf32>
    %155 = vector.extract_strided_slice %14 {offsets = [8, 0], sizes = [2, 32], strides = [1, 1]} : vector<16x32xf32> to vector<2x32xf32>
    %156 = arith.addf %155, %150 : vector<2x32xf32>
    %157 = arith.negf %156 : vector<2x32xf32>
    %158 = math.exp %157 : vector<2x32xf32>
    %cst_61 = arith.constant 1.000000e+00 : f32
    %159 = vector.broadcast %cst_61 : f32 to vector<2x32xf32>
    %160 = arith.addf %159, %158 : vector<2x32xf32>
    %161 = arith.divf %159, %160 : vector<2x32xf32>
    %162 = vector.extract_strided_slice %21 {offsets = [8, 0], sizes = [2, 32], strides = [1, 1]} : vector<16x32xf32> to vector<2x32xf32>
    %163 = arith.addf %162, %151 : vector<2x32xf32>
    %164 = arith.negf %163 : vector<2x32xf32>
    %165 = math.exp %164 : vector<2x32xf32>
    %cst_62 = arith.constant 1.000000e+00 : f32
    %166 = vector.broadcast %cst_62 : f32 to vector<2x32xf32>
    %167 = arith.addf %166, %165 : vector<2x32xf32>
    %168 = arith.divf %166, %167 : vector<2x32xf32>
    %169 = vector.extract_strided_slice %28 {offsets = [8, 0], sizes = [2, 32], strides = [1, 1]} : vector<16x32xf32> to vector<2x32xf32>
    %170 = arith.mulf %161, %154 : vector<2x32xf32>
    %171 = arith.addf %169, %170 : vector<2x32xf32>
    %172 = math.tanh %171 : vector<2x32xf32>
    %cst_63 = arith.constant 1.000000e+00 : f32
    %173 = vector.broadcast %cst_63 : f32 to vector<2x32xf32>
    %174 = arith.subf %173, %168 : vector<2x32xf32>
    %175 = arith.mulf %174, %172 : vector<2x32xf32>
    %176 = arith.mulf %168, %149 : vector<2x32xf32>
    %177 = arith.addf %175, %176 : vector<2x32xf32>
    %cst_64 = arith.constant dense<0.000000e+00> : vector<2x32xf32>
    %178 = tpu.matmul %177, %30, %cst_64 {dimension_numbers = #tpu.dot_dimension_numbers<[1], [0], [0], [1], [0, 0, 1, 1], [], []>} : vector<2x32xf32>, vector<32x32xf32>, vector<2x32xf32> -> vector<2x32xf32>
    %cst_65 = arith.constant dense<0.000000e+00> : vector<2x32xf32>
    %179 = tpu.matmul %177, %32, %cst_65 {dimension_numbers = #tpu.dot_dimension_numbers<[1], [0], [0], [1], [0, 0, 1, 1], [], []>} : vector<2x32xf32>, vector<32x32xf32>, vector<2x32xf32> -> vector<2x32xf32>
    %cst_66 = arith.constant dense<0.000000e+00> : vector<2x32xf32>
    %180 = tpu.matmul %177, %34, %cst_66 {dimension_numbers = #tpu.dot_dimension_numbers<[1], [0], [0], [1], [0, 0, 1, 1], [], []>} : vector<2x32xf32>, vector<32x32xf32>, vector<2x32xf32> -> vector<2x32xf32>
    %181 = vector.broadcast %36 : vector<1x32xf32> to vector<2x32xf32>
    %182 = arith.addf %180, %181 : vector<2x32xf32>
    %183 = vector.extract_strided_slice %14 {offsets = [10, 0], sizes = [2, 32], strides = [1, 1]} : vector<16x32xf32> to vector<2x32xf32>
    %184 = arith.addf %183, %178 : vector<2x32xf32>
    %185 = arith.negf %184 : vector<2x32xf32>
    %186 = math.exp %185 : vector<2x32xf32>
    %cst_67 = arith.constant 1.000000e+00 : f32
    %187 = vector.broadcast %cst_67 : f32 to vector<2x32xf32>
    %188 = arith.addf %187, %186 : vector<2x32xf32>
    %189 = arith.divf %187, %188 : vector<2x32xf32>
    %190 = vector.extract_strided_slice %21 {offsets = [10, 0], sizes = [2, 32], strides = [1, 1]} : vector<16x32xf32> to vector<2x32xf32>
    %191 = arith.addf %190, %179 : vector<2x32xf32>
    %192 = arith.negf %191 : vector<2x32xf32>
    %193 = math.exp %192 : vector<2x32xf32>
    %cst_68 = arith.constant 1.000000e+00 : f32
    %194 = vector.broadcast %cst_68 : f32 to vector<2x32xf32>
    %195 = arith.addf %194, %193 : vector<2x32xf32>
    %196 = arith.divf %194, %195 : vector<2x32xf32>
    %197 = vector.extract_strided_slice %28 {offsets = [10, 0], sizes = [2, 32], strides = [1, 1]} : vector<16x32xf32> to vector<2x32xf32>
    %198 = arith.mulf %189, %182 : vector<2x32xf32>
    %199 = arith.addf %197, %198 : vector<2x32xf32>
    %200 = math.tanh %199 : vector<2x32xf32>
    %cst_69 = arith.constant 1.000000e+00 : f32
    %201 = vector.broadcast %cst_69 : f32 to vector<2x32xf32>
    %202 = arith.subf %201, %196 : vector<2x32xf32>
    %203 = arith.mulf %202, %200 : vector<2x32xf32>
    %204 = arith.mulf %196, %177 : vector<2x32xf32>
    %205 = arith.addf %203, %204 : vector<2x32xf32>
    %cst_70 = arith.constant dense<0.000000e+00> : vector<2x32xf32>
    %206 = tpu.matmul %205, %30, %cst_70 {dimension_numbers = #tpu.dot_dimension_numbers<[1], [0], [0], [1], [0, 0, 1, 1], [], []>} : vector<2x32xf32>, vector<32x32xf32>, vector<2x32xf32> -> vector<2x32xf32>
    %cst_71 = arith.constant dense<0.000000e+00> : vector<2x32xf32>
    %207 = tpu.matmul %205, %32, %cst_71 {dimension_numbers = #tpu.dot_dimension_numbers<[1], [0], [0], [1], [0, 0, 1, 1], [], []>} : vector<2x32xf32>, vector<32x32xf32>, vector<2x32xf32> -> vector<2x32xf32>
    %cst_72 = arith.constant dense<0.000000e+00> : vector<2x32xf32>
    %208 = tpu.matmul %205, %34, %cst_72 {dimension_numbers = #tpu.dot_dimension_numbers<[1], [0], [0], [1], [0, 0, 1, 1], [], []>} : vector<2x32xf32>, vector<32x32xf32>, vector<2x32xf32> -> vector<2x32xf32>
    %209 = vector.broadcast %36 : vector<1x32xf32> to vector<2x32xf32>
    %210 = arith.addf %208, %209 : vector<2x32xf32>
    %211 = vector.extract_strided_slice %14 {offsets = [12, 0], sizes = [2, 32], strides = [1, 1]} : vector<16x32xf32> to vector<2x32xf32>
    %212 = arith.addf %211, %206 : vector<2x32xf32>
    %213 = arith.negf %212 : vector<2x32xf32>
    %214 = math.exp %213 : vector<2x32xf32>
    %cst_73 = arith.constant 1.000000e+00 : f32
    %215 = vector.broadcast %cst_73 : f32 to vector<2x32xf32>
    %216 = arith.addf %215, %214 : vector<2x32xf32>
    %217 = arith.divf %215, %216 : vector<2x32xf32>
    %218 = vector.extract_strided_slice %21 {offsets = [12, 0], sizes = [2, 32], strides = [1, 1]} : vector<16x32xf32> to vector<2x32xf32>
    %219 = arith.addf %218, %207 : vector<2x32xf32>
    %220 = arith.negf %219 : vector<2x32xf32>
    %221 = math.exp %220 : vector<2x32xf32>
    %cst_74 = arith.constant 1.000000e+00 : f32
    %222 = vector.broadcast %cst_74 : f32 to vector<2x32xf32>
    %223 = arith.addf %222, %221 : vector<2x32xf32>
    %224 = arith.divf %222, %223 : vector<2x32xf32>
    %225 = vector.extract_strided_slice %28 {offsets = [12, 0], sizes = [2, 32], strides = [1, 1]} : vector<16x32xf32> to vector<2x32xf32>
    %226 = arith.mulf %217, %210 : vector<2x32xf32>
    %227 = arith.addf %225, %226 : vector<2x32xf32>
    %228 = math.tanh %227 : vector<2x32xf32>
    %cst_75 = arith.constant 1.000000e+00 : f32
    %229 = vector.broadcast %cst_75 : f32 to vector<2x32xf32>
    %230 = arith.subf %229, %224 : vector<2x32xf32>
    %231 = arith.mulf %230, %228 : vector<2x32xf32>
    %232 = arith.mulf %224, %205 : vector<2x32xf32>
    %233 = arith.addf %231, %232 : vector<2x32xf32>
    %cst_76 = arith.constant dense<0.000000e+00> : vector<2x32xf32>
    %234 = tpu.matmul %233, %30, %cst_76 {dimension_numbers = #tpu.dot_dimension_numbers<[1], [0], [0], [1], [0, 0, 1, 1], [], []>} : vector<2x32xf32>, vector<32x32xf32>, vector<2x32xf32> -> vector<2x32xf32>
    %cst_77 = arith.constant dense<0.000000e+00> : vector<2x32xf32>
    %235 = tpu.matmul %233, %32, %cst_77 {dimension_numbers = #tpu.dot_dimension_numbers<[1], [0], [0], [1], [0, 0, 1, 1], [], []>} : vector<2x32xf32>, vector<32x32xf32>, vector<2x32xf32> -> vector<2x32xf32>
    %cst_78 = arith.constant dense<0.000000e+00> : vector<2x32xf32>
    %236 = tpu.matmul %233, %34, %cst_78 {dimension_numbers = #tpu.dot_dimension_numbers<[1], [0], [0], [1], [0, 0, 1, 1], [], []>} : vector<2x32xf32>, vector<32x32xf32>, vector<2x32xf32> -> vector<2x32xf32>
    %237 = vector.broadcast %36 : vector<1x32xf32> to vector<2x32xf32>
    %238 = arith.addf %236, %237 : vector<2x32xf32>
    %239 = vector.extract_strided_slice %14 {offsets = [14, 0], sizes = [2, 32], strides = [1, 1]} : vector<16x32xf32> to vector<2x32xf32>
    %240 = arith.addf %239, %234 : vector<2x32xf32>
    %241 = arith.negf %240 : vector<2x32xf32>
    %242 = math.exp %241 : vector<2x32xf32>
    %cst_79 = arith.constant 1.000000e+00 : f32
    %243 = vector.broadcast %cst_79 : f32 to vector<2x32xf32>
    %244 = arith.addf %243, %242 : vector<2x32xf32>
    %245 = arith.divf %243, %244 : vector<2x32xf32>
    %246 = vector.extract_strided_slice %21 {offsets = [14, 0], sizes = [2, 32], strides = [1, 1]} : vector<16x32xf32> to vector<2x32xf32>
    %247 = arith.addf %246, %235 : vector<2x32xf32>
    %248 = arith.negf %247 : vector<2x32xf32>
    %249 = math.exp %248 : vector<2x32xf32>
    %cst_80 = arith.constant 1.000000e+00 : f32
    %250 = vector.broadcast %cst_80 : f32 to vector<2x32xf32>
    %251 = arith.addf %250, %249 : vector<2x32xf32>
    %252 = arith.divf %250, %251 : vector<2x32xf32>
    %253 = vector.extract_strided_slice %28 {offsets = [14, 0], sizes = [2, 32], strides = [1, 1]} : vector<16x32xf32> to vector<2x32xf32>
    %254 = arith.mulf %245, %238 : vector<2x32xf32>
    %255 = arith.addf %253, %254 : vector<2x32xf32>
    %256 = math.tanh %255 : vector<2x32xf32>
    %cst_81 = arith.constant 1.000000e+00 : f32
    %257 = vector.broadcast %cst_81 : f32 to vector<2x32xf32>
    %258 = arith.subf %257, %252 : vector<2x32xf32>
    %259 = arith.mulf %258, %256 : vector<2x32xf32>
    %260 = arith.mulf %252, %233 : vector<2x32xf32>
    %261 = arith.addf %259, %260 : vector<2x32xf32>
    %262 = tpu.concatenate %65, %93, %121, %149, %177, %205, %233, %261 in 0 : vector<2x32xf32>, vector<2x32xf32>, vector<2x32xf32>, vector<2x32xf32>, vector<2x32xf32>, vector<2x32xf32>, vector<2x32xf32>, vector<2x32xf32> -> vector<16x32xf32>
    %c0_82 = arith.constant 0 : index
    %c0_83 = arith.constant 0 : index
    %c0_84 = arith.constant 0 : index
    %263 = vector.load %arg6[%c0_82, %c0_83, %c0_84] : memref<3x32x32xf32, #tpu.memory_space<vmem>>, vector<1x32x32xf32>
    %264 = vector.shape_cast %263 : vector<1x32x32xf32> to vector<32x32xf32>
    %cst_85 = arith.constant dense<0.000000e+00> : vector<16x32xf32>
    %265 = tpu.matmul %262, %264, %cst_85 {dimension_numbers = #tpu.dot_dimension_numbers<[1], [0], [0], [1], [0, 0, 1, 1], [], []>} : vector<16x32xf32>, vector<32x32xf32>, vector<16x32xf32> -> vector<16x32xf32>
    %c0_86 = arith.constant 0 : index
    %c0_87 = arith.constant 0 : index
    %c0_88 = arith.constant 0 : index
    %266 = vector.load %arg8[%c0_86, %c0_87, %c0_88] : memref<4x1x32xf32, #tpu.memory_space<vmem>>, vector<1x1x32xf32>
    %267 = vector.shape_cast %266 : vector<1x1x32xf32> to vector<1x32xf32>
    %268 = vector.broadcast %267 : vector<1x32xf32> to vector<16x32xf32>
    %269 = arith.addf %265, %268 : vector<16x32xf32>
    %c1_89 = arith.constant 1 : index
    %c0_90 = arith.constant 0 : index
    %c0_91 = arith.constant 0 : index
    %270 = vector.load %arg6[%c1_89, %c0_90, %c0_91] : memref<3x32x32xf32, #tpu.memory_space<vmem>>, vector<1x32x32xf32>
    %271 = vector.shape_cast %270 : vector<1x32x32xf32> to vector<32x32xf32>
    %cst_92 = arith.constant dense<0.000000e+00> : vector<16x32xf32>
    %272 = tpu.matmul %262, %271, %cst_92 {dimension_numbers = #tpu.dot_dimension_numbers<[1], [0], [0], [1], [0, 0, 1, 1], [], []>} : vector<16x32xf32>, vector<32x32xf32>, vector<16x32xf32> -> vector<16x32xf32>
    %c1_93 = arith.constant 1 : index
    %c0_94 = arith.constant 0 : index
    %c0_95 = arith.constant 0 : index
    %273 = vector.load %arg8[%c1_93, %c0_94, %c0_95] : memref<4x1x32xf32, #tpu.memory_space<vmem>>, vector<1x1x32xf32>
    %274 = vector.shape_cast %273 : vector<1x1x32xf32> to vector<1x32xf32>
    %275 = vector.broadcast %274 : vector<1x32xf32> to vector<16x32xf32>
    %276 = arith.addf %272, %275 : vector<16x32xf32>
    %c2_96 = arith.constant 2 : index
    %c0_97 = arith.constant 0 : index
    %c0_98 = arith.constant 0 : index
    %277 = vector.load %arg6[%c2_96, %c0_97, %c0_98] : memref<3x32x32xf32, #tpu.memory_space<vmem>>, vector<1x32x32xf32>
    %278 = vector.shape_cast %277 : vector<1x32x32xf32> to vector<32x32xf32>
    %cst_99 = arith.constant dense<0.000000e+00> : vector<16x32xf32>
    %279 = tpu.matmul %262, %278, %cst_99 {dimension_numbers = #tpu.dot_dimension_numbers<[1], [0], [0], [1], [0, 0, 1, 1], [], []>} : vector<16x32xf32>, vector<32x32xf32>, vector<16x32xf32> -> vector<16x32xf32>
    %c2_100 = arith.constant 2 : index
    %c0_101 = arith.constant 0 : index
    %c0_102 = arith.constant 0 : index
    %280 = vector.load %arg8[%c2_100, %c0_101, %c0_102] : memref<4x1x32xf32, #tpu.memory_space<vmem>>, vector<1x1x32xf32>
    %281 = vector.shape_cast %280 : vector<1x1x32xf32> to vector<1x32xf32>
    %282 = vector.broadcast %281 : vector<1x32xf32> to vector<16x32xf32>
    %283 = arith.addf %279, %282 : vector<16x32xf32>
    %c0_103 = arith.constant 0 : index
    %c0_104 = arith.constant 0 : index
    %c0_105 = arith.constant 0 : index
    %284 = vector.load %arg7[%c0_103, %c0_104, %c0_105] : memref<3x32x32xf32, #tpu.memory_space<vmem>>, vector<1x32x32xf32>
    %285 = vector.shape_cast %284 : vector<1x32x32xf32> to vector<32x32xf32>
    %c1_106 = arith.constant 1 : index
    %c0_107 = arith.constant 0 : index
    %c0_108 = arith.constant 0 : index
    %286 = vector.load %arg7[%c1_106, %c0_107, %c0_108] : memref<3x32x32xf32, #tpu.memory_space<vmem>>, vector<1x32x32xf32>
    %287 = vector.shape_cast %286 : vector<1x32x32xf32> to vector<32x32xf32>
    %c2_109 = arith.constant 2 : index
    %c0_110 = arith.constant 0 : index
    %c0_111 = arith.constant 0 : index
    %288 = vector.load %arg7[%c2_109, %c0_110, %c0_111] : memref<3x32x32xf32, #tpu.memory_space<vmem>>, vector<1x32x32xf32>
    %289 = vector.shape_cast %288 : vector<1x32x32xf32> to vector<32x32xf32>
    %c3_112 = arith.constant 3 : index
    %c0_113 = arith.constant 0 : index
    %c0_114 = arith.constant 0 : index
    %290 = vector.load %arg8[%c3_112, %c0_113, %c0_114] : memref<4x1x32xf32, #tpu.memory_space<vmem>>, vector<1x1x32xf32>
    %291 = vector.shape_cast %290 : vector<1x1x32xf32> to vector<1x32xf32>
    %cst_115 = arith.constant 0.000000e+00 : f32
    %292 = vector.broadcast %cst_115 : f32 to vector<2x32xf32>
    %cst_116 = arith.constant dense<0.000000e+00> : vector<2x32xf32>
    %293 = tpu.matmul %292, %285, %cst_116 {dimension_numbers = #tpu.dot_dimension_numbers<[1], [0], [0], [1], [0, 0, 1, 1], [], []>} : vector<2x32xf32>, vector<32x32xf32>, vector<2x32xf32> -> vector<2x32xf32>
    %cst_117 = arith.constant dense<0.000000e+00> : vector<2x32xf32>
    %294 = tpu.matmul %292, %287, %cst_117 {dimension_numbers = #tpu.dot_dimension_numbers<[1], [0], [0], [1], [0, 0, 1, 1], [], []>} : vector<2x32xf32>, vector<32x32xf32>, vector<2x32xf32> -> vector<2x32xf32>
    %cst_118 = arith.constant dense<0.000000e+00> : vector<2x32xf32>
    %295 = tpu.matmul %292, %289, %cst_118 {dimension_numbers = #tpu.dot_dimension_numbers<[1], [0], [0], [1], [0, 0, 1, 1], [], []>} : vector<2x32xf32>, vector<32x32xf32>, vector<2x32xf32> -> vector<2x32xf32>
    %296 = vector.broadcast %291 : vector<1x32xf32> to vector<2x32xf32>
    %297 = arith.addf %295, %296 : vector<2x32xf32>
    %298 = vector.extract_strided_slice %269 {offsets = [0, 0], sizes = [2, 32], strides = [1, 1]} : vector<16x32xf32> to vector<2x32xf32>
    %299 = arith.addf %298, %293 : vector<2x32xf32>
    %300 = arith.negf %299 : vector<2x32xf32>
    %301 = math.exp %300 : vector<2x32xf32>
    %cst_119 = arith.constant 1.000000e+00 : f32
    %302 = vector.broadcast %cst_119 : f32 to vector<2x32xf32>
    %303 = arith.addf %302, %301 : vector<2x32xf32>
    %304 = arith.divf %302, %303 : vector<2x32xf32>
    %305 = vector.extract_strided_slice %276 {offsets = [0, 0], sizes = [2, 32], strides = [1, 1]} : vector<16x32xf32> to vector<2x32xf32>
    %306 = arith.addf %305, %294 : vector<2x32xf32>
    %307 = arith.negf %306 : vector<2x32xf32>
    %308 = math.exp %307 : vector<2x32xf32>
    %cst_120 = arith.constant 1.000000e+00 : f32
    %309 = vector.broadcast %cst_120 : f32 to vector<2x32xf32>
    %310 = arith.addf %309, %308 : vector<2x32xf32>
    %311 = arith.divf %309, %310 : vector<2x32xf32>
    %312 = vector.extract_strided_slice %283 {offsets = [0, 0], sizes = [2, 32], strides = [1, 1]} : vector<16x32xf32> to vector<2x32xf32>
    %313 = arith.mulf %304, %297 : vector<2x32xf32>
    %314 = arith.addf %312, %313 : vector<2x32xf32>
    %315 = math.tanh %314 : vector<2x32xf32>
    %cst_121 = arith.constant 1.000000e+00 : f32
    %316 = vector.broadcast %cst_121 : f32 to vector<2x32xf32>
    %317 = arith.subf %316, %311 : vector<2x32xf32>
    %318 = arith.mulf %317, %315 : vector<2x32xf32>
    %319 = arith.mulf %311, %292 : vector<2x32xf32>
    %320 = arith.addf %318, %319 : vector<2x32xf32>
    %cst_122 = arith.constant dense<0.000000e+00> : vector<2x32xf32>
    %321 = tpu.matmul %320, %285, %cst_122 {dimension_numbers = #tpu.dot_dimension_numbers<[1], [0], [0], [1], [0, 0, 1, 1], [], []>} : vector<2x32xf32>, vector<32x32xf32>, vector<2x32xf32> -> vector<2x32xf32>
    %cst_123 = arith.constant dense<0.000000e+00> : vector<2x32xf32>
    %322 = tpu.matmul %320, %287, %cst_123 {dimension_numbers = #tpu.dot_dimension_numbers<[1], [0], [0], [1], [0, 0, 1, 1], [], []>} : vector<2x32xf32>, vector<32x32xf32>, vector<2x32xf32> -> vector<2x32xf32>
    %cst_124 = arith.constant dense<0.000000e+00> : vector<2x32xf32>
    %323 = tpu.matmul %320, %289, %cst_124 {dimension_numbers = #tpu.dot_dimension_numbers<[1], [0], [0], [1], [0, 0, 1, 1], [], []>} : vector<2x32xf32>, vector<32x32xf32>, vector<2x32xf32> -> vector<2x32xf32>
    %324 = vector.broadcast %291 : vector<1x32xf32> to vector<2x32xf32>
    %325 = arith.addf %323, %324 : vector<2x32xf32>
    %326 = vector.extract_strided_slice %269 {offsets = [2, 0], sizes = [2, 32], strides = [1, 1]} : vector<16x32xf32> to vector<2x32xf32>
    %327 = arith.addf %326, %321 : vector<2x32xf32>
    %328 = arith.negf %327 : vector<2x32xf32>
    %329 = math.exp %328 : vector<2x32xf32>
    %cst_125 = arith.constant 1.000000e+00 : f32
    %330 = vector.broadcast %cst_125 : f32 to vector<2x32xf32>
    %331 = arith.addf %330, %329 : vector<2x32xf32>
    %332 = arith.divf %330, %331 : vector<2x32xf32>
    %333 = vector.extract_strided_slice %276 {offsets = [2, 0], sizes = [2, 32], strides = [1, 1]} : vector<16x32xf32> to vector<2x32xf32>
    %334 = arith.addf %333, %322 : vector<2x32xf32>
    %335 = arith.negf %334 : vector<2x32xf32>
    %336 = math.exp %335 : vector<2x32xf32>
    %cst_126 = arith.constant 1.000000e+00 : f32
    %337 = vector.broadcast %cst_126 : f32 to vector<2x32xf32>
    %338 = arith.addf %337, %336 : vector<2x32xf32>
    %339 = arith.divf %337, %338 : vector<2x32xf32>
    %340 = vector.extract_strided_slice %283 {offsets = [2, 0], sizes = [2, 32], strides = [1, 1]} : vector<16x32xf32> to vector<2x32xf32>
    %341 = arith.mulf %332, %325 : vector<2x32xf32>
    %342 = arith.addf %340, %341 : vector<2x32xf32>
    %343 = math.tanh %342 : vector<2x32xf32>
    %cst_127 = arith.constant 1.000000e+00 : f32
    %344 = vector.broadcast %cst_127 : f32 to vector<2x32xf32>
    %345 = arith.subf %344, %339 : vector<2x32xf32>
    %346 = arith.mulf %345, %343 : vector<2x32xf32>
    %347 = arith.mulf %339, %320 : vector<2x32xf32>
    %348 = arith.addf %346, %347 : vector<2x32xf32>
    %cst_128 = arith.constant dense<0.000000e+00> : vector<2x32xf32>
    %349 = tpu.matmul %348, %285, %cst_128 {dimension_numbers = #tpu.dot_dimension_numbers<[1], [0], [0], [1], [0, 0, 1, 1], [], []>} : vector<2x32xf32>, vector<32x32xf32>, vector<2x32xf32> -> vector<2x32xf32>
    %cst_129 = arith.constant dense<0.000000e+00> : vector<2x32xf32>
    %350 = tpu.matmul %348, %287, %cst_129 {dimension_numbers = #tpu.dot_dimension_numbers<[1], [0], [0], [1], [0, 0, 1, 1], [], []>} : vector<2x32xf32>, vector<32x32xf32>, vector<2x32xf32> -> vector<2x32xf32>
    %cst_130 = arith.constant dense<0.000000e+00> : vector<2x32xf32>
    %351 = tpu.matmul %348, %289, %cst_130 {dimension_numbers = #tpu.dot_dimension_numbers<[1], [0], [0], [1], [0, 0, 1, 1], [], []>} : vector<2x32xf32>, vector<32x32xf32>, vector<2x32xf32> -> vector<2x32xf32>
    %352 = vector.broadcast %291 : vector<1x32xf32> to vector<2x32xf32>
    %353 = arith.addf %351, %352 : vector<2x32xf32>
    %354 = vector.extract_strided_slice %269 {offsets = [4, 0], sizes = [2, 32], strides = [1, 1]} : vector<16x32xf32> to vector<2x32xf32>
    %355 = arith.addf %354, %349 : vector<2x32xf32>
    %356 = arith.negf %355 : vector<2x32xf32>
    %357 = math.exp %356 : vector<2x32xf32>
    %cst_131 = arith.constant 1.000000e+00 : f32
    %358 = vector.broadcast %cst_131 : f32 to vector<2x32xf32>
    %359 = arith.addf %358, %357 : vector<2x32xf32>
    %360 = arith.divf %358, %359 : vector<2x32xf32>
    %361 = vector.extract_strided_slice %276 {offsets = [4, 0], sizes = [2, 32], strides = [1, 1]} : vector<16x32xf32> to vector<2x32xf32>
    %362 = arith.addf %361, %350 : vector<2x32xf32>
    %363 = arith.negf %362 : vector<2x32xf32>
    %364 = math.exp %363 : vector<2x32xf32>
    %cst_132 = arith.constant 1.000000e+00 : f32
    %365 = vector.broadcast %cst_132 : f32 to vector<2x32xf32>
    %366 = arith.addf %365, %364 : vector<2x32xf32>
    %367 = arith.divf %365, %366 : vector<2x32xf32>
    %368 = vector.extract_strided_slice %283 {offsets = [4, 0], sizes = [2, 32], strides = [1, 1]} : vector<16x32xf32> to vector<2x32xf32>
    %369 = arith.mulf %360, %353 : vector<2x32xf32>
    %370 = arith.addf %368, %369 : vector<2x32xf32>
    %371 = math.tanh %370 : vector<2x32xf32>
    %cst_133 = arith.constant 1.000000e+00 : f32
    %372 = vector.broadcast %cst_133 : f32 to vector<2x32xf32>
    %373 = arith.subf %372, %367 : vector<2x32xf32>
    %374 = arith.mulf %373, %371 : vector<2x32xf32>
    %375 = arith.mulf %367, %348 : vector<2x32xf32>
    %376 = arith.addf %374, %375 : vector<2x32xf32>
    %cst_134 = arith.constant dense<0.000000e+00> : vector<2x32xf32>
    %377 = tpu.matmul %376, %285, %cst_134 {dimension_numbers = #tpu.dot_dimension_numbers<[1], [0], [0], [1], [0, 0, 1, 1], [], []>} : vector<2x32xf32>, vector<32x32xf32>, vector<2x32xf32> -> vector<2x32xf32>
    %cst_135 = arith.constant dense<0.000000e+00> : vector<2x32xf32>
    %378 = tpu.matmul %376, %287, %cst_135 {dimension_numbers = #tpu.dot_dimension_numbers<[1], [0], [0], [1], [0, 0, 1, 1], [], []>} : vector<2x32xf32>, vector<32x32xf32>, vector<2x32xf32> -> vector<2x32xf32>
    %cst_136 = arith.constant dense<0.000000e+00> : vector<2x32xf32>
    %379 = tpu.matmul %376, %289, %cst_136 {dimension_numbers = #tpu.dot_dimension_numbers<[1], [0], [0], [1], [0, 0, 1, 1], [], []>} : vector<2x32xf32>, vector<32x32xf32>, vector<2x32xf32> -> vector<2x32xf32>
    %380 = vector.broadcast %291 : vector<1x32xf32> to vector<2x32xf32>
    %381 = arith.addf %379, %380 : vector<2x32xf32>
    %382 = vector.extract_strided_slice %269 {offsets = [6, 0], sizes = [2, 32], strides = [1, 1]} : vector<16x32xf32> to vector<2x32xf32>
    %383 = arith.addf %382, %377 : vector<2x32xf32>
    %384 = arith.negf %383 : vector<2x32xf32>
    %385 = math.exp %384 : vector<2x32xf32>
    %cst_137 = arith.constant 1.000000e+00 : f32
    %386 = vector.broadcast %cst_137 : f32 to vector<2x32xf32>
    %387 = arith.addf %386, %385 : vector<2x32xf32>
    %388 = arith.divf %386, %387 : vector<2x32xf32>
    %389 = vector.extract_strided_slice %276 {offsets = [6, 0], sizes = [2, 32], strides = [1, 1]} : vector<16x32xf32> to vector<2x32xf32>
    %390 = arith.addf %389, %378 : vector<2x32xf32>
    %391 = arith.negf %390 : vector<2x32xf32>
    %392 = math.exp %391 : vector<2x32xf32>
    %cst_138 = arith.constant 1.000000e+00 : f32
    %393 = vector.broadcast %cst_138 : f32 to vector<2x32xf32>
    %394 = arith.addf %393, %392 : vector<2x32xf32>
    %395 = arith.divf %393, %394 : vector<2x32xf32>
    %396 = vector.extract_strided_slice %283 {offsets = [6, 0], sizes = [2, 32], strides = [1, 1]} : vector<16x32xf32> to vector<2x32xf32>
    %397 = arith.mulf %388, %381 : vector<2x32xf32>
    %398 = arith.addf %396, %397 : vector<2x32xf32>
    %399 = math.tanh %398 : vector<2x32xf32>
    %cst_139 = arith.constant 1.000000e+00 : f32
    %400 = vector.broadcast %cst_139 : f32 to vector<2x32xf32>
    %401 = arith.subf %400, %395 : vector<2x32xf32>
    %402 = arith.mulf %401, %399 : vector<2x32xf32>
    %403 = arith.mulf %395, %376 : vector<2x32xf32>
    %404 = arith.addf %402, %403 : vector<2x32xf32>
    %cst_140 = arith.constant dense<0.000000e+00> : vector<2x32xf32>
    %405 = tpu.matmul %404, %285, %cst_140 {dimension_numbers = #tpu.dot_dimension_numbers<[1], [0], [0], [1], [0, 0, 1, 1], [], []>} : vector<2x32xf32>, vector<32x32xf32>, vector<2x32xf32> -> vector<2x32xf32>
    %cst_141 = arith.constant dense<0.000000e+00> : vector<2x32xf32>
    %406 = tpu.matmul %404, %287, %cst_141 {dimension_numbers = #tpu.dot_dimension_numbers<[1], [0], [0], [1], [0, 0, 1, 1], [], []>} : vector<2x32xf32>, vector<32x32xf32>, vector<2x32xf32> -> vector<2x32xf32>
    %cst_142 = arith.constant dense<0.000000e+00> : vector<2x32xf32>
    %407 = tpu.matmul %404, %289, %cst_142 {dimension_numbers = #tpu.dot_dimension_numbers<[1], [0], [0], [1], [0, 0, 1, 1], [], []>} : vector<2x32xf32>, vector<32x32xf32>, vector<2x32xf32> -> vector<2x32xf32>
    %408 = vector.broadcast %291 : vector<1x32xf32> to vector<2x32xf32>
    %409 = arith.addf %407, %408 : vector<2x32xf32>
    %410 = vector.extract_strided_slice %269 {offsets = [8, 0], sizes = [2, 32], strides = [1, 1]} : vector<16x32xf32> to vector<2x32xf32>
    %411 = arith.addf %410, %405 : vector<2x32xf32>
    %412 = arith.negf %411 : vector<2x32xf32>
    %413 = math.exp %412 : vector<2x32xf32>
    %cst_143 = arith.constant 1.000000e+00 : f32
    %414 = vector.broadcast %cst_143 : f32 to vector<2x32xf32>
    %415 = arith.addf %414, %413 : vector<2x32xf32>
    %416 = arith.divf %414, %415 : vector<2x32xf32>
    %417 = vector.extract_strided_slice %276 {offsets = [8, 0], sizes = [2, 32], strides = [1, 1]} : vector<16x32xf32> to vector<2x32xf32>
    %418 = arith.addf %417, %406 : vector<2x32xf32>
    %419 = arith.negf %418 : vector<2x32xf32>
    %420 = math.exp %419 : vector<2x32xf32>
    %cst_144 = arith.constant 1.000000e+00 : f32
    %421 = vector.broadcast %cst_144 : f32 to vector<2x32xf32>
    %422 = arith.addf %421, %420 : vector<2x32xf32>
    %423 = arith.divf %421, %422 : vector<2x32xf32>
    %424 = vector.extract_strided_slice %283 {offsets = [8, 0], sizes = [2, 32], strides = [1, 1]} : vector<16x32xf32> to vector<2x32xf32>
    %425 = arith.mulf %416, %409 : vector<2x32xf32>
    %426 = arith.addf %424, %425 : vector<2x32xf32>
    %427 = math.tanh %426 : vector<2x32xf32>
    %cst_145 = arith.constant 1.000000e+00 : f32
    %428 = vector.broadcast %cst_145 : f32 to vector<2x32xf32>
    %429 = arith.subf %428, %423 : vector<2x32xf32>
    %430 = arith.mulf %429, %427 : vector<2x32xf32>
    %431 = arith.mulf %423, %404 : vector<2x32xf32>
    %432 = arith.addf %430, %431 : vector<2x32xf32>
    %cst_146 = arith.constant dense<0.000000e+00> : vector<2x32xf32>
    %433 = tpu.matmul %432, %285, %cst_146 {dimension_numbers = #tpu.dot_dimension_numbers<[1], [0], [0], [1], [0, 0, 1, 1], [], []>} : vector<2x32xf32>, vector<32x32xf32>, vector<2x32xf32> -> vector<2x32xf32>
    %cst_147 = arith.constant dense<0.000000e+00> : vector<2x32xf32>
    %434 = tpu.matmul %432, %287, %cst_147 {dimension_numbers = #tpu.dot_dimension_numbers<[1], [0], [0], [1], [0, 0, 1, 1], [], []>} : vector<2x32xf32>, vector<32x32xf32>, vector<2x32xf32> -> vector<2x32xf32>
    %cst_148 = arith.constant dense<0.000000e+00> : vector<2x32xf32>
    %435 = tpu.matmul %432, %289, %cst_148 {dimension_numbers = #tpu.dot_dimension_numbers<[1], [0], [0], [1], [0, 0, 1, 1], [], []>} : vector<2x32xf32>, vector<32x32xf32>, vector<2x32xf32> -> vector<2x32xf32>
    %436 = vector.broadcast %291 : vector<1x32xf32> to vector<2x32xf32>
    %437 = arith.addf %435, %436 : vector<2x32xf32>
    %438 = vector.extract_strided_slice %269 {offsets = [10, 0], sizes = [2, 32], strides = [1, 1]} : vector<16x32xf32> to vector<2x32xf32>
    %439 = arith.addf %438, %433 : vector<2x32xf32>
    %440 = arith.negf %439 : vector<2x32xf32>
    %441 = math.exp %440 : vector<2x32xf32>
    %cst_149 = arith.constant 1.000000e+00 : f32
    %442 = vector.broadcast %cst_149 : f32 to vector<2x32xf32>
    %443 = arith.addf %442, %441 : vector<2x32xf32>
    %444 = arith.divf %442, %443 : vector<2x32xf32>
    %445 = vector.extract_strided_slice %276 {offsets = [10, 0], sizes = [2, 32], strides = [1, 1]} : vector<16x32xf32> to vector<2x32xf32>
    %446 = arith.addf %445, %434 : vector<2x32xf32>
    %447 = arith.negf %446 : vector<2x32xf32>
    %448 = math.exp %447 : vector<2x32xf32>
    %cst_150 = arith.constant 1.000000e+00 : f32
    %449 = vector.broadcast %cst_150 : f32 to vector<2x32xf32>
    %450 = arith.addf %449, %448 : vector<2x32xf32>
    %451 = arith.divf %449, %450 : vector<2x32xf32>
    %452 = vector.extract_strided_slice %283 {offsets = [10, 0], sizes = [2, 32], strides = [1, 1]} : vector<16x32xf32> to vector<2x32xf32>
    %453 = arith.mulf %444, %437 : vector<2x32xf32>
    %454 = arith.addf %452, %453 : vector<2x32xf32>
    %455 = math.tanh %454 : vector<2x32xf32>
    %cst_151 = arith.constant 1.000000e+00 : f32
    %456 = vector.broadcast %cst_151 : f32 to vector<2x32xf32>
    %457 = arith.subf %456, %451 : vector<2x32xf32>
    %458 = arith.mulf %457, %455 : vector<2x32xf32>
    %459 = arith.mulf %451, %432 : vector<2x32xf32>
    %460 = arith.addf %458, %459 : vector<2x32xf32>
    %cst_152 = arith.constant dense<0.000000e+00> : vector<2x32xf32>
    %461 = tpu.matmul %460, %285, %cst_152 {dimension_numbers = #tpu.dot_dimension_numbers<[1], [0], [0], [1], [0, 0, 1, 1], [], []>} : vector<2x32xf32>, vector<32x32xf32>, vector<2x32xf32> -> vector<2x32xf32>
    %cst_153 = arith.constant dense<0.000000e+00> : vector<2x32xf32>
    %462 = tpu.matmul %460, %287, %cst_153 {dimension_numbers = #tpu.dot_dimension_numbers<[1], [0], [0], [1], [0, 0, 1, 1], [], []>} : vector<2x32xf32>, vector<32x32xf32>, vector<2x32xf32> -> vector<2x32xf32>
    %cst_154 = arith.constant dense<0.000000e+00> : vector<2x32xf32>
    %463 = tpu.matmul %460, %289, %cst_154 {dimension_numbers = #tpu.dot_dimension_numbers<[1], [0], [0], [1], [0, 0, 1, 1], [], []>} : vector<2x32xf32>, vector<32x32xf32>, vector<2x32xf32> -> vector<2x32xf32>
    %464 = vector.broadcast %291 : vector<1x32xf32> to vector<2x32xf32>
    %465 = arith.addf %463, %464 : vector<2x32xf32>
    %466 = vector.extract_strided_slice %269 {offsets = [12, 0], sizes = [2, 32], strides = [1, 1]} : vector<16x32xf32> to vector<2x32xf32>
    %467 = arith.addf %466, %461 : vector<2x32xf32>
    %468 = arith.negf %467 : vector<2x32xf32>
    %469 = math.exp %468 : vector<2x32xf32>
    %cst_155 = arith.constant 1.000000e+00 : f32
    %470 = vector.broadcast %cst_155 : f32 to vector<2x32xf32>
    %471 = arith.addf %470, %469 : vector<2x32xf32>
    %472 = arith.divf %470, %471 : vector<2x32xf32>
    %473 = vector.extract_strided_slice %276 {offsets = [12, 0], sizes = [2, 32], strides = [1, 1]} : vector<16x32xf32> to vector<2x32xf32>
    %474 = arith.addf %473, %462 : vector<2x32xf32>
    %475 = arith.negf %474 : vector<2x32xf32>
    %476 = math.exp %475 : vector<2x32xf32>
    %cst_156 = arith.constant 1.000000e+00 : f32
    %477 = vector.broadcast %cst_156 : f32 to vector<2x32xf32>
    %478 = arith.addf %477, %476 : vector<2x32xf32>
    %479 = arith.divf %477, %478 : vector<2x32xf32>
    %480 = vector.extract_strided_slice %283 {offsets = [12, 0], sizes = [2, 32], strides = [1, 1]} : vector<16x32xf32> to vector<2x32xf32>
    %481 = arith.mulf %472, %465 : vector<2x32xf32>
    %482 = arith.addf %480, %481 : vector<2x32xf32>
    %483 = math.tanh %482 : vector<2x32xf32>
    %cst_157 = arith.constant 1.000000e+00 : f32
    %484 = vector.broadcast %cst_157 : f32 to vector<2x32xf32>
    %485 = arith.subf %484, %479 : vector<2x32xf32>
    %486 = arith.mulf %485, %483 : vector<2x32xf32>
    %487 = arith.mulf %479, %460 : vector<2x32xf32>
    %488 = arith.addf %486, %487 : vector<2x32xf32>
    %cst_158 = arith.constant dense<0.000000e+00> : vector<2x32xf32>
    %489 = tpu.matmul %488, %285, %cst_158 {dimension_numbers = #tpu.dot_dimension_numbers<[1], [0], [0], [1], [0, 0, 1, 1], [], []>} : vector<2x32xf32>, vector<32x32xf32>, vector<2x32xf32> -> vector<2x32xf32>
    %cst_159 = arith.constant dense<0.000000e+00> : vector<2x32xf32>
    %490 = tpu.matmul %488, %287, %cst_159 {dimension_numbers = #tpu.dot_dimension_numbers<[1], [0], [0], [1], [0, 0, 1, 1], [], []>} : vector<2x32xf32>, vector<32x32xf32>, vector<2x32xf32> -> vector<2x32xf32>
    %cst_160 = arith.constant dense<0.000000e+00> : vector<2x32xf32>
    %491 = tpu.matmul %488, %289, %cst_160 {dimension_numbers = #tpu.dot_dimension_numbers<[1], [0], [0], [1], [0, 0, 1, 1], [], []>} : vector<2x32xf32>, vector<32x32xf32>, vector<2x32xf32> -> vector<2x32xf32>
    %492 = vector.broadcast %291 : vector<1x32xf32> to vector<2x32xf32>
    %493 = arith.addf %491, %492 : vector<2x32xf32>
    %494 = vector.extract_strided_slice %269 {offsets = [14, 0], sizes = [2, 32], strides = [1, 1]} : vector<16x32xf32> to vector<2x32xf32>
    %495 = arith.addf %494, %489 : vector<2x32xf32>
    %496 = arith.negf %495 : vector<2x32xf32>
    %497 = math.exp %496 : vector<2x32xf32>
    %cst_161 = arith.constant 1.000000e+00 : f32
    %498 = vector.broadcast %cst_161 : f32 to vector<2x32xf32>
    %499 = arith.addf %498, %497 : vector<2x32xf32>
    %500 = arith.divf %498, %499 : vector<2x32xf32>
    %501 = vector.extract_strided_slice %276 {offsets = [14, 0], sizes = [2, 32], strides = [1, 1]} : vector<16x32xf32> to vector<2x32xf32>
    %502 = arith.addf %501, %490 : vector<2x32xf32>
    %503 = arith.negf %502 : vector<2x32xf32>
    %504 = math.exp %503 : vector<2x32xf32>
    %cst_162 = arith.constant 1.000000e+00 : f32
    %505 = vector.broadcast %cst_162 : f32 to vector<2x32xf32>
    %506 = arith.addf %505, %504 : vector<2x32xf32>
    %507 = arith.divf %505, %506 : vector<2x32xf32>
    %508 = vector.extract_strided_slice %283 {offsets = [14, 0], sizes = [2, 32], strides = [1, 1]} : vector<16x32xf32> to vector<2x32xf32>
    %509 = arith.mulf %500, %493 : vector<2x32xf32>
    %510 = arith.addf %508, %509 : vector<2x32xf32>
    %511 = math.tanh %510 : vector<2x32xf32>
    %cst_163 = arith.constant 1.000000e+00 : f32
    %512 = vector.broadcast %cst_163 : f32 to vector<2x32xf32>
    %513 = arith.subf %512, %507 : vector<2x32xf32>
    %514 = arith.mulf %513, %511 : vector<2x32xf32>
    %515 = arith.mulf %507, %488 : vector<2x32xf32>
    %516 = arith.addf %514, %515 : vector<2x32xf32>
    %517 = tpu.concatenate %320, %348, %376, %404, %432, %460, %488, %516 in 0 : vector<2x32xf32>, vector<2x32xf32>, vector<2x32xf32>, vector<2x32xf32>, vector<2x32xf32>, vector<2x32xf32>, vector<2x32xf32>, vector<2x32xf32> -> vector<16x32xf32>
    %c0_164 = arith.constant 0 : index
    %c0_165 = arith.constant 0 : index
    %518 = vector.load %arg9[%c0_164, %c0_165] : memref<32x64xf32, #tpu.memory_space<vmem>>, vector<32x64xf32>
    %cst_166 = arith.constant dense<0.000000e+00> : vector<16x64xf32>
    %519 = tpu.matmul %517, %518, %cst_166 {dimension_numbers = #tpu.dot_dimension_numbers<[1], [0], [0], [1], [0, 0, 1, 1], [], []>} : vector<16x32xf32>, vector<32x64xf32>, vector<16x64xf32> -> vector<16x64xf32>
    %c0_167 = arith.constant 0 : index
    %c0_168 = arith.constant 0 : index
    %520 = vector.load %arg10[%c0_167, %c0_168] : memref<1x64xf32, #tpu.memory_space<vmem>>, vector<1x64xf32>
    %521 = vector.broadcast %520 : vector<1x64xf32> to vector<16x64xf32>
    %522 = arith.addf %519, %521 : vector<16x64xf32>
    %c0_169 = arith.constant 0 : index
    %c0_170 = arith.constant 0 : index
    %523 = vector.load %arg11[%c0_169, %c0_170] : memref<16x64xf32, #tpu.memory_space<vmem>>, vector<16x64xf32>
    tpu.vector_store %arg11[%c0_169, %c0_170], %522 {strides = array<i32>} : memref<16x64xf32, #tpu.memory_space<vmem>>, vector<16x64xf32>,
    return
  }
  func.func @transform_0(%arg0: i32) -> (i32, i32) {
    %c0_i32 = arith.constant 0 : i32
    %c0_i32_0 = arith.constant 0 : i32
    %c0_i32_1 = arith.constant 0 : i32
    return %c0_i32, %c0_i32_0 : i32, i32
  }
  func.func @transform_1(%arg0: i32) -> (i32, i32) {
    %c0_i32 = arith.constant 0 : i32
    %c0_i32_0 = arith.constant 0 : i32
    %c0_i32_1 = arith.constant 0 : i32
    return %c0_i32, %c0_i32_0 : i32, i32
  }
  func.func @transform_2(%arg0: i32) -> (i32, i32, i32) {
    %c0_i32 = arith.constant 0 : i32
    %c0_i32_0 = arith.constant 0 : i32
    %c0_i32_1 = arith.constant 0 : i32
    %c0_i32_2 = arith.constant 0 : i32
    return %c0_i32, %c0_i32_0, %c0_i32_1 : i32, i32, i32
  }
  func.func @transform_3(%arg0: i32) -> (i32, i32, i32) {
    %c0_i32 = arith.constant 0 : i32
    %c0_i32_0 = arith.constant 0 : i32
    %c0_i32_1 = arith.constant 0 : i32
    %c0_i32_2 = arith.constant 0 : i32
    return %c0_i32, %c0_i32_0, %c0_i32_1 : i32, i32, i32
  }
  func.func @transform_4(%arg0: i32) -> (i32, i32, i32) {
    %c0_i32 = arith.constant 0 : i32
    %c0_i32_0 = arith.constant 0 : i32
    %c0_i32_1 = arith.constant 0 : i32
    %c0_i32_2 = arith.constant 0 : i32
    return %c0_i32, %c0_i32_0, %c0_i32_1 : i32, i32, i32
  }
  func.func @transform_5(%arg0: i32) -> (i32, i32, i32) {
    %c0_i32 = arith.constant 0 : i32
    %c0_i32_0 = arith.constant 0 : i32
    %c0_i32_1 = arith.constant 0 : i32
    %c0_i32_2 = arith.constant 0 : i32
    return %c0_i32, %c0_i32_0, %c0_i32_1 : i32, i32, i32
  }
  func.func @transform_6(%arg0: i32) -> (i32, i32, i32) {
    %c0_i32 = arith.constant 0 : i32
    %c0_i32_0 = arith.constant 0 : i32
    %c0_i32_1 = arith.constant 0 : i32
    %c0_i32_2 = arith.constant 0 : i32
    return %c0_i32, %c0_i32_0, %c0_i32_1 : i32, i32, i32
  }
  func.func @transform_7(%arg0: i32) -> (i32, i32, i32) {
    %c0_i32 = arith.constant 0 : i32
    %c0_i32_0 = arith.constant 0 : i32
    %c0_i32_1 = arith.constant 0 : i32
    %c0_i32_2 = arith.constant 0 : i32
    return %c0_i32, %c0_i32_0, %c0_i32_1 : i32, i32, i32
  }
  func.func @transform_8(%arg0: i32) -> (i32, i32) {
    %c0_i32 = arith.constant 0 : i32
    %c0_i32_0 = arith.constant 0 : i32
    %c0_i32_1 = arith.constant 0 : i32
    return %c0_i32, %c0_i32_0 : i32, i32
  }
  func.func @transform_9(%arg0: i32) -> (i32, i32) {
    %c0_i32 = arith.constant 0 : i32
    %c0_i32_0 = arith.constant 0 : i32
    %c0_i32_1 = arith.constant 0 : i32
    return %c0_i32, %c0_i32_0 : i32, i32
  }
  func.func @transform_10(%arg0: i32) -> (i32, i32) {
    %c0_i32 = arith.constant 0 : i32
    %c0_i32_0 = arith.constant 0 : i32
    %c0_i32_1 = arith.constant 0 : i32
    return %c0_i32, %c0_i32_0 : i32, i32
  }
}

</mosaic_0001>

<llo_original>
// kernel: tpu_custom_call.1
$region0: #{tpu_custom_call.1}
  #allocation0 [shape = 'u32[]', space=smem, size = 0x4, offset = 0x4, fixed_abs, tag = 'smem constant byte address 0x4 - core index']
  #allocation1 [shape = 'u32[144,128]{1,0:T(1,128)}', space=vmem, size = 0x12000, scoped, tag = 'internal scratch']
  %s0 = inlined_call_operand.vmem [shape: s32[16,1], index: 0, kind: input, shape index: {}]
  %s1 = inlined_call_operand.vmem [shape: f32[64,32], index: 1, kind: input, shape index: {}]
  %s2 = inlined_call_operand.vmem [shape: f32[3,32,32], index: 2, kind: input, shape index: {}]
  %s3 = inlined_call_operand.hbm [shape: f32[3,32,32], index: 3, kind: input, shape index: {}]
  %s4 = inlined_call_operand.hbm [shape: f32[4,1,32], index: 4, kind: input, shape index: {}]
  %s5 = inlined_call_operand.hbm [shape: f32[3,32,32], index: 5, kind: input, shape index: {}]
  %s6 = inlined_call_operand.hbm [shape: f32[3,32,32], index: 6, kind: input, shape index: {}]
  %s7 = inlined_call_operand.vmem [shape: f32[4,1,32], index: 7, kind: input, shape index: {}]
  %s8 = inlined_call_operand.vmem [shape: f32[32,64], index: 8, kind: input, shape index: {}]
  %s9 = inlined_call_operand.vmem [shape: f32[1,64], index: 9, kind: input, shape index: {}]
  %s10 = inlined_call_operand.hbm [shape: f32[16,64], index: 10, kind: output, shape index: {}]
  %s11 = sld [smem:[#allocation0]]
  $region66: #{tpu_custom_call.1} parent=0
    _
  %s13 = ssub.s32 1, %s11
  %s14 = scalar_select 0, %s13, %s11
  $region1: #{tpu_custom_call.1} parent=0
    #allocation2 [shape = 'u8[49152]{0}', space=vmem, size = 0xc000, scoped, tag = 'input window, operand 3, single buffered']
    #allocation3 [shape = 's32[1]{0}', space=sflag, size = 0x4, scoped, tag = 'scoped memory for tpu_custom_call.1']
    #allocation4 [shape = 's32[1]{0}', space=sflag, size = 0x4, scoped, tag = 'scoped memory for tpu_custom_call.1']
    #allocation5 [shape = 'u8[2048]{0}', space=vmem, size = 0x800, scoped, tag = 'input window, operand 4, single buffered']
    #allocation6 [shape = 's32[1]{0}', space=sflag, size = 0x4, scoped, tag = 'scoped memory for tpu_custom_call.1']
    #allocation7 [shape = 'u8[49152]{0}', space=vmem, size = 0xc000, scoped, tag = 'input window, operand 5, single buffered']
    #allocation8 [shape = 'u8[49152]{0}', space=vmem, size = 0xc000, scoped, tag = 'input window, operand 6, single buffered']
    #allocation9 [shape = 's32[1]{0}', space=sflag, size = 0x4, scoped, tag = 'scoped memory for tpu_custom_call.1']
    #allocation10 [shape = 'u8[8192]{0}', space=vmem, size = 0x2000, scoped, tag = 'output window, operand 0, single buffered']
    %15 = vsyncpa [#allocation3], 0
    %16 = vsyncpa [#allocation6], 0
    %17 = vsyncpa [#allocation9], 0
    %18 = vsyncpa [#allocation4], 0
    // Predicated region
    $region2: #{tpu_custom_call.1} parent=1 // pred_check
      _
    $region3: #{tpu_custom_call.1} parent=1 // pred_check_branch
      %20 = sbr.rel (0) target = $region5
    $region4: #{tpu_custom_call.1} parent=1 // pred_region
      _
    $region5: #{tpu_custom_call.1} parent=1 // pred_fallthru
      _
    // Predicated region
    $region6: #{tpu_custom_call.1} parent=1 // pred_check
      _
    $region7: #{tpu_custom_call.1} parent=1 // pred_check_branch
      %22 = sbr.rel (0) target = $region9
    $region8: #{tpu_custom_call.1} parent=1 // pred_region
      _
    $region9: #{tpu_custom_call.1} parent=1 // pred_fallthru
      _
    // Predicated region
    $region10: #{tpu_custom_call.1} parent=1 // pred_check
      _
    $region11: #{tpu_custom_call.1} parent=1 // pred_check_branch
      %24 = sbr.rel (0) target = $region13
    $region12: #{tpu_custom_call.1} parent=1 // pred_region
      _
    $region13: #{tpu_custom_call.1} parent=1 // pred_fallthru
      _
    // Predicated region
    $region14: #{tpu_custom_call.1} parent=1 // pred_check
      _
    $region15: #{tpu_custom_call.1} parent=1 // pred_check_branch
      %26 = sbr.rel (0) target = $region17
    $region16: #{tpu_custom_call.1} parent=1 // pred_region
      %s28 = ssub.s32 1536, 1536
      %29 = vsyncadd [#allocation3], %s28
      %s30 = sshll.u32 [#allocation2], 4
      %s31 = int_to_ptr.vmem [resolvable:$true] %s30
      %36 = dma.hbm_to_vmem [thread:$0]  %s3, 1536, %s31, [#allocation3], 128, 128, 8
    $region17: #{tpu_custom_call.1} parent=1 // pred_fallthru
      _
    // Predicated region
    $region18: #{tpu_custom_call.1} parent=1 // pred_check
      _
    $region19: #{tpu_custom_call.1} parent=1 // pred_check_branch
      %38 = sbr.rel (0) target = $region21
    $region20: #{tpu_custom_call.1} parent=1 // pred_region
      %s40 = ssub.s32 64, 64
      %41 = vsyncadd [#allocation6], %s40
      %s42 = sshll.u32 [#allocation5], 4
      %s43 = int_to_ptr.vmem [resolvable:$true] %s42
      %48 = dma.hbm_to_vmem [thread:$0]  %s4, 64, %s43, [#allocation6], 16, 16, 1
    $region21: #{tpu_custom_call.1} parent=1 // pred_fallthru
      _
    // Predicated region
    $region22: #{tpu_custom_call.1} parent=1 // pred_check
      _
    $region23: #{tpu_custom_call.1} parent=1 // pred_check_branch
      %50 = sbr.rel (0) target = $region25
    $region24: #{tpu_custom_call.1} parent=1 // pred_region
      %s52 = ssub.s32 1536, 1536
      %53 = vsyncadd [#allocation6], %s52
      %s54 = sshll.u32 [#allocation7], 4
      %s55 = int_to_ptr.vmem [resolvable:$true] %s54
      %60 = dma.hbm_to_vmem [thread:$0]  %s5, 1536, %s55, [#allocation6], 128, 128, 8
    $region25: #{tpu_custom_call.1} parent=1 // pred_fallthru
      _
    // Predicated region
    $region26: #{tpu_custom_call.1} parent=1 // pred_check
      _
    $region27: #{tpu_custom_call.1} parent=1 // pred_check_branch
      %62 = sbr.rel (0) target = $region29
    $region28: #{tpu_custom_call.1} parent=1 // pred_region
      %s64 = ssub.s32 1536, 1536
      %65 = vsyncadd [#allocation9], %s64
      %s66 = sshll.u32 [#allocation8], 4
      %s67 = int_to_ptr.vmem [resolvable:$true] %s66
      %72 = dma.hbm_to_vmem [thread:$0]  %s6, 1536, %s67, [#allocation9], 128, 128, 8
    $region29: #{tpu_custom_call.1} parent=1 // pred_fallthru
      _
    // Predicated region
    $region30: #{tpu_custom_call.1} parent=1 // pred_check
      _
    $region31: #{tpu_custom_call.1} parent=1 // pred_check_branch
      %74 = sbr.rel (0) target = $region33
    $region32: #{tpu_custom_call.1} parent=1 // pred_region
      _
    $region33: #{tpu_custom_call.1} parent=1 // pred_fallthru
      _
    // Predicated region
    $region34: #{tpu_custom_call.1} parent=1 // pred_check
      _
    $region35: #{tpu_custom_call.1} parent=1 // pred_check_branch
      %76 = sbr.rel (0) target = $region37
    $region36: #{tpu_custom_call.1} parent=1 // pred_region
      _
    $region37: #{tpu_custom_call.1} parent=1 // pred_fallthru
      _
    // Predicated region
    $region38: #{tpu_custom_call.1} parent=1 // pred_check
      _
    $region39: #{tpu_custom_call.1} parent=1 // pred_check_branch
      %78 = sbr.rel (0) target = $region41
    $region40: #{tpu_custom_call.1} parent=1 // pred_region
      _
    $region41: #{tpu_custom_call.1} parent=1 // pred_fallthru
      _
    // Predicated region
    $region42: #{tpu_custom_call.1} parent=1 // pred_check
      _
    $region43: #{tpu_custom_call.1} parent=1 // pred_check_branch
      %80 = sbr.rel (0) target = $region45
    $region44: #{tpu_custom_call.1} parent=1 // pred_region
      %81 = dma.done [#allocation3], 1536
    $region45: #{tpu_custom_call.1} parent=1 // pred_fallthru
      _
    // Predicated region
    $region46: #{tpu_custom_call.1} parent=1 // pred_check
      _
    $region47: #{tpu_custom_call.1} parent=1 // pred_check_branch
      %83 = sbr.rel (0) target = $region49
    $region48: #{tpu_custom_call.1} parent=1 // pred_region
      %84 = dma.done [#allocation6], 64
    $region49: #{tpu_custom_call.1} parent=1 // pred_fallthru
      _
    // Predicated region
    $region50: #{tpu_custom_call.1} parent=1 // pred_check
      _
    $region51: #{tpu_custom_call.1} parent=1 // pred_check_branch
      %86 = sbr.rel (0) target = $region53
    $region52: #{tpu_custom_call.1} parent=1 // pred_region
      %87 = dma.done [#allocation6], 1536
    $region53: #{tpu_custom_call.1} parent=1 // pred_fallthru
      _
    // Predicated region
    $region54: #{tpu_custom_call.1} parent=1 // pred_check
      _
    $region55: #{tpu_custom_call.1} parent=1 // pred_check_branch
      %89 = sbr.rel (0) target = $region57
    $region56: #{tpu_custom_call.1} parent=1 // pred_region
      %90 = dma.done [#allocation9], 1536
    $region57: #{tpu_custom_call.1} parent=1 // pred_fallthru
      _
    %v91 = vld [vmem:[%s0] sm:$0xff]
    %v92 = vld [vmem:[%s0 + $0x8] sm:$0xff]
    %v93 = vlaneseq
    %v94 = vand.u32 %v93, 127
    %95 = vset.pattern.permute.xlu0 0
    %96 = vperm.xlu0 %95, %v91
    %v97 = vpop.permute.xlu0 %96
    %98 = vset.pattern.permute.xlu0 0
    %99 = vperm.xlu0 %98, %v92
    %v100 = vpop.permute.xlu0 %99
    %vm101 = vcmp.eq.s32.totalorder %v97, %v94
    %vm102 = vcmp.eq.s32.totalorder %v100, %v94
    %v103 = vsel %vm101, 1, 0
    %v104 = vsel %vm102, 1, 0
    %v105 = vcvt.s32.f32 %v103
    %v106 = vcvt.s32.f32 %v104
    %v107 = vld [vmem:[%s1] sm:$0xff]
    %v108 = vld [vmem:[%s1 + $0x8] sm:$0xff]
    %v109 = vld [vmem:[%s1 + $0x10] sm:$0xff]
    %v110 = vld [vmem:[%s1 + $0x18] sm:$0xff]
    %v111 = vld [vmem:[%s1 + $0x20] sm:$0xff]
    %v112 = vld [vmem:[%s1 + $0x28] sm:$0xff]
    %v113 = vld [vmem:[%s1 + $0x30] sm:$0xff]
    %v114 = vld [vmem:[%s1 + $0x38] sm:$0xff]
    %vm115 = vcmask 523264
    %v117 = vsel %vm115, %v105, 0
    %v120 = vsel %vm115, %v106, 0
    %122 = vmatprep.subr.mxu0 0.0
    %v123 = vand.u32 %v107, 4294901760
    %124 = vmatpush1.msra.mxu0 %v123
    %125 = vmatprep.subr.mxu0 0.0
    %v126 = vand.u32 %v108, 4294901760
    %127 = vmatpush1.msra.mxu0 %v126
    %128 = vmatprep.subr.mxu0 0.0
    %v129 = vand.u32 %v109, 4294901760
    %130 = vmatpush1.msra.mxu0 %v129
    %131 = vmatprep.subr.mxu0 0.0
    %v132 = vand.u32 %v110, 4294901760
    %133 = vmatpush1.msra.mxu0 %v132
    %134 = vmatprep.subr.mxu0 0.0
    %v135 = vand.u32 %v111, 4294901760
    %136 = vmatpush1.msra.mxu0 %v135
    %137 = vmatprep.subr.mxu0 0.0
    %v138 = vand.u32 %v112, 4294901760
    %139 = vmatpush1.msra.mxu0 %v138
    %140 = vmatprep.subr.mxu0 0.0
    %v141 = vand.u32 %v113, 4294901760
    %142 = vmatpush1.msra.mxu0 %v141
    %143 = vmatprep.subr.mxu0 0.0
    %v144 = vand.u32 %v114, 4294901760
    %145 = vmatpush1.msra.mxu0 %v144
    %146 = vmatprep.subr.mxu0 0.0
    %147 = vmatpush1.msra.mxu0 0.0
    %148 = vmatprep.subr.mxu0 0.0
    %149 = vmatpush1.msra.mxu0 0.0
    %150 = vmatprep.subr.mxu0 0.0
    %151 = vmatpush1.msra.mxu0 0.0
    %152 = vmatprep.subr.mxu0 0.0
    %153 = vmatpush1.msra.mxu0 0.0
    %154 = vmatprep.subr.mxu0 0.0
    %155 = vmatpush1.msra.mxu0 0.0
    %156 = vmatprep.subr.mxu0 0.0
    %157 = vmatpush1.msra.mxu0 0.0
    %158 = vmatprep.subr.mxu0 0.0
    %159 = vmatpush1.msra.mxu0 0.0
    %160 = vmatprep.subr.mxu0 0.0
    %161 = vmatpush1.msra.mxu0 0.0
    %162 = vmatprep.subr.mxu0 0.0
    %163 = vmatpush1.msra.mxu0 0.0
    %164 = vmatprep.subr.mxu0 0.0
    %165 = vmatpush1.msra.mxu0 0.0
    %166 = vmatprep.subr.mxu0 0.0
    %167 = vmatpush1.msra.mxu0 0.0
    %168 = vmatprep.subr.mxu0 0.0
    %169 = vmatpush1.msra.mxu0 0.0
    %170 = vmatprep.subr.mxu0 0.0
    %171 = vmatpush1.msra.mxu0 0.0
    %172 = vmatprep.subr.mxu0 0.0
    %173 = vmatpush1.msra.mxu0 0.0
    %174 = vmatprep.subr.mxu0 0.0
    %175 = vmatpush1.msra.mxu0 0.0
    %176 = vmatprep.subr.mxu0 0.0
    %177 = vmatpush1.msra.mxu0 0.0
    %178 = vmatprep.subr.mxu0 0.0
    %179 = vmatpush1.msra.mxu0 0.0
    %180 = vmatprep.subr.mxu0 0.0
    %181 = vmatpush1.msra.mxu0 0.0
    %182 = vmatprep.subr.mxu0 0.0
    %183 = vmatpush1.msra.mxu0 0.0
    %184 = vmatprep.subr.mxu0 0.0
    %185 = vmatpush1.msra.mxu0 0.0
    %186 = vmatprep.subr.mxu0 0.0
    %187 = vmatpush1.msra.mxu0 0.0
    %188 = vmatprep.subr.mxu0 0.0
    %189 = vmatpush1.msra.mxu0 0.0
    %190 = vmatprep.subr.mxu0 0.0
    %191 = vmatpush1.msra.mxu0 0.0
    %192 = vmatprep.subr.mxu0 0.0
    %193 = vmatpush1.msra.mxu0 0.0
    %194 = vmatprep.mubr.f32.mxu0 0.0
    %v195 = vand.u32 %v117, 4294901760
    %v196 = vsub.f32 %v117, %v195
    %v197 = vand.u32 %v196, 4294901760
    %v198 = vsub.f32 %v196, %v197
    %v199 = vand.u32 %v198, 4294901760
    %200 = vmatmul.mubr.f32.gmra.mrb[0].mxu0 %v199
    %v201 = vpop.f32.mrb[0].mxu0
    %v202 = vadd.f32 0.0, %v201
    %v203 = vpop.f32.mrb[0].mxu0
    %204 = vmatprep.mubr.f32.mxu0 0.0
    %v205 = vand.u32 %v120, 4294901760
    %v206 = vsub.f32 %v120, %v205
    %v207 = vand.u32 %v206, 4294901760
    %v208 = vsub.f32 %v206, %v207
    %v209 = vand.u32 %v208, 4294901760
    %210 = vmatmul.mubr.f32.gmra.mrb[0].mxu0 %v209
    %v211 = vpop.f32.mrb[0].mxu0
    %v212 = vadd.f32 0.0, %v211
    %v213 = vpop.f32.mrb[0].mxu0
    %214 = vdwg.mxu0
    %215 = vmatprep.subr.mxu0 0.0
    %v216 = vand.u32 %v107, 4294901760
    %v217 = vsub.f32 %v107, %v216
    %v218 = vand.u32 %v217, 4294901760
    %v219 = vsub.f32 %v217, %v218
    %v220 = vand.u32 %v219, 4294901760
    %221 = vmatpush1.msra.mxu0 %v220
    %222 = vmatprep.subr.mxu0 0.0
    %v223 = vand.u32 %v108, 4294901760
    %v224 = vsub.f32 %v108, %v223
    %v225 = vand.u32 %v224, 4294901760
    %v226 = vsub.f32 %v224, %v225
    %v227 = vand.u32 %v226, 4294901760
    %228 = vmatpush1.msra.mxu0 %v227
    %229 = vmatprep.subr.mxu0 0.0
    %v230 = vand.u32 %v109, 4294901760
    %v231 = vsub.f32 %v109, %v230
    %v232 = vand.u32 %v231, 4294901760
    %v233 = vsub.f32 %v231, %v232
    %v234 = vand.u32 %v233, 4294901760
    %235 = vmatpush1.msra.mxu0 %v234
    %236 = vmatprep.subr.mxu0 0.0
    %v237 = vand.u32 %v110, 4294901760
    %v238 = vsub.f32 %v110, %v237
    %v239 = vand.u32 %v238, 4294901760
    %v240 = vsub.f32 %v238, %v239
    %v241 = vand.u32 %v240, 4294901760
    %242 = vmatpush1.msra.mxu0 %v241
    %243 = vmatprep.subr.mxu0 0.0
    %v244 = vand.u32 %v111, 4294901760
    %v245 = vsub.f32 %v111, %v244
    %v246 = vand.u32 %v245, 4294901760
    %v247 = vsub.f32 %v245, %v246
    %v248 = vand.u32 %v247, 4294901760
    %249 = vmatpush1.msra.mxu0 %v248
    %250 = vmatprep.subr.mxu0 0.0
    %v251 = vand.u32 %v112, 4294901760
    %v252 = vsub.f32 %v112, %v251
    %v253 = vand.u32 %v252, 4294901760
    %v254 = vsub.f32 %v252, %v253
    %v255 = vand.u32 %v254, 4294901760
    %256 = vmatpush1.msra.mxu0 %v255
    %257 = vmatprep.subr.mxu0 0.0
    %v258 = vand.u32 %v113, 4294901760
    %v259 = vsub.f32 %v113, %v258
    %v260 = vand.u32 %v259, 4294901760
    %v261 = vsub.f32 %v259, %v260
    %v262 = vand.u32 %v261, 4294901760
    %263 = vmatpush1.msra.mxu0 %v262
    %264 = vmatprep.subr.mxu0 0.0
    %v265 = vand.u32 %v114, 4294901760
    %v266 = vsub.f32 %v114, %v265
    %v267 = vand.u32 %v266, 4294901760
    %v268 = vsub.f32 %v266, %v267
    %v269 = vand.u32 %v268, 4294901760
    %270 = vmatpush1.msra.mxu0 %v269
    %271 = vmatprep.subr.mxu0 0.0
    %272 = vmatpush1.msra.mxu0 0.0
    %273 = vmatprep.subr.mxu0 0.0
    %274 = vmatpush1.msra.mxu0 0.0
    %275 = vmatprep.subr.mxu0 0.0
    %276 = vmatpush1.msra.mxu0 0.0
    %277 = vmatprep.subr.mxu0 0.0
    %278 = vmatpush1.msra.mxu0 0.0
    %279 = vmatprep.subr.mxu0 0.0
    %280 = vmatpush1.msra.mxu0 0.0
    %281 = vmatprep.subr.mxu0 0.0
    %282 = vmatpush1.msra.mxu0 0.0
    %283 = vmatprep.subr.mxu0 0.0
    %284 = vmatpush1.msra.mxu0 0.0
    %285 = vmatprep.subr.mxu0 0.0
    %286 = vmatpush1.msra.mxu0 0.0
    %287 = vmatprep.subr.mxu0 0.0
    %288 = vmatpush1.msra.mxu0 0.0
    %289 = vmatprep.subr.mxu0 0.0
    %290 = vmatpush1.msra.mxu0 0.0
    %291 = vmatprep.subr.mxu0 0.0
    %292 = vmatpush1.msra.mxu0 0.0
    %293 = vmatprep.subr.mxu0 0.0
    %294 = vmatpush1.msra.mxu0 0.0
    %295 = vmatprep.subr.mxu0 0.0
    %296 = vmatpush1.msra.mxu0 0.0
    %297 = vmatprep.subr.mxu0 0.0
    %298 = vmatpush1.msra.mxu0 0.0
    %299 = vmatprep.subr.mxu0 0.0
    %300 = vmatpush1.msra.mxu0 0.0
    %301 = vmatprep.subr.mxu0 0.0
    %302 = vmatpush1.msra.mxu0 0.0
    %303 = vmatprep.subr.mxu0 0.0
    %304 = vmatpush1.msra.mxu0 0.0
    %305 = vmatprep.subr.mxu0 0.0
    %306 = vmatpush1.msra.mxu0 0.0
    %307 = vmatprep.subr.mxu0 0.0
    %308 = vmatpush1.msra.mxu0 0.0
    %309 = vmatprep.subr.mxu0 0.0
    %310 = vmatpush1.msra.mxu0 0.0
    %311 = vmatprep.subr.mxu0 0.0
    %312 = vmatpush1.msra.mxu0 0.0
    %313 = vmatprep.subr.mxu0 0.0
    %314 = vmatpush1.msra.mxu0 0.0
    %315 = vmatprep.subr.mxu0 0.0
    %316 = vmatpush1.msra.mxu0 0.0
    %317 = vmatprep.subr.mxu0 0.0
    %318 = vmatpush1.msra.mxu0 0.0
    %319 = vmatprep.mubr.f32.mxu0 0.0
    %v320 = vand.u32 %v117, 4294901760
    %321 = vmatmul.mubr.f32.gmra.mrb[0].mxu0 %v320
    %v322 = vpop.f32.mrb[0].mxu0
    %v323 = vadd.f32 %v202, %v322
    %v324 = vpop.f32.mrb[0].mxu0
    %325 = vmatprep.mubr.f32.mxu0 0.0
    %v326 = vand.u32 %v120, 4294901760
    %327 = vmatmul.mubr.f32.gmra.mrb[0].mxu0 %v326
    %v328 = vpop.f32.mrb[0].mxu0
    %v329 = vadd.f32 %v212, %v328
    %v330 = vpop.f32.mrb[0].mxu0
    %331 = vdwg.mxu0
    %332 = vmatprep.subr.mxu0 0.0
    %v333 = vand.u32 %v107, 4294901760
    %v334 = vsub.f32 %v107, %v333
    %335 = vmatpush1.msra.mxu0 %v334
    %336 = vmatprep.subr.mxu0 0.0
    %v337 = vand.u32 %v108, 4294901760
    %v338 = vsub.f32 %v108, %v337
    %339 = vmatpush1.msra.mxu0 %v338
    %340 = vmatprep.subr.mxu0 0.0
    %v341 = vand.u32 %v109, 4294901760
    %v342 = vsub.f32 %v109, %v341
    %343 = vmatpush1.msra.mxu0 %v342
    %344 = vmatprep.subr.mxu0 0.0
    %v345 = vand.u32 %v110, 4294901760
    %v346 = vsub.f32 %v110, %v345
    %347 = vmatpush1.msra.mxu0 %v346
    %348 = vmatprep.subr.mxu0 0.0
    %v349 = vand.u32 %v111, 4294901760
    %v350 = vsub.f32 %v111, %v349
    %351 = vmatpush1.msra.mxu0 %v350
    %352 = vmatprep.subr.mxu0 0.0
    %v353 = vand.u32 %v112, 4294901760
    %v354 = vsub.f32 %v112, %v353
    %355 = vmatpush1.msra.mxu0 %v354
    %356 = vmatprep.subr.mxu0 0.0
    %v357 = vand.u32 %v113, 4294901760
    %v358 = vsub.f32 %v113, %v357
    %359 = vmatpush1.msra.mxu0 %v358
    %360 = vmatprep.subr.mxu0 0.0
    %v361 = vand.u32 %v114, 4294901760
    %v362 = vsub.f32 %v114, %v361
    %363 = vmatpush1.msra.mxu0 %v362
    %364 = vmatprep.subr.mxu0 0.0
    %365 = vmatpush1.msra.mxu0 0.0
    %366 = vmatprep.subr.mxu0 0.0
    %367 = vmatpush1.msra.mxu0 0.0
    %368 = vmatprep.subr.mxu0 0.0
    %369 = vmatpush1.msra.mxu0 0.0
    %370 = vmatprep.subr.mxu0 0.0
    %371 = vmatpush1.msra.mxu0 0.0
    %372 = vmatprep.subr.mxu0 0.0
    %373 = vmatpush1.msra.mxu0 0.0
    %374 = vmatprep.subr.mxu0 0.0
    %375 = vmatpush1.msra.mxu0 0.0
    %376 = vmatprep.subr.mxu0 0.0
    %377 = vmatpush1.msra.mxu0 0.0
    %378 = vmatprep.subr.mxu0 0.0
    %379 = vmatpush1.msra.mxu0 0.0
    %380 = vmatprep.subr.mxu0 0.0
    %381 = vmatpush1.msra.mxu0 0.0
    %382 = vmatprep.subr.mxu0 0.0
    %383 = vmatpush1.msra.mxu0 0.0
    %384 = vmatprep.subr.mxu0 0.0
    %385 = vmatpush1.msra.mxu0 0.0
    %386 = vmatprep.subr.mxu0 0.0
    %387 = vmatpush1.msra.mxu0 0.0
    %388 = vmatprep.subr.mxu0 0.0
    %389 = vmatpush1.msra.mxu0 0.0
    %390 = vmatprep.subr.mxu0 0.0
    %391 = vmatpush1.msra.mxu0 0.0
    %392 = vmatprep.subr.mxu0 0.0
    %393 = vmatpush1.msra.mxu0 0.0
    %394 = vmatprep.subr.mxu0 0.0
    %395 = vmatpush1.msra.mxu0 0.0
    %396 = vmatprep.subr.mxu0 0.0
    %397 = vmatpush1.msra.mxu0 0.0
    %398 = vmatprep.subr.mxu0 0.0
    %399 = vmatpush1.msra.mxu0 0.0
    %400 = vmatprep.subr.mxu0 0.0
    %401 = vmatpush1.msra.mxu0 0.0
    %402 = vmatprep.subr.mxu0 0.0
    %403 = vmatpush1.msra.mxu0 0.0
    %404 = vmatprep.subr.mxu0 0.0
    %405 = vmatpush1.msra.mxu0 0.0
    %406 = vmatprep.subr.mxu0 0.0
    %407 = vmatpush1.msra.mxu0 0.0
    %408 = vmatprep.subr.mxu0 0.0
    %409 = vmatpush1.msra.mxu0 0.0
    %410 = vmatprep.subr.mxu0 0.0
    %411 = vmatpush1.msra.mxu0 0.0
    %412 = vmatprep.mubr.f32.mxu0 0.0
    %v413 = vand.u32 %v117, 4294901760
    %v414 = vsub.f32 %v117, %v413
    %415 = vmatmul.mubr.f32.gmra.mrb[0].mxu0 %v414
    %v416 = vpop.f32.mrb[0].mxu0
    %v417 = vadd.f32 %v323, %v416
    %v418 = vpop.f32.mrb[0].mxu0
    %419 = vmatprep.mubr.f32.mxu0 0.0
    %v420 = vand.u32 %v120, 4294901760
    %v421 = vsub.f32 %v120, %v420
    %422 = vmatmul.mubr.f32.gmra.mrb[0].mxu0 %v421
    %v423 = vpop.f32.mrb[0].mxu0
    %v424 = vadd.f32 %v329, %v423
    %v425 = vpop.f32.mrb[0].mxu0
    %426 = vdwg.mxu0
    %427 = vmatprep.subr.mxu0 0.0
    %v428 = vand.u32 %v107, 4294901760
    %429 = vmatpush1.msra.mxu0 %v428
    %430 = vmatprep.subr.mxu0 0.0
    %v431 = vand.u32 %v108, 4294901760
    %432 = vmatpush1.msra.mxu0 %v431
    %433 = vmatprep.subr.mxu0 0.0
    %v434 = vand.u32 %v109, 4294901760
    %435 = vmatpush1.msra.mxu0 %v434
    %436 = vmatprep.subr.mxu0 0.0
    %v437 = vand.u32 %v110, 4294901760
    %438 = vmatpush1.msra.mxu0 %v437
    %439 = vmatprep.subr.mxu0 0.0
    %v440 = vand.u32 %v111, 4294901760
    %441 = vmatpush1.msra.mxu0 %v440
    %442 = vmatprep.subr.mxu0 0.0
    %v443 = vand.u32 %v112, 4294901760
    %444 = vmatpush1.msra.mxu0 %v443
    %445 = vmatprep.subr.mxu0 0.0
    %v446 = vand.u32 %v113, 4294901760
    %447 = vmatpush1.msra.mxu0 %v446
    %448 = vmatprep.subr.mxu0 0.0
    %v449 = vand.u32 %v114, 4294901760
    %450 = vmatpush1.msra.mxu0 %v449
    %451 = vmatprep.subr.mxu0 0.0
    %452 = vmatpush1.msra.mxu0 0.0
    %453 = vmatprep.subr.mxu0 0.0
    %454 = vmatpush1.msra.mxu0 0.0
    %455 = vmatprep.subr.mxu0 0.0
    %456 = vmatpush1.msra.mxu0 0.0
    %457 = vmatprep.subr.mxu0 0.0
    %458 = vmatpush1.msra.mxu0 0.0
    %459 = vmatprep.subr.mxu0 0.0
    %460 = vmatpush1.msra.mxu0 0.0
    %461 = vmatprep.subr.mxu0 0.0
    %462 = vmatpush1.msra.mxu0 0.0
    %463 = vmatprep.subr.mxu0 0.0
    %464 = vmatpush1.msra.mxu0 0.0
    %465 = vmatprep.subr.mxu0 0.0
    %466 = vmatpush1.msra.mxu0 0.0
    %467 = vmatprep.subr.mxu0 0.0
    %468 = vmatpush1.msra.mxu0 0.0
    %469 = vmatprep.subr.mxu0 0.0
    %470 = vmatpush1.msra.mxu0 0.0
    %471 = vmatprep.subr.mxu0 0.0
    %472 = vmatpush1.msra.mxu0 0.0
    %473 = vmatprep.subr.mxu0 0.0
    %474 = vmatpush1.msra.mxu0 0.0
    %475 = vmatprep.subr.mxu0 0.0
    %476 = vmatpush1.msra.mxu0 0.0
    %477 = vmatprep.subr.mxu0 0.0
    %478 = vmatpush1.msra.mxu0 0.0
    %479 = vmatprep.subr.mxu0 0.0
    %480 = vmatpush1.msra.mxu0 0.0
    %481 = vmatprep.subr.mxu0 0.0
    %482 = vmatpush1.msra.mxu0 0.0
    %483 = vmatprep.subr.mxu0 0.0
    %484 = vmatpush1.msra.mxu0 0.0
    %485 = vmatprep.subr.mxu0 0.0
    %486 = vmatpush1.msra.mxu0 0.0
    %487 = vmatprep.subr.mxu0 0.0
    %488 = vmatpush1.msra.mxu0 0.0
    %489 = vmatprep.subr.mxu0 0.0
    %490 = vmatpush1.msra.mxu0 0.0
    %491 = vmatprep.subr.mxu0 0.0
    %492 = vmatpush1.msra.mxu0 0.0
    %493 = vmatprep.subr.mxu0 0.0
    %494 = vmatpush1.msra.mxu0 0.0
    %495 = vmatprep.subr.mxu0 0.0
    %496 = vmatpush1.msra.mxu0 0.0
    %497 = vmatprep.subr.mxu0 0.0
    %498 = vmatpush1.msra.mxu0 0.0
    %499 = vmatprep.mubr.f32.mxu0 0.0
    %v500 = vand.u32 %v117, 4294901760
    %v501 = vsub.f32 %v117, %v500
    %v502 = vand.u32 %v501, 4294901760
    %503 = vmatmul.mubr.f32.gmra.mrb[0].mxu0 %v502
    %v504 = vpop.f32.mrb[0].mxu0
    %v505 = vadd.f32 %v417, %v504
    %v506 = vpop.f32.mrb[0].mxu0
    %507 = vmatprep.mubr.f32.mxu0 0.0
    %v508 = vand.u32 %v120, 4294901760
    %v509 = vsub.f32 %v120, %v508
    %v510 = vand.u32 %v509, 4294901760
    %511 = vmatmul.mubr.f32.gmra.mrb[0].mxu0 %v510
    %v512 = vpop.f32.mrb[0].mxu0
    %v513 = vadd.f32 %v424, %v512
    %v514 = vpop.f32.mrb[0].mxu0
    %515 = vdwg.mxu0
    %516 = vmatprep.subr.mxu0 0.0
    %v517 = vand.u32 %v107, 4294901760
    %v518 = vsub.f32 %v107, %v517
    %v519 = vand.u32 %v518, 4294901760
    %520 = vmatpush1.msra.mxu0 %v519
    %521 = vmatprep.subr.mxu0 0.0
    %v522 = vand.u32 %v108, 4294901760
    %v523 = vsub.f32 %v108, %v522
    %v524 = vand.u32 %v523, 4294901760
    %525 = vmatpush1.msra.mxu0 %v524
    %526 = vmatprep.subr.mxu0 0.0
    %v527 = vand.u32 %v109, 4294901760
    %v528 = vsub.f32 %v109, %v527
    %v529 = vand.u32 %v528, 4294901760
    %530 = vmatpush1.msra.mxu0 %v529
    %531 = vmatprep.subr.mxu0 0.0
    %v532 = vand.u32 %v110, 4294901760
    %v533 = vsub.f32 %v110, %v532
    %v534 = vand.u32 %v533, 4294901760
    %535 = vmatpush1.msra.mxu0 %v534
    %536 = vmatprep.subr.mxu0 0.0
    %v537 = vand.u32 %v111, 4294901760
    %v538 = vsub.f32 %v111, %v537
    %v539 = vand.u32 %v538, 4294901760
    %540 = vmatpush1.msra.mxu0 %v539
    %541 = vmatprep.subr.mxu0 0.0
    %v542 = vand.u32 %v112, 4294901760
    %v543 = vsub.f32 %v112, %v542
    %v544 = vand.u32 %v543, 4294901760
    %545 = vmatpush1.msra.mxu0 %v544
    %546 = vmatprep.subr.mxu0 0.0
    %v547 = vand.u32 %v113, 4294901760
    %v548 = vsub.f32 %v113, %v547
    %v549 = vand.u32 %v548, 4294901760
    %550 = vmatpush1.msra.mxu0 %v549
    %551 = vmatprep.subr.mxu0 0.0
    %v552 = vand.u32 %v114, 4294901760
    %v553 = vsub.f32 %v114, %v552
    %v554 = vand.u32 %v553, 4294901760
    %555 = vmatpush1.msra.mxu0 %v554
    %556 = vmatprep.subr.mxu0 0.0
    %557 = vmatpush1.msra.mxu0 0.0
    %558 = vmatprep.subr.mxu0 0.0
    %559 = vmatpush1.msra.mxu0 0.0
    %560 = vmatprep.subr.mxu0 0.0
    %561 = vmatpush1.msra.mxu0 0.0
    %562 = vmatprep.subr.mxu0 0.0
    %563 = vmatpush1.msra.mxu0 0.0
    %564 = vmatprep.subr.mxu0 0.0
    %565 = vmatpush1.msra.mxu0 0.0
    %566 = vmatprep.subr.mxu0 0.0
    %567 = vmatpush1.msra.mxu0 0.0
    %568 = vmatprep.subr.mxu0 0.0
    %569 = vmatpush1.msra.mxu0 0.0
    %570 = vmatprep.subr.mxu0 0.0
    %571 = vmatpush1.msra.mxu0 0.0
    %572 = vmatprep.subr.mxu0 0.0
    %573 = vmatpush1.msra.mxu0 0.0
    %574 = vmatprep.subr.mxu0 0.0
    %575 = vmatpush1.msra.mxu0 0.0
    %576 = vmatprep.subr.mxu0 0.0
    %577 = vmatpush1.msra.mxu0 0.0
    %578 = vmatprep.subr.mxu0 0.0
    %579 = vmatpush1.msra.mxu0 0.0
    %580 = vmatprep.subr.mxu0 0.0
    %581 = vmatpush1.msra.mxu0 0.0
    %582 = vmatprep.subr.mxu0 0.0
    %583 = vmatpush1.msra.mxu0 0.0
    %584 = vmatprep.subr.mxu0 0.0
    %585 = vmatpush1.msra.mxu0 0.0
    %586 = vmatprep.subr.mxu0 0.0
    %587 = vmatpush1.msra.mxu0 0.0
    %588 = vmatprep.subr.mxu0 0.0
    %589 = vmatpush1.msra.mxu0 0.0
    %590 = vmatprep.subr.mxu0 0.0
    %591 = vmatpush1.msra.mxu0 0.0
    %592 = vmatprep.subr.mxu0 0.0
    %593 = vmatpush1.msra.mxu0 0.0
    %594 = vmatprep.subr.mxu0 0.0
    %595 = vmatpush1.msra.mxu0 0.0
    %596 = vmatprep.subr.mxu0 0.0
    %597 = vmatpush1.msra.mxu0 0.0
    %598 = vmatprep.subr.mxu0 0.0
    %599 = vmatpush1.msra.mxu0 0.0
    %600 = vmatprep.subr.mxu0 0.0
    %601 = vmatpush1.msra.mxu0 0.0
    %602 = vmatprep.subr.mxu0 0.0
    %603 = vmatpush1.msra.mxu0 0.0
    %604 = vmatprep.mubr.f32.mxu0 0.0
    %v605 = vand.u32 %v117, 4294901760
    %606 = vmatmul.mubr.f32.gmra.mrb[0].mxu0 %v605
    %v607 = vpop.f32.mrb[0].mxu0
    %v608 = vadd.f32 %v505, %v607
    %v609 = vpop.f32.mrb[0].mxu0
    %610 = vmatprep.mubr.f32.mxu0 0.0
    %v611 = vand.u32 %v120, 4294901760
    %612 = vmatmul.mubr.f32.gmra.mrb[0].mxu0 %v611
    %v613 = vpop.f32.mrb[0].mxu0
    %v614 = vadd.f32 %v513, %v613
    %v615 = vpop.f32.mrb[0].mxu0
    %616 = vdwg.mxu0
    %617 = vmatprep.subr.mxu0 0.0
    %v618 = vand.u32 %v107, 4294901760
    %619 = vmatpush1.msra.mxu0 %v618
    %620 = vmatprep.subr.mxu0 0.0
    %v621 = vand.u32 %v108, 4294901760
    %622 = vmatpush1.msra.mxu0 %v621
    %623 = vmatprep.subr.mxu0 0.0
    %v624 = vand.u32 %v109, 4294901760
    %625 = vmatpush1.msra.mxu0 %v624
    %626 = vmatprep.subr.mxu0 0.0
    %v627 = vand.u32 %v110, 4294901760
    %628 = vmatpush1.msra.mxu0 %v627
    %629 = vmatprep.subr.mxu0 0.0
    %v630 = vand.u32 %v111, 4294901760
    %631 = vmatpush1.msra.mxu0 %v630
    %632 = vmatprep.subr.mxu0 0.0
    %v633 = vand.u32 %v112, 4294901760
    %634 = vmatpush1.msra.mxu0 %v633
    %635 = vmatprep.subr.mxu0 0.0
    %v636 = vand.u32 %v113, 4294901760
    %637 = vmatpush1.msra.mxu0 %v636
    %638 = vmatprep.subr.mxu0 0.0
    %v639 = vand.u32 %v114, 4294901760
    %640 = vmatpush1.msra.mxu0 %v639
    %641 = vmatprep.subr.mxu0 0.0
    %642 = vmatpush1.msra.mxu0 0.0
    %643 = vmatprep.subr.mxu0 0.0
    %644 = vmatpush1.msra.mxu0 0.0
    %645 = vmatprep.subr.mxu0 0.0
    %646 = vmatpush1.msra.mxu0 0.0
    %647 = vmatprep.subr.mxu0 0.0
    %648 = vmatpush1.msra.mxu0 0.0
    %649 = vmatprep.subr.mxu0 0.0
    %650 = vmatpush1.msra.mxu0 0.0
    %651 = vmatprep.subr.mxu0 0.0
    %652 = vmatpush1.msra.mxu0 0.0
    %653 = vmatprep.subr.mxu0 0.0
    %654 = vmatpush1.msra.mxu0 0.0
    %655 = vmatprep.subr.mxu0 0.0
    %656 = vmatpush1.msra.mxu0 0.0
    %657 = vmatprep.subr.mxu0 0.0
    %658 = vmatpush1.msra.mxu0 0.0
    %659 = vmatprep.subr.mxu0 0.0
    %660 = vmatpush1.msra.mxu0 0.0
    %661 = vmatprep.subr.mxu0 0.0
    %662 = vmatpush1.msra.mxu0 0.0
    %663 = vmatprep.subr.mxu0 0.0
    %664 = vmatpush1.msra.mxu0 0.0
    %665 = vmatprep.subr.mxu0 0.0
    %666 = vmatpush1.msra.mxu0 0.0
    %667 = vmatprep.subr.mxu0 0.0
    %668 = vmatpush1.msra.mxu0 0.0
    %669 = vmatprep.subr.mxu0 0.0
    %670 = vmatpush1.msra.mxu0 0.0
    %671 = vmatprep.subr.mxu0 0.0
    %672 = vmatpush1.msra.mxu0 0.0
    %673 = vmatprep.subr.mxu0 0.0
    %674 = vmatpush1.msra.mxu0 0.0
    %675 = vmatprep.subr.mxu0 0.0
    %676 = vmatpush1.msra.mxu0 0.0
    %677 = vmatprep.subr.mxu0 0.0
    %678 = vmatpush1.msra.mxu0 0.0
    %679 = vmatprep.subr.mxu0 0.0
    %680 = vmatpush1.msra.mxu0 0.0
    %681 = vmatprep.subr.mxu0 0.0
    %682 = vmatpush1.msra.mxu0 0.0
    %683 = vmatprep.subr.mxu0 0.0
    %684 = vmatpush1.msra.mxu0 0.0
    %685 = vmatprep.subr.mxu0 0.0
    %686 = vmatpush1.msra.mxu0 0.0
    %687 = vmatprep.subr.mxu0 0.0
    %688 = vmatpush1.msra.mxu0 0.0
    %689 = vmatprep.mubr.f32.mxu0 0.0
    %v690 = vand.u32 %v117, 4294901760
    %691 = vmatmul.mubr.f32.gmra.mrb[0].mxu0 %v690
    %v692 = vpop.f32.mrb[0].mxu0
    %v693 = vadd.f32 %v608, %v692
    %v694 = vpop.f32.mrb[0].mxu0
    %695 = vmatprep.mubr.f32.mxu0 0.0
    %v696 = vand.u32 %v120, 4294901760
    %697 = vmatmul.mubr.f32.gmra.mrb[0].mxu0 %v696
    %v698 = vpop.f32.mrb[0].mxu0
    %v699 = vadd.f32 %v614, %v698
    %v700 = vpop.f32.mrb[0].mxu0
    %701 = vdwg.mxu0
    %v702 = vld [vmem:[%s2] sm:$0xff]
    %v703 = vld [vmem:[%s2 + $0x8] sm:$0xff]
    %v704 = vld [vmem:[%s2 + $0x10] sm:$0xff]
    %v705 = vld [vmem:[%s2 + $0x18] sm:$0xff]
    %v706 = vld [vmem:[#allocation5] sm:$0x1]
    %v708 = vlaneseq
    %v709 = vshrl.u32 %v708, 7
    %v710 = vsub.s32 0, %v709
    %v711 = vrot.slane %v706, %v710
    %vm713 = vcmask 261120
    %v715 = vsel %vm713, %v693, 0
    %v718 = vsel %vm713, %v699, 0
    %720 = vmatprep.subr.mxu0 0.0
    %721 = vmatpush1.msra.mxu0 %v702
    %722 = vmatprep.subr.mxu0 0.0
    %723 = vmatpush1.msra.mxu0 %v703
    %724 = vmatprep.subr.mxu0 0.0
    %725 = vmatpush1.msra.mxu0 %v704
    %726 = vmatprep.subr.mxu0 0.0
    %727 = vmatpush1.msra.mxu0 %v705
    %728 = vmatprep.subr.mxu0 0.0
    %729 = vmatpush1.msra.mxu0 0.0
    %730 = vmatprep.subr.mxu0 0.0
    %731 = vmatpush1.msra.mxu0 0.0
    %732 = vmatprep.subr.mxu0 0.0
    %733 = vmatpush1.msra.mxu0 0.0
    %734 = vmatprep.subr.mxu0 0.0
    %735 = vmatpush1.msra.mxu0 0.0
    %736 = vmatprep.subr.mxu0 0.0
    %737 = vmatpush1.msra.mxu0 0.0
    %738 = vmatprep.subr.mxu0 0.0
    %739 = vmatpush1.msra.mxu0 0.0
    %740 = vmatprep.subr.mxu0 0.0
    %741 = vmatpush1.msra.mxu0 0.0
    %742 = vmatprep.subr.mxu0 0.0
    %743 = vmatpush1.msra.mxu0 0.0
    %744 = vmatprep.subr.mxu0 0.0
    %745 = vmatpush1.msra.mxu0 0.0
    %746 = vmatprep.subr.mxu0 0.0
    %747 = vmatpush1.msra.mxu0 0.0
    %748 = vmatprep.subr.mxu0 0.0
    %749 = vmatpush1.msra.mxu0 0.0
    %750 = vmatprep.subr.mxu0 0.0
    %751 = vmatpush1.msra.mxu0 0.0
    %752 = vmatprep.subr.mxu0 0.0
    %753 = vmatpush1.msra.mxu0 0.0
    %754 = vmatprep.subr.mxu0 0.0
    %755 = vmatpush1.msra.mxu0 0.0
    %756 = vmatprep.subr.mxu0 0.0
    %757 = vmatpush1.msra.mxu0 0.0
    %758 = vmatprep.subr.mxu0 0.0
    %759 = vmatpush1.msra.mxu0 0.0
    %760 = vmatprep.subr.mxu0 0.0
    %761 = vmatpush1.msra.mxu0 0.0
    %762 = vmatprep.subr.mxu0 0.0
    %763 = vmatpush1.msra.mxu0 0.0
    %764 = vmatprep.subr.mxu0 0.0
    %765 = vmatpush1.msra.mxu0 0.0
    %766 = vmatprep.subr.mxu0 0.0
    %767 = vmatpush1.msra.mxu0 0.0
    %768 = vmatprep.subr.mxu0 0.0
    %769 = vmatpush1.msra.mxu0 0.0
    %770 = vmatprep.subr.mxu0 0.0
    %771 = vmatpush1.msra.mxu0 0.0
    %772 = vmatprep.subr.mxu0 0.0
    %773 = vmatpush1.msra.mxu0 0.0
    %774 = vmatprep.subr.mxu0 0.0
    %775 = vmatpush1.msra.mxu0 0.0
    %776 = vmatprep.subr.mxu0 0.0
    %777 = vmatpush1.msra.mxu0 0.0
    %778 = vmatprep.subr.mxu0 0.0
    %779 = vmatpush1.msra.mxu0 0.0
    %780 = vmatprep.subr.mxu0 0.0
    %781 = vmatpush1.msra.mxu0 0.0
    %782 = vmatprep.subr.mxu0 0.0
    %783 = vmatpush1.msra.mxu0 0.0
    %784 = vmatprep.mubr.f32.mxu0 0.0
    %785 = vmatmul.mubr.f32.gmra.mrb[0].mxu0 %v715
    %v786 = vpop.f32.mrb[0].mxu0
    %v787 = vadd.f32 %v711, %v786
    %v788 = vpop.f32.mrb[0].mxu0
    %789 = vmatprep.mubr.f32.mxu0 0.0
    %790 = vmatmul.mubr.f32.gmra.mrb[0].mxu0 %v718
    %v791 = vpop.f32.mrb[0].mxu0
    %v792 = vadd.f32 %v711, %v791
    %v793 = vpop.f32.mrb[0].mxu0
    %794 = vdwg.mxu0
    %s795 = scalar_lea.vmem %s2, 32
    %v796 = vld [vmem:[%s795] sm:$0xff]
    %v797 = vld [vmem:[%s795 + $0x8] sm:$0xff]
    %v798 = vld [vmem:[%s795 + $0x10] sm:$0xff]
    %v799 = vld [vmem:[%s795 + $0x18] sm:$0xff]
    %s800 = scalar_lea.vmem [#allocation5], 1
    %v801 = vld [vmem:[%s800] sm:$0x1]
    %v803 = vlaneseq
    %v804 = vshrl.u32 %v803, 7
    %v805 = vsub.s32 0, %v804
    %v806 = vrot.slane %v801, %v805
    %808 = vmatprep.subr.mxu0 0.0
    %809 = vmatpush1.msra.mxu0 %v796
    %810 = vmatprep.subr.mxu0 0.0
    %811 = vmatpush1.msra.mxu0 %v797
    %812 = vmatprep.subr.mxu0 0.0
    %813 = vmatpush1.msra.mxu0 %v798
    %814 = vmatprep.subr.mxu0 0.0
    %815 = vmatpush1.msra.mxu0 %v799
    %816 = vmatprep.subr.mxu0 0.0
    %817 = vmatpush1.msra.mxu0 0.0
    %818 = vmatprep.subr.mxu0 0.0
    %819 = vmatpush1.msra.mxu0 0.0
    %820 = vmatprep.subr.mxu0 0.0
    %821 = vmatpush1.msra.mxu0 0.0
    %822 = vmatprep.subr.mxu0 0.0
    %823 = vmatpush1.msra.mxu0 0.0
    %824 = vmatprep.subr.mxu0 0.0
    %825 = vmatpush1.msra.mxu0 0.0
    %826 = vmatprep.subr.mxu0 0.0
    %827 = vmatpush1.msra.mxu0 0.0
    %828 = vmatprep.subr.mxu0 0.0
    %829 = vmatpush1.msra.mxu0 0.0
    %830 = vmatprep.subr.mxu0 0.0
    %831 = vmatpush1.msra.mxu0 0.0
    %832 = vmatprep.subr.mxu0 0.0
    %833 = vmatpush1.msra.mxu0 0.0
    %834 = vmatprep.subr.mxu0 0.0
    %835 = vmatpush1.msra.mxu0 0.0
    %836 = vmatprep.subr.mxu0 0.0
    %837 = vmatpush1.msra.mxu0 0.0
    %838 = vmatprep.subr.mxu0 0.0
    %839 = vmatpush1.msra.mxu0 0.0
    %840 = vmatprep.subr.mxu0 0.0
    %841 = vmatpush1.msra.mxu0 0.0
    %842 = vmatprep.subr.mxu0 0.0
    %843 = vmatpush1.msra.mxu0 0.0
    %844 = vmatprep.subr.mxu0 0.0
    %845 = vmatpush1.msra.mxu0 0.0
    %846 = vmatprep.subr.mxu0 0.0
    %847 = vmatpush1.msra.mxu0 0.0
    %848 = vmatprep.subr.mxu0 0.0
    %849 = vmatpush1.msra.mxu0 0.0
    %850 = vmatprep.subr.mxu0 0.0
    %851 = vmatpush1.msra.mxu0 0.0
    %852 = vmatprep.subr.mxu0 0.0
    %853 = vmatpush1.msra.mxu0 0.0
    %854 = vmatprep.subr.mxu0 0.0
    %855 = vmatpush1.msra.mxu0 0.0
    %856 = vmatprep.subr.mxu0 0.0
    %857 = vmatpush1.msra.mxu0 0.0
    %858 = vmatprep.subr.mxu0 0.0
    %859 = vmatpush1.msra.mxu0 0.0
    %860 = vmatprep.subr.mxu0 0.0
    %861 = vmatpush1.msra.mxu0 0.0
    %862 = vmatprep.subr.mxu0 0.0
    %863 = vmatpush1.msra.mxu0 0.0
    %864 = vmatprep.subr.mxu0 0.0
    %865 = vmatpush1.msra.mxu0 0.0
    %866 = vmatprep.subr.mxu0 0.0
    %867 = vmatpush1.msra.mxu0 0.0
    %868 = vmatprep.subr.mxu0 0.0
    %869 = vmatpush1.msra.mxu0 0.0
    %870 = vmatprep.subr.mxu0 0.0
    %871 = vmatpush1.msra.mxu0 0.0
    %872 = vmatprep.mubr.f32.mxu0 0.0
    %873 = vmatmul.mubr.f32.gmra.mrb[0].mxu0 %v715
    %v874 = vpop.f32.mrb[0].mxu0
    %v875 = vadd.f32 %v806, %v874
    %v876 = vpop.f32.mrb[0].mxu0
    %877 = vmatprep.mubr.f32.mxu0 0.0
    %878 = vmatmul.mubr.f32.gmra.mrb[0].mxu0 %v718
    %v879 = vpop.f32.mrb[0].mxu0
    %v880 = vadd.f32 %v806, %v879
    %v881 = vpop.f32.mrb[0].mxu0
    %882 = vdwg.mxu0
    %s883 = scalar_lea.vmem %s2, 64
    %v884 = vld [vmem:[%s883] sm:$0xff]
    %v885 = vld [vmem:[%s883 + $0x8] sm:$0xff]
    %v886 = vld [vmem:[%s883 + $0x10] sm:$0xff]
    %v887 = vld [vmem:[%s883 + $0x18] sm:$0xff]
    %s888 = scalar_lea.vmem [#allocation5], 2
    %v889 = vld [vmem:[%s888] sm:$0x1]
    %v891 = vlaneseq
    %v892 = vshrl.u32 %v891, 7
    %v893 = vsub.s32 0, %v892
    %v894 = vrot.slane %v889, %v893
    %896 = vmatprep.subr.mxu0 0.0
    %897 = vmatpush1.msra.mxu0 %v884
    %898 = vmatprep.subr.mxu0 0.0
    %899 = vmatpush1.msra.mxu0 %v885
    %900 = vmatprep.subr.mxu0 0.0
    %901 = vmatpush1.msra.mxu0 %v886
    %902 = vmatprep.subr.mxu0 0.0
    %903 = vmatpush1.msra.mxu0 %v887
    %904 = vmatprep.subr.mxu0 0.0
    %905 = vmatpush1.msra.mxu0 0.0
    %906 = vmatprep.subr.mxu0 0.0
    %907 = vmatpush1.msra.mxu0 0.0
    %908 = vmatprep.subr.mxu0 0.0
    %909 = vmatpush1.msra.mxu0 0.0
    %910 = vmatprep.subr.mxu0 0.0
    %911 = vmatpush1.msra.mxu0 0.0
    %912 = vmatprep.subr.mxu0 0.0
    %913 = vmatpush1.msra.mxu0 0.0
    %914 = vmatprep.subr.mxu0 0.0
    %915 = vmatpush1.msra.mxu0 0.0
    %916 = vmatprep.subr.mxu0 0.0
    %917 = vmatpush1.msra.mxu0 0.0
    %918 = vmatprep.subr.mxu0 0.0
    %919 = vmatpush1.msra.mxu0 0.0
    %920 = vmatprep.subr.mxu0 0.0
    %921 = vmatpush1.msra.mxu0 0.0
    %922 = vmatprep.subr.mxu0 0.0
    %923 = vmatpush1.msra.mxu0 0.0
    %924 = vmatprep.subr.mxu0 0.0
    %925 = vmatpush1.msra.mxu0 0.0
    %926 = vmatprep.subr.mxu0 0.0
    %927 = vmatpush1.msra.mxu0 0.0
    %928 = vmatprep.subr.mxu0 0.0
    %929 = vmatpush1.msra.mxu0 0.0
    %930 = vmatprep.subr.mxu0 0.0
    %931 = vmatpush1.msra.mxu0 0.0
    %932 = vmatprep.subr.mxu0 0.0
    %933 = vmatpush1.msra.mxu0 0.0
    %934 = vmatprep.subr.mxu0 0.0
    %935 = vmatpush1.msra.mxu0 0.0
    %936 = vmatprep.subr.mxu0 0.0
    %937 = vmatpush1.msra.mxu0 0.0
    %938 = vmatprep.subr.mxu0 0.0
    %939 = vmatpush1.msra.mxu0 0.0
    %940 = vmatprep.subr.mxu0 0.0
    %941 = vmatpush1.msra.mxu0 0.0
    %942 = vmatprep.subr.mxu0 0.0
    %943 = vmatpush1.msra.mxu0 0.0
    %944 = vmatprep.subr.mxu0 0.0
    %945 = vmatpush1.msra.mxu0 0.0
    %946 = vmatprep.subr.mxu0 0.0
    %947 = vmatpush1.msra.mxu0 0.0
    %948 = vmatprep.subr.mxu0 0.0
    %949 = vmatpush1.msra.mxu0 0.0
    %950 = vmatprep.subr.mxu0 0.0
    %951 = vmatpush1.msra.mxu0 0.0
    %952 = vmatprep.subr.mxu0 0.0
    %953 = vmatpush1.msra.mxu0 0.0
    %954 = vmatprep.subr.mxu0 0.0
    %955 = vmatpush1.msra.mxu0 0.0
    %956 = vmatprep.subr.mxu0 0.0
    %957 = vmatpush1.msra.mxu0 0.0
    %958 = vmatprep.subr.mxu0 0.0
    %959 = vmatpush1.msra.mxu0 0.0
    %960 = vmatprep.mubr.f32.mxu0 0.0
    %961 = vmatmul.mubr.f32.gmra.mrb[0].mxu0 %v715
    %v962 = vpop.f32.mrb[0].mxu0
    %v963 = vadd.f32 %v894, %v962
    %v964 = vpop.f32.mrb[0].mxu0
    %965 = vmatprep.mubr.f32.mxu0 0.0
    %966 = vmatmul.mubr.f32.gmra.mrb[0].mxu0 %v718
    %v967 = vpop.f32.mrb[0].mxu0
    %v968 = vadd.f32 %v894, %v967
    %v969 = vpop.f32.mrb[0].mxu0
    %970 = vdwg.mxu0
    %v971 = vld [vmem:[#allocation2] sm:$0xff]
    %v972 = vld [vmem:[#allocation2 + $0x8] sm:$0xff]
    %v973 = vld [vmem:[#allocation2 + $0x10] sm:$0xff]
    %v974 = vld [vmem:[#allocation2 + $0x18] sm:$0xff]
    %s975 = scalar_lea.vmem [#allocation2], 32
    %v976 = vld [vmem:[%s975] sm:$0xff]
    %v977 = vld [vmem:[%s975 + $0x8] sm:$0xff]
    %v978 = vld [vmem:[%s975 + $0x10] sm:$0xff]
    %v979 = vld [vmem:[%s975 + $0x18] sm:$0xff]
    %s980 = scalar_lea.vmem [#allocation2], 64
    %v981 = vld [vmem:[%s980] sm:$0xff]
    %v982 = vld [vmem:[%s980 + $0x8] sm:$0xff]
    %v983 = vld [vmem:[%s980 + $0x10] sm:$0xff]
    %v984 = vld [vmem:[%s980 + $0x18] sm:$0xff]
    %s985 = scalar_lea.vmem [#allocation5], 3
    %v986 = vld [vmem:[%s985] sm:$0x1]
    %v988 = vsel %vm713, 0.0, 0
    %990 = vmatprep.subr.mxu0 0.0
    %991 = vmatpush1.msra.mxu0 %v971
    %992 = vmatprep.subr.mxu0 0.0
    %993 = vmatpush1.msra.mxu0 %v972
    %994 = vmatprep.subr.mxu0 0.0
    %995 = vmatpush1.msra.mxu0 %v973
    %996 = vmatprep.subr.mxu0 0.0
    %997 = vmatpush1.msra.mxu0 %v974
    %998 = vmatprep.subr.mxu0 0.0
    %999 = vmatpush1.msra.mxu0 0.0
    %1000 = vmatprep.subr.mxu0 0.0
    %1001 = vmatpush1.msra.mxu0 0.0
    %1002 = vmatprep.subr.mxu0 0.0
    %1003 = vmatpush1.msra.mxu0 0.0
    %1004 = vmatprep.subr.mxu0 0.0
    %1005 = vmatpush1.msra.mxu0 0.0
    %1006 = vmatprep.subr.mxu0 0.0
    %1007 = vmatpush1.msra.mxu0 0.0
    %1008 = vmatprep.subr.mxu0 0.0
    %1009 = vmatpush1.msra.mxu0 0.0
    %1010 = vmatprep.subr.mxu0 0.0
    %1011 = vmatpush1.msra.mxu0 0.0
    %1012 = vmatprep.subr.mxu0 0.0
    %1013 = vmatpush1.msra.mxu0 0.0
    %1014 = vmatprep.subr.mxu0 0.0
    %1015 = vmatpush1.msra.mxu0 0.0
    %1016 = vmatprep.subr.mxu0 0.0
    %1017 = vmatpush1.msra.mxu0 0.0
    %1018 = vmatprep.subr.mxu0 0.0
    %1019 = vmatpush1.msra.mxu0 0.0
    %1020 = vmatprep.subr.mxu0 0.0
    %1021 = vmatpush1.msra.mxu0 0.0
    %1022 = vmatprep.subr.mxu0 0.0
    %1023 = vmatpush1.msra.mxu0 0.0
    %1024 = vmatprep.subr.mxu0 0.0
    %1025 = vmatpush1.msra.mxu0 0.0
    %1026 = vmatprep.subr.mxu0 0.0
    %1027 = vmatpush1.msra.mxu0 0.0
    %1028 = vmatprep.subr.mxu0 0.0
    %1029 = vmatpush1.msra.mxu0 0.0
    %1030 = vmatprep.subr.mxu0 0.0
    %1031 = vmatpush1.msra.mxu0 0.0
    %1032 = vmatprep.subr.mxu0 0.0
    %1033 = vmatpush1.msra.mxu0 0.0
    %1034 = vmatprep.subr.mxu0 0.0
    %1035 = vmatpush1.msra.mxu0 0.0
    %1036 = vmatprep.subr.mxu0 0.0
    %1037 = vmatpush1.msra.mxu0 0.0
    %1038 = vmatprep.subr.mxu0 0.0
    %1039 = vmatpush1.msra.mxu0 0.0
    %1040 = vmatprep.subr.mxu0 0.0
    %1041 = vmatpush1.msra.mxu0 0.0
    %1042 = vmatprep.subr.mxu0 0.0
    %1043 = vmatpush1.msra.mxu0 0.0
    %1044 = vmatprep.subr.mxu0 0.0
    %1045 = vmatpush1.msra.mxu0 0.0
    %1046 = vmatprep.subr.mxu0 0.0
    %1047 = vmatpush1.msra.mxu0 0.0
    %1048 = vmatprep.subr.mxu0 0.0
    %1049 = vmatpush1.msra.mxu0 0.0
    %1050 = vmatprep.subr.mxu0 0.0
    %1051 = vmatpush1.msra.mxu0 0.0
    %1052 = vmatprep.subr.mxu0 0.0
    %1053 = vmatpush1.msra.mxu0 0.0
    %1054 = vmatprep.mubr.f32.mxu0 0.0
    %1055 = vmatmul.mubr.f32.gmra.mrb[0].mxu0 %v988
    %v1056 = vpop.f32.mrb[0].mxu0
    %v1057 = vadd.f32 0.0, %v1056
    %v1058 = vpop.f32.mrb[0].mxu0
    %1059 = vdwg.mxu0
    %1060 = vmatprep.subr.mxu0 0.0
    %1061 = vmatpush1.msra.mxu0 %v976
    %1062 = vmatprep.subr.mxu0 0.0
    %1063 = vmatpush1.msra.mxu0 %v977
    %1064 = vmatprep.subr.mxu0 0.0
    %1065 = vmatpush1.msra.mxu0 %v978
    %1066 = vmatprep.subr.mxu0 0.0
    %1067 = vmatpush1.msra.mxu0 %v979
    %1068 = vmatprep.subr.mxu0 0.0
    %1069 = vmatpush1.msra.mxu0 0.0
    %1070 = vmatprep.subr.mxu0 0.0
    %1071 = vmatpush1.msra.mxu0 0.0
    %1072 = vmatprep.subr.mxu0 0.0
    %1073 = vmatpush1.msra.mxu0 0.0
    %1074 = vmatprep.subr.mxu0 0.0
    %1075 = vmatpush1.msra.mxu0 0.0
    %1076 = vmatprep.subr.mxu0 0.0
    %1077 = vmatpush1.msra.mxu0 0.0
    %1078 = vmatprep.subr.mxu0 0.0
    %1079 = vmatpush1.msra.mxu0 0.0
    %1080 = vmatprep.subr.mxu0 0.0
    %1081 = vmatpush1.msra.mxu0 0.0
    %1082 = vmatprep.subr.mxu0 0.0
    %1083 = vmatpush1.msra.mxu0 0.0
    %1084 = vmatprep.subr.mxu0 0.0
    %1085 = vmatpush1.msra.mxu0 0.0
    %1086 = vmatprep.subr.mxu0 0.0
    %1087 = vmatpush1.msra.mxu0 0.0
    %1088 = vmatprep.subr.mxu0 0.0
    %1089 = vmatpush1.msra.mxu0 0.0
    %1090 = vmatprep.subr.mxu0 0.0
    %1091 = vmatpush1.msra.mxu0 0.0
    %1092 = vmatprep.subr.mxu0 0.0
    %1093 = vmatpush1.msra.mxu0 0.0
    %1094 = vmatprep.subr.mxu0 0.0
    %1095 = vmatpush1.msra.mxu0 0.0
    %1096 = vmatprep.subr.mxu0 0.0
    %1097 = vmatpush1.msra.mxu0 0.0
    %1098 = vmatprep.subr.mxu0 0.0
    %1099 = vmatpush1.msra.mxu0 0.0
    %1100 = vmatprep.subr.mxu0 0.0
    %1101 = vmatpush1.msra.mxu0 0.0
    %1102 = vmatprep.subr.mxu0 0.0
    %1103 = vmatpush1.msra.mxu0 0.0
    %1104 = vmatprep.subr.mxu0 0.0
    %1105 = vmatpush1.msra.mxu0 0.0
    %1106 = vmatprep.subr.mxu0 0.0
    %1107 = vmatpush1.msra.mxu0 0.0
    %1108 = vmatprep.subr.mxu0 0.0
    %1109 = vmatpush1.msra.mxu0 0.0
    %1110 = vmatprep.subr.mxu0 0.0
    %1111 = vmatpush1.msra.mxu0 0.0
    %1112 = vmatprep.subr.mxu0 0.0
    %1113 = vmatpush1.msra.mxu0 0.0
    %1114 = vmatprep.subr.mxu0 0.0
    %1115 = vmatpush1.msra.mxu0 0.0
    %1116 = vmatprep.subr.mxu0 0.0
    %1117 = vmatpush1.msra.mxu0 0.0
    %1118 = vmatprep.subr.mxu0 0.0
    %1119 = vmatpush1.msra.mxu0 0.0
    %1120 = vmatprep.subr.mxu0 0.0
    %1121 = vmatpush1.msra.mxu0 0.0
    %1122 = vmatprep.subr.mxu0 0.0
    %1123 = vmatpush1.msra.mxu0 0.0
    %1124 = vmatprep.mubr.f32.mxu0 0.0
    %1125 = vmatmul.mubr.f32.gmra.mrb[0].mxu0 %v988
    %v1126 = vpop.f32.mrb[0].mxu0
    %v1127 = vadd.f32 0.0, %v1126
    %v1128 = vpop.f32.mrb[0].mxu0
    %1129 = vdwg.mxu0
    %v1131 = vlaneseq
    %v1132 = vshrl.u32 %v1131, 7
    %v1133 = vsub.s32 0, %v1132
    %v1134 = vrot.slane %v986, %v1133
    %1136 = vmatprep.subr.mxu0 0.0
    %1137 = vmatpush1.msra.mxu0 %v981
    %1138 = vmatprep.subr.mxu0 0.0
    %1139 = vmatpush1.msra.mxu0 %v982
    %1140 = vmatprep.subr.mxu0 0.0
    %1141 = vmatpush1.msra.mxu0 %v983
    %1142 = vmatprep.subr.mxu0 0.0
    %1143 = vmatpush1.msra.mxu0 %v984
    %1144 = vmatprep.subr.mxu0 0.0
    %1145 = vmatpush1.msra.mxu0 0.0
    %1146 = vmatprep.subr.mxu0 0.0
    %1147 = vmatpush1.msra.mxu0 0.0
    %1148 = vmatprep.subr.mxu0 0.0
    %1149 = vmatpush1.msra.mxu0 0.0
    %1150 = vmatprep.subr.mxu0 0.0
    %1151 = vmatpush1.msra.mxu0 0.0
    %1152 = vmatprep.subr.mxu0 0.0
    %1153 = vmatpush1.msra.mxu0 0.0
    %1154 = vmatprep.subr.mxu0 0.0
    %1155 = vmatpush1.msra.mxu0 0.0
    %1156 = vmatprep.subr.mxu0 0.0
    %1157 = vmatpush1.msra.mxu0 0.0
    %1158 = vmatprep.subr.mxu0 0.0
    %1159 = vmatpush1.msra.mxu0 0.0
    %1160 = vmatprep.subr.mxu0 0.0
    %1161 = vmatpush1.msra.mxu0 0.0
    %1162 = vmatprep.subr.mxu0 0.0
    %1163 = vmatpush1.msra.mxu0 0.0
    %1164 = vmatprep.subr.mxu0 0.0
    %1165 = vmatpush1.msra.mxu0 0.0
    %1166 = vmatprep.subr.mxu0 0.0
    %1167 = vmatpush1.msra.mxu0 0.0
    %1168 = vmatprep.subr.mxu0 0.0
    %1169 = vmatpush1.msra.mxu0 0.0
    %1170 = vmatprep.subr.mxu0 0.0
    %1171 = vmatpush1.msra.mxu0 0.0
    %1172 = vmatprep.subr.mxu0 0.0
    %1173 = vmatpush1.msra.mxu0 0.0
    %1174 = vmatprep.subr.mxu0 0.0
    %1175 = vmatpush1.msra.mxu0 0.0
    %1176 = vmatprep.subr.mxu0 0.0
    %1177 = vmatpush1.msra.mxu0 0.0
    %1178 = vmatprep.subr.mxu0 0.0
    %1179 = vmatpush1.msra.mxu0 0.0
    %1180 = vmatprep.subr.mxu0 0.0
    %1181 = vmatpush1.msra.mxu0 0.0
    %1182 = vmatprep.subr.mxu0 0.0
    %1183 = vmatpush1.msra.mxu0 0.0
    %1184 = vmatprep.subr.mxu0 0.0
    %1185 = vmatpush1.msra.mxu0 0.0
    %1186 = vmatprep.subr.mxu0 0.0
    %1187 = vmatpush1.msra.mxu0 0.0
    %1188 = vmatprep.subr.mxu0 0.0
    %1189 = vmatpush1.msra.mxu0 0.0
    %1190 = vmatprep.subr.mxu0 0.0
    %1191 = vmatpush1.msra.mxu0 0.0
    %1192 = vmatprep.subr.mxu0 0.0
    %1193 = vmatpush1.msra.mxu0 0.0
    %1194 = vmatprep.subr.mxu0 0.0
    %1195 = vmatpush1.msra.mxu0 0.0
    %1196 = vmatprep.subr.mxu0 0.0
    %1197 = vmatpush1.msra.mxu0 0.0
    %1198 = vmatprep.subr.mxu0 0.0
    %1199 = vmatpush1.msra.mxu0 0.0
    %1200 = vmatprep.mubr.f32.mxu0 0.0
    %1201 = vmatmul.mubr.f32.gmra.mrb[0].mxu0 %v988
    %v1202 = vpop.f32.mrb[0].mxu0
    %v1203 = vadd.f32 %v1134, %v1202
    %v1204 = vpop.f32.mrb[0].mxu0
    %1205 = vdwg.mxu0
    %v1206 = vadd.f32 %v787, %v1057
    %v1207 = vxor.u32 %v1206, 2147483648
    %v1208 = vmul.f32 %v1207, 1.442695
    %v1209 = vpow.pop %v1208
    %v1210 = vadd.f32 %v1209, 1.0
    %v1211 = vrcp.pop %v1210
    %v1212 = vmul.f32 1.0, %v1211
    %v1213 = vadd.f32 %v875, %v1127
    %v1214 = vxor.u32 %v1213, 2147483648
    %v1215 = vmul.f32 %v1214, 1.442695
    %v1216 = vpow.pop %v1215
    %v1217 = vadd.f32 %v1216, 1.0
    %v1218 = vrcp.pop %v1217
    %v1219 = vmul.f32 1.0, %v1218
    %v1220 = vmul.f32 %v1212, %v1203
    %v1221 = vadd.f32 %v963, %v1220
    %v1222 = vtanh.pop %v1221
    %v1223 = vsub.f32 1.0, %v1219
    %v1224 = vmul.f32 %v1223, %v1222
    %v1225 = vmul.f32 %v1219, 0.0
    %v1226 = vadd.f32 %v1224, %v1225
    %v1228 = vsel %vm713, %v1226, 0
    %1230 = vmatprep.subr.mxu0 0.0
    %1231 = vmatpush1.msra.mxu0 %v971
    %1232 = vmatprep.subr.mxu0 0.0
    %1233 = vmatpush1.msra.mxu0 %v972
    %1234 = vmatprep.subr.mxu0 0.0
    %1235 = vmatpush1.msra.mxu0 %v973
    %1236 = vmatprep.subr.mxu0 0.0
    %1237 = vmatpush1.msra.mxu0 %v974
    %1238 = vmatprep.subr.mxu0 0.0
    %1239 = vmatpush1.msra.mxu0 0.0
    %1240 = vmatprep.subr.mxu0 0.0
    %1241 = vmatpush1.msra.mxu0 0.0
    %1242 = vmatprep.subr.mxu0 0.0
    %1243 = vmatpush1.msra.mxu0 0.0
    %1244 = vmatprep.subr.mxu0 0.0
    %1245 = vmatpush1.msra.mxu0 0.0
    %1246 = vmatprep.subr.mxu0 0.0
    %1247 = vmatpush1.msra.mxu0 0.0
    %1248 = vmatprep.subr.mxu0 0.0
    %1249 = vmatpush1.msra.mxu0 0.0
    %1250 = vmatprep.subr.mxu0 0.0
    %1251 = vmatpush1.msra.mxu0 0.0
    %1252 = vmatprep.subr.mxu0 0.0
    %1253 = vmatpush1.msra.mxu0 0.0
    %1254 = vmatprep.subr.mxu0 0.0
    %1255 = vmatpush1.msra.mxu0 0.0
    %1256 = vmatprep.subr.mxu0 0.0
    %1257 = vmatpush1.msra.mxu0 0.0
    %1258 = vmatprep.subr.mxu0 0.0
    %1259 = vmatpush1.msra.mxu0 0.0
    %1260 = vmatprep.subr.mxu0 0.0
    %1261 = vmatpush1.msra.mxu0 0.0
    %1262 = vmatprep.subr.mxu0 0.0
    %1263 = vmatpush1.msra.mxu0 0.0
    %1264 = vmatprep.subr.mxu0 0.0
    %1265 = vmatpush1.msra.mxu0 0.0
    %1266 = vmatprep.subr.mxu0 0.0
    %1267 = vmatpush1.msra.mxu0 0.0
    %1268 = vmatprep.subr.mxu0 0.0
    %1269 = vmatpush1.msra.mxu0 0.0
    %1270 = vmatprep.subr.mxu0 0.0
    %1271 = vmatpush1.msra.mxu0 0.0
    %1272 = vmatprep.subr.mxu0 0.0
    %1273 = vmatpush1.msra.mxu0 0.0
    %1274 = vmatprep.subr.mxu0 0.0
    %1275 = vmatpush1.msra.mxu0 0.0
    %1276 = vmatprep.subr.mxu0 0.0
    %1277 = vmatpush1.msra.mxu0 0.0
    %1278 = vmatprep.subr.mxu0 0.0
    %1279 = vmatpush1.msra.mxu0 0.0
    %1280 = vmatprep.subr.mxu0 0.0
    %1281 = vmatpush1.msra.mxu0 0.0
    %1282 = vmatprep.subr.mxu0 0.0
    %1283 = vmatpush1.msra.mxu0 0.0
    %1284 = vmatprep.subr.mxu0 0.0
    %1285 = vmatpush1.msra.mxu0 0.0
    %1286 = vmatprep.subr.mxu0 0.0
    %1287 = vmatpush1.msra.mxu0 0.0
    %1288 = vmatprep.subr.mxu0 0.0
    %1289 = vmatpush1.msra.mxu0 0.0
    %1290 = vmatprep.subr.mxu0 0.0
    %1291 = vmatpush1.msra.mxu0 0.0
    %1292 = vmatprep.subr.mxu0 0.0
    %1293 = vmatpush1.msra.mxu0 0.0
    %1294 = vmatprep.mubr.f32.mxu0 0.0
    %1295 = vmatmul.mubr.f32.gmra.mrb[0].mxu0 %v1228
    %v1296 = vpop.f32.mrb[0].mxu0
    %v1297 = vadd.f32 0.0, %v1296
    %v1298 = vpop.f32.mrb[0].mxu0
    %1299 = vdwg.mxu0
    %1300 = vmatprep.subr.mxu0 0.0
    %1301 = vmatpush1.msra.mxu0 %v976
    %1302 = vmatprep.subr.mxu0 0.0
    %1303 = vmatpush1.msra.mxu0 %v977
    %1304 = vmatprep.subr.mxu0 0.0
    %1305 = vmatpush1.msra.mxu0 %v978
    %1306 = vmatprep.subr.mxu0 0.0
    %1307 = vmatpush1.msra.mxu0 %v979
    %1308 = vmatprep.subr.mxu0 0.0
    %1309 = vmatpush1.msra.mxu0 0.0
    %1310 = vmatprep.subr.mxu0 0.0
    %1311 = vmatpush1.msra.mxu0 0.0
    %1312 = vmatprep.subr.mxu0 0.0
    %1313 = vmatpush1.msra.mxu0 0.0
    %1314 = vmatprep.subr.mxu0 0.0
    %1315 = vmatpush1.msra.mxu0 0.0
    %1316 = vmatprep.subr.mxu0 0.0
    %1317 = vmatpush1.msra.mxu0 0.0
    %1318 = vmatprep.subr.mxu0 0.0
    %1319 = vmatpush1.msra.mxu0 0.0
    %1320 = vmatprep.subr.mxu0 0.0
    %1321 = vmatpush1.msra.mxu0 0.0
    %1322 = vmatprep.subr.mxu0 0.0
    %1323 = vmatpush1.msra.mxu0 0.0
    %1324 = vmatprep.subr.mxu0 0.0
    %1325 = vmatpush1.msra.mxu0 0.0
    %1326 = vmatprep.subr.mxu0 0.0
    %1327 = vmatpush1.msra.mxu0 0.0
    %1328 = vmatprep.subr.mxu0 0.0
    %1329 = vmatpush1.msra.mxu0 0.0
    %1330 = vmatprep.subr.mxu0 0.0
    %1331 = vmatpush1.msra.mxu0 0.0
    %1332 = vmatprep.subr.mxu0 0.0
    %1333 = vmatpush1.msra.mxu0 0.0
    %1334 = vmatprep.subr.mxu0 0.0
    %1335 = vmatpush1.msra.mxu0 0.0
    %1336 = vmatprep.subr.mxu0 0.0
    %1337 = vmatpush1.msra.mxu0 0.0
    %1338 = vmatprep.subr.mxu0 0.0
    %1339 = vmatpush1.msra.mxu0 0.0
    %1340 = vmatprep.subr.mxu0 0.0
    %1341 = vmatpush1.msra.mxu0 0.0
    %1342 = vmatprep.subr.mxu0 0.0
    %1343 = vmatpush1.msra.mxu0 0.0
    %1344 = vmatprep.subr.mxu0 0.0
    %1345 = vmatpush1.msra.mxu0 0.0
    %1346 = vmatprep.subr.mxu0 0.0
    %1347 = vmatpush1.msra.mxu0 0.0
    %1348 = vmatprep.subr.mxu0 0.0
    %1349 = vmatpush1.msra.mxu0 0.0
    %1350 = vmatprep.subr.mxu0 0.0
    %1351 = vmatpush1.msra.mxu0 0.0
    %1352 = vmatprep.subr.mxu0 0.0
    %1353 = vmatpush1.msra.mxu0 0.0
    %1354 = vmatprep.subr.mxu0 0.0
    %1355 = vmatpush1.msra.mxu0 0.0
    %1356 = vmatprep.subr.mxu0 0.0
    %1357 = vmatpush1.msra.mxu0 0.0
    %1358 = vmatprep.subr.mxu0 0.0
    %1359 = vmatpush1.msra.mxu0 0.0
    %1360 = vmatprep.subr.mxu0 0.0
    %1361 = vmatpush1.msra.mxu0 0.0
    %1362 = vmatprep.subr.mxu0 0.0
    %1363 = vmatpush1.msra.mxu0 0.0
    %1364 = vmatprep.mubr.f32.mxu0 0.0
    %1365 = vmatmul.mubr.f32.gmra.mrb[0].mxu0 %v1228
    %v1366 = vpop.f32.mrb[0].mxu0
    %v1367 = vadd.f32 0.0, %v1366
    %v1368 = vpop.f32.mrb[0].mxu0
    %1369 = vdwg.mxu0
    %1370 = vmatprep.subr.mxu0 0.0
    %1371 = vmatpush1.msra.mxu0 %v981
    %1372 = vmatprep.subr.mxu0 0.0
    %1373 = vmatpush1.msra.mxu0 %v982
    %1374 = vmatprep.subr.mxu0 0.0
    %1375 = vmatpush1.msra.mxu0 %v983
    %1376 = vmatprep.subr.mxu0 0.0
    %1377 = vmatpush1.msra.mxu0 %v984
    %1378 = vmatprep.subr.mxu0 0.0
    %1379 = vmatpush1.msra.mxu0 0.0
    %1380 = vmatprep.subr.mxu0 0.0
    %1381 = vmatpush1.msra.mxu0 0.0
    %1382 = vmatprep.subr.mxu0 0.0
    %1383 = vmatpush1.msra.mxu0 0.0
    %1384 = vmatprep.subr.mxu0 0.0
    %1385 = vmatpush1.msra.mxu0 0.0
    %1386 = vmatprep.subr.mxu0 0.0
    %1387 = vmatpush1.msra.mxu0 0.0
    %1388 = vmatprep.subr.mxu0 0.0
    %1389 = vmatpush1.msra.mxu0 0.0
    %1390 = vmatprep.subr.mxu0 0.0
    %1391 = vmatpush1.msra.mxu0 0.0
    %1392 = vmatprep.subr.mxu0 0.0
    %1393 = vmatpush1.msra.mxu0 0.0
    %1394 = vmatprep.subr.mxu0 0.0
    %1395 = vmatpush1.msra.mxu0 0.0
    %1396 = vmatprep.subr.mxu0 0.0
    %1397 = vmatpush1.msra.mxu0 0.0
    %1398 = vmatprep.subr.mxu0 0.0
    %1399 = vmatpush1.msra.mxu0 0.0
    %1400 = vmatprep.subr.mxu0 0.0
    %1401 = vmatpush1.msra.mxu0 0.0
    %1402 = vmatprep.subr.mxu0 0.0
    %1403 = vmatpush1.msra.mxu0 0.0
    %1404 = vmatprep.subr.mxu0 0.0
    %1405 = vmatpush1.msra.mxu0 0.0
    %1406 = vmatprep.subr.mxu0 0.0
    %1407 = vmatpush1.msra.mxu0 0.0
    %1408 = vmatprep.subr.mxu0 0.0
    %1409 = vmatpush1.msra.mxu0 0.0
    %1410 = vmatprep.subr.mxu0 0.0
    %1411 = vmatpush1.msra.mxu0 0.0
    %1412 = vmatprep.subr.mxu0 0.0
    %1413 = vmatpush1.msra.mxu0 0.0
    %1414 = vmatprep.subr.mxu0 0.0
    %1415 = vmatpush1.msra.mxu0 0.0
    %1416 = vmatprep.subr.mxu0 0.0
    %1417 = vmatpush1.msra.mxu0 0.0
    %1418 = vmatprep.subr.mxu0 0.0
    %1419 = vmatpush1.msra.mxu0 0.0
    %1420 = vmatprep.subr.mxu0 0.0
    %1421 = vmatpush1.msra.mxu0 0.0
    %1422 = vmatprep.subr.mxu0 0.0
    %1423 = vmatpush1.msra.mxu0 0.0
    %1424 = vmatprep.subr.mxu0 0.0
    %1425 = vmatpush1.msra.mxu0 0.0
    %1426 = vmatprep.subr.mxu0 0.0
    %1427 = vmatpush1.msra.mxu0 0.0
    %1428 = vmatprep.subr.mxu0 0.0
    %1429 = vmatpush1.msra.mxu0 0.0
    %1430 = vmatprep.subr.mxu0 0.0
    %1431 = vmatpush1.msra.mxu0 0.0
    %1432 = vmatprep.subr.mxu0 0.0
    %1433 = vmatpush1.msra.mxu0 0.0
    %1434 = vmatprep.mubr.f32.mxu0 0.0
    %1435 = vmatmul.mubr.f32.gmra.mrb[0].mxu0 %v1228
    %v1436 = vpop.f32.mrb[0].mxu0
    %v1437 = vadd.f32 %v1134, %v1436
    %v1438 = vpop.f32.mrb[0].mxu0
    %1439 = vdwg.mxu0
    %v1441 = vrot.slane %v1297, 6
    %v1443 = vadd.f32 %v787, %v1441
    %v1444 = vxor.u32 %v1443, 2147483648
    %v1445 = vmul.f32 %v1444, 1.442695
    %v1446 = vpow.pop %v1445
    %v1447 = vadd.f32 %v1446, 1.0
    %v1448 = vrcp.pop %v1447
    %v1449 = vmul.f32 1.0, %v1448
    %v1451 = vrot.slane %v1367, 6
    %v1453 = vadd.f32 %v875, %v1451
    %v1454 = vxor.u32 %v1453, 2147483648
    %v1455 = vmul.f32 %v1454, 1.442695
    %v1456 = vpow.pop %v1455
    %v1457 = vadd.f32 %v1456, 1.0
    %v1458 = vrcp.pop %v1457
    %v1459 = vmul.f32 1.0, %v1458
    %v1461 = vrot.slane %v1437, 6
    %v1463 = vmul.f32 %v1449, %v1461
    %v1464 = vadd.f32 %v963, %v1463
    %v1465 = vtanh.pop %v1464
    %v1466 = vsub.f32 1.0, %v1459
    %v1467 = vmul.f32 %v1466, %v1465
    %v1468 = vrot.slane %v1226, 6
    %v1470 = vmul.f32 %v1459, %v1468
    %v1471 = vadd.f32 %v1467, %v1470
    %v1473 = vrot.slane %v1471, 2
    %v1474 = vsel %vm713, %v1473, 0
    %1476 = vmatprep.subr.mxu0 0.0
    %1477 = vmatpush1.msra.mxu0 %v971
    %1478 = vmatprep.subr.mxu0 0.0
    %1479 = vmatpush1.msra.mxu0 %v972
    %1480 = vmatprep.subr.mxu0 0.0
    %1481 = vmatpush1.msra.mxu0 %v973
    %1482 = vmatprep.subr.mxu0 0.0
    %1483 = vmatpush1.msra.mxu0 %v974
    %1484 = vmatprep.subr.mxu0 0.0
    %1485 = vmatpush1.msra.mxu0 0.0
    %1486 = vmatprep.subr.mxu0 0.0
    %1487 = vmatpush1.msra.mxu0 0.0
    %1488 = vmatprep.subr.mxu0 0.0
    %1489 = vmatpush1.msra.mxu0 0.0
    %1490 = vmatprep.subr.mxu0 0.0
    %1491 = vmatpush1.msra.mxu0 0.0
    %1492 = vmatprep.subr.mxu0 0.0
    %1493 = vmatpush1.msra.mxu0 0.0
    %1494 = vmatprep.subr.mxu0 0.0
    %1495 = vmatpush1.msra.mxu0 0.0
    %1496 = vmatprep.subr.mxu0 0.0
    %1497 = vmatpush1.msra.mxu0 0.0
    %1498 = vmatprep.subr.mxu0 0.0
    %1499 = vmatpush1.msra.mxu0 0.0
    %1500 = vmatprep.subr.mxu0 0.0
    %1501 = vmatpush1.msra.mxu0 0.0
    %1502 = vmatprep.subr.mxu0 0.0
    %1503 = vmatpush1.msra.mxu0 0.0
    %1504 = vmatprep.subr.mxu0 0.0
    %1505 = vmatpush1.msra.mxu0 0.0
    %1506 = vmatprep.subr.mxu0 0.0
    %1507 = vmatpush1.msra.mxu0 0.0
    %1508 = vmatprep.subr.mxu0 0.0
    %1509 = vmatpush1.msra.mxu0 0.0
    %1510 = vmatprep.subr.mxu0 0.0
    %1511 = vmatpush1.msra.mxu0 0.0
    %1512 = vmatprep.subr.mxu0 0.0
    %1513 = vmatpush1.msra.mxu0 0.0
    %1514 = vmatprep.subr.mxu0 0.0
    %1515 = vmatpush1.msra.mxu0 0.0
    %1516 = vmatprep.subr.mxu0 0.0
    %1517 = vmatpush1.msra.mxu0 0.0
    %1518 = vmatprep.subr.mxu0 0.0
    %1519 = vmatpush1.msra.mxu0 0.0
    %1520 = vmatprep.subr.mxu0 0.0
    %1521 = vmatpush1.msra.mxu0 0.0
    %1522 = vmatprep.subr.mxu0 0.0
    %1523 = vmatpush1.msra.mxu0 0.0
    %1524 = vmatprep.subr.mxu0 0.0
    %1525 = vmatpush1.msra.mxu0 0.0
    %1526 = vmatprep.subr.mxu0 0.0
    %1527 = vmatpush1.msra.mxu0 0.0
    %1528 = vmatprep.subr.mxu0 0.0
    %1529 = vmatpush1.msra.mxu0 0.0
    %1530 = vmatprep.subr.mxu0 0.0
    %1531 = vmatpush1.msra.mxu0 0.0
    %1532 = vmatprep.subr.mxu0 0.0
    %1533 = vmatpush1.msra.mxu0 0.0
    %1534 = vmatprep.subr.mxu0 0.0
    %1535 = vmatpush1.msra.mxu0 0.0
    %1536 = vmatprep.subr.mxu0 0.0
    %1537 = vmatpush1.msra.mxu0 0.0
    %1538 = vmatprep.subr.mxu0 0.0
    %1539 = vmatpush1.msra.mxu0 0.0
    %1540 = vmatprep.mubr.f32.mxu0 0.0
    %1541 = vmatmul.mubr.f32.gmra.mrb[0].mxu0 %v1474
    %v1542 = vpop.f32.mrb[0].mxu0
    %v1543 = vadd.f32 0.0, %v1542
    %v1544 = vpop.f32.mrb[0].mxu0
    %1545 = vdwg.mxu0
    %1546 = vmatprep.subr.mxu0 0.0
    %1547 = vmatpush1.msra.mxu0 %v976
    %1548 = vmatprep.subr.mxu0 0.0
    %1549 = vmatpush1.msra.mxu0 %v977
    %1550 = vmatprep.subr.mxu0 0.0
    %1551 = vmatpush1.msra.mxu0 %v978
    %1552 = vmatprep.subr.mxu0 0.0
    %1553 = vmatpush1.msra.mxu0 %v979
    %1554 = vmatprep.subr.mxu0 0.0
    %1555 = vmatpush1.msra.mxu0 0.0
    %1556 = vmatprep.subr.mxu0 0.0
    %1557 = vmatpush1.msra.mxu0 0.0
    %1558 = vmatprep.subr.mxu0 0.0
    %1559 = vmatpush1.msra.mxu0 0.0
    %1560 = vmatprep.subr.mxu0 0.0
    %1561 = vmatpush1.msra.mxu0 0.0
    %1562 = vmatprep.subr.mxu0 0.0
    %1563 = vmatpush1.msra.mxu0 0.0
    %1564 = vmatprep.subr.mxu0 0.0
    %1565 = vmatpush1.msra.mxu0 0.0
    %1566 = vmatprep.subr.mxu0 0.0
    %1567 = vmatpush1.msra.mxu0 0.0
    %1568 = vmatprep.subr.mxu0 0.0
    %1569 = vmatpush1.msra.mxu0 0.0
    %1570 = vmatprep.subr.mxu0 0.0
    %1571 = vmatpush1.msra.mxu0 0.0
    %1572 = vmatprep.subr.mxu0 0.0
    %1573 = vmatpush1.msra.mxu0 0.0
    %1574 = vmatprep.subr.mxu0 0.0
    %1575 = vmatpush1.msra.mxu0 0.0
    %1576 = vmatprep.subr.mxu0 0.0
    %1577 = vmatpush1.msra.mxu0 0.0
    %1578 = vmatprep.subr.mxu0 0.0
    %1579 = vmatpush1.msra.mxu0 0.0
    %1580 = vmatprep.subr.mxu0 0.0
    %1581 = vmatpush1.msra.mxu0 0.0
    %1582 = vmatprep.subr.mxu0 0.0
    %1583 = vmatpush1.msra.mxu0 0.0
    %1584 = vmatprep.subr.mxu0 0.0
    %1585 = vmatpush1.msra.mxu0 0.0
    %1586 = vmatprep.subr.mxu0 0.0
    %1587 = vmatpush1.msra.mxu0 0.0
    %1588 = vmatprep.subr.mxu0 0.0
    %1589 = vmatpush1.msra.mxu0 0.0
    %1590 = vmatprep.subr.mxu0 0.0
    %1591 = vmatpush1.msra.mxu0 0.0
    %1592 = vmatprep.subr.mxu0 0.0
    %1593 = vmatpush1.msra.mxu0 0.0
    %1594 = vmatprep.subr.mxu0 0.0
    %1595 = vmatpush1.msra.mxu0 0.0
    %1596 = vmatprep.subr.mxu0 0.0
    %1597 = vmatpush1.msra.mxu0 0.0
    %1598 = vmatprep.subr.mxu0 0.0
    %1599 = vmatpush1.msra.mxu0 0.0
    %1600 = vmatprep.subr.mxu0 0.0
    %1601 = vmatpush1.msra.mxu0 0.0
    %1602 = vmatprep.subr.mxu0 0.0
    %1603 = vmatpush1.msra.mxu0 0.0
    %1604 = vmatprep.subr.mxu0 0.0
    %1605 = vmatpush1.msra.mxu0 0.0
    %1606 = vmatprep.subr.mxu0 0.0
    %1607 = vmatpush1.msra.mxu0 0.0
    %1608 = vmatprep.subr.mxu0 0.0
    %1609 = vmatpush1.msra.mxu0 0.0
    %1610 = vmatprep.mubr.f32.mxu0 0.0
    %1611 = vmatmul.mubr.f32.gmra.mrb[0].mxu0 %v1474
    %v1612 = vpop.f32.mrb[0].mxu0
    %v1613 = vadd.f32 0.0, %v1612
    %v1614 = vpop.f32.mrb[0].mxu0
    %1615 = vdwg.mxu0
    %1616 = vmatprep.subr.mxu0 0.0
    %1617 = vmatpush1.msra.mxu0 %v981
    %1618 = vmatprep.subr.mxu0 0.0
    %1619 = vmatpush1.msra.mxu0 %v982
    %1620 = vmatprep.subr.mxu0 0.0
    %1621 = vmatpush1.msra.mxu0 %v983
    %1622 = vmatprep.subr.mxu0 0.0
    %1623 = vmatpush1.msra.mxu0 %v984
    %1624 = vmatprep.subr.mxu0 0.0
    %1625 = vmatpush1.msra.mxu0 0.0
    %1626 = vmatprep.subr.mxu0 0.0
    %1627 = vmatpush1.msra.mxu0 0.0
    %1628 = vmatprep.subr.mxu0 0.0
    %1629 = vmatpush1.msra.mxu0 0.0
    %1630 = vmatprep.subr.mxu0 0.0
    %1631 = vmatpush1.msra.mxu0 0.0
    %1632 = vmatprep.subr.mxu0 0.0
    %1633 = vmatpush1.msra.mxu0 0.0
    %1634 = vmatprep.subr.mxu0 0.0
    %1635 = vmatpush1.msra.mxu0 0.0
    %1636 = vmatprep.subr.mxu0 0.0
    %1637 = vmatpush1.msra.mxu0 0.0
    %1638 = vmatprep.subr.mxu0 0.0
    %1639 = vmatpush1.msra.mxu0 0.0
    %1640 = vmatprep.subr.mxu0 0.0
    %1641 = vmatpush1.msra.mxu0 0.0
    %1642 = vmatprep.subr.mxu0 0.0
    %1643 = vmatpush1.msra.mxu0 0.0
    %1644 = vmatprep.subr.mxu0 0.0
    %1645 = vmatpush1.msra.mxu0 0.0
    %1646 = vmatprep.subr.mxu0 0.0
    %1647 = vmatpush1.msra.mxu0 0.0
    %1648 = vmatprep.subr.mxu0 0.0
    %1649 = vmatpush1.msra.mxu0 0.0
    %1650 = vmatprep.subr.mxu0 0.0
    %1651 = vmatpush1.msra.mxu0 0.0
    %1652 = vmatprep.subr.mxu0 0.0
    %1653 = vmatpush1.msra.mxu0 0.0
    %1654 = vmatprep.subr.mxu0 0.0
    %1655 = vmatpush1.msra.mxu0 0.0
    %1656 = vmatprep.subr.mxu0 0.0
    %1657 = vmatpush1.msra.mxu0 0.0
    %1658 = vmatprep.subr.mxu0 0.0
    %1659 = vmatpush1.msra.mxu0 0.0
    %1660 = vmatprep.subr.mxu0 0.0
    %1661 = vmatpush1.msra.mxu0 0.0
    %1662 = vmatprep.subr.mxu0 0.0
    %1663 = vmatpush1.msra.mxu0 0.0
    %1664 = vmatprep.subr.mxu0 0.0
    %1665 = vmatpush1.msra.mxu0 0.0
    %1666 = vmatprep.subr.mxu0 0.0
    %1667 = vmatpush1.msra.mxu0 0.0
    %1668 = vmatprep.subr.mxu0 0.0
    %1669 = vmatpush1.msra.mxu0 0.0
    %1670 = vmatprep.subr.mxu0 0.0
    %1671 = vmatpush1.msra.mxu0 0.0
    %1672 = vmatprep.subr.mxu0 0.0
    %1673 = vmatpush1.msra.mxu0 0.0
    %1674 = vmatprep.subr.mxu0 0.0
    %1675 = vmatpush1.msra.mxu0 0.0
    %1676 = vmatprep.subr.mxu0 0.0
    %1677 = vmatpush1.msra.mxu0 0.0
    %1678 = vmatprep.subr.mxu0 0.0
    %1679 = vmatpush1.msra.mxu0 0.0
    %1680 = vmatprep.mubr.f32.mxu0 0.0
    %1681 = vmatmul.mubr.f32.gmra.mrb[0].mxu0 %v1474
    %v1682 = vpop.f32.mrb[0].mxu0
    %v1683 = vadd.f32 %v1134, %v1682
    %v1684 = vpop.f32.mrb[0].mxu0
    %1685 = vdwg.mxu0
    %v1687 = vrot.slane %v1543, 4
    %v1689 = vadd.f32 %v787, %v1687
    %v1690 = vxor.u32 %v1689, 2147483648
    %v1691 = vmul.f32 %v1690, 1.442695
    %v1692 = vpow.pop %v1691
    %v1693 = vadd.f32 %v1692, 1.0
    %v1694 = vrcp.pop %v1693
    %v1695 = vmul.f32 1.0, %v1694
    %v1697 = vrot.slane %v1613, 4
    %v1699 = vadd.f32 %v875, %v1697
    %v1700 = vxor.u32 %v1699, 2147483648
    %v1701 = vmul.f32 %v1700, 1.442695
    %v1702 = vpow.pop %v1701
    %v1703 = vadd.f32 %v1702, 1.0
    %v1704 = vrcp.pop %v1703
    %v1705 = vmul.f32 1.0, %v1704
    %v1707 = vrot.slane %v1683, 4
    %v1709 = vmul.f32 %v1695, %v1707
    %v1710 = vadd.f32 %v963, %v1709
    %v1711 = vtanh.pop %v1710
    %v1712 = vsub.f32 1.0, %v1705
    %v1713 = vmul.f32 %v1712, %v1711
    %v1714 = vrot.slane %v1471, 6
    %v1716 = vmul.f32 %v1705, %v1714
    %v1717 = vadd.f32 %v1713, %v1716
    %v1719 = vrot.slane %v1717, 4
    %v1720 = vsel %vm713, %v1719, 0
    %1722 = vmatprep.subr.mxu0 0.0
    %1723 = vmatpush1.msra.mxu0 %v971
    %1724 = vmatprep.subr.mxu0 0.0
    %1725 = vmatpush1.msra.mxu0 %v972
    %1726 = vmatprep.subr.mxu0 0.0
    %1727 = vmatpush1.msra.mxu0 %v973
    %1728 = vmatprep.subr.mxu0 0.0
    %1729 = vmatpush1.msra.mxu0 %v974
    %1730 = vmatprep.subr.mxu0 0.0
    %1731 = vmatpush1.msra.mxu0 0.0
    %1732 = vmatprep.subr.mxu0 0.0
    %1733 = vmatpush1.msra.mxu0 0.0
    %1734 = vmatprep.subr.mxu0 0.0
    %1735 = vmatpush1.msra.mxu0 0.0
    %1736 = vmatprep.subr.mxu0 0.0
    %1737 = vmatpush1.msra.mxu0 0.0
    %1738 = vmatprep.subr.mxu0 0.0
    %1739 = vmatpush1.msra.mxu0 0.0
    %1740 = vmatprep.subr.mxu0 0.0
    %1741 = vmatpush1.msra.mxu0 0.0
    %1742 = vmatprep.subr.mxu0 0.0
    %1743 = vmatpush1.msra.mxu0 0.0
    %1744 = vmatprep.subr.mxu0 0.0
    %1745 = vmatpush1.msra.mxu0 0.0
    %1746 = vmatprep.subr.mxu0 0.0
    %1747 = vmatpush1.msra.mxu0 0.0
    %1748 = vmatprep.subr.mxu0 0.0
    %1749 = vmatpush1.msra.mxu0 0.0
    %1750 = vmatprep.subr.mxu0 0.0
    %1751 = vmatpush1.msra.mxu0 0.0
    %1752 = vmatprep.subr.mxu0 0.0
    %1753 = vmatpush1.msra.mxu0 0.0
    %1754 = vmatprep.subr.mxu0 0.0
    %1755 = vmatpush1.msra.mxu0 0.0
    %1756 = vmatprep.subr.mxu0 0.0
    %1757 = vmatpush1.msra.mxu0 0.0
    %1758 = vmatprep.subr.mxu0 0.0
    %1759 = vmatpush1.msra.mxu0 0.0
    %1760 = vmatprep.subr.mxu0 0.0
    %1761 = vmatpush1.msra.mxu0 0.0
    %1762 = vmatprep.subr.mxu0 0.0
    %1763 = vmatpush1.msra.mxu0 0.0
    %1764 = vmatprep.subr.mxu0 0.0
    %1765 = vmatpush1.msra.mxu0 0.0
    %1766 = vmatprep.subr.mxu0 0.0
    %1767 = vmatpush1.msra.mxu0 0.0
    %1768 = vmatprep.subr.mxu0 0.0
    %1769 = vmatpush1.msra.mxu0 0.0
    %1770 = vmatprep.subr.mxu0 0.0
    %1771 = vmatpush1.msra.mxu0 0.0
    %1772 = vmatprep.subr.mxu0 0.0
    %1773 = vmatpush1.msra.mxu0 0.0
    %1774 = vmatprep.subr.mxu0 0.0
    %1775 = vmatpush1.msra.mxu0 0.0
    %1776 = vmatprep.subr.mxu0 0.0
    %1777 = vmatpush1.msra.mxu0 0.0
    %1778 = vmatprep.subr.mxu0 0.0
    %1779 = vmatpush1.msra.mxu0 0.0
    %1780 = vmatprep.subr.mxu0 0.0
    %1781 = vmatpush1.msra.mxu0 0.0
    %1782 = vmatprep.subr.mxu0 0.0
    %1783 = vmatpush1.msra.mxu0 0.0
    %1784 = vmatprep.subr.mxu0 0.0
    %1785 = vmatpush1.msra.mxu0 0.0
    %1786 = vmatprep.mubr.f32.mxu0 0.0
    %1787 = vmatmul.mubr.f32.gmra.mrb[0].mxu0 %v1720
    %v1788 = vpop.f32.mrb[0].mxu0
    %v1789 = vadd.f32 0.0, %v1788
    %v1790 = vpop.f32.mrb[0].mxu0
    %1791 = vdwg.mxu0
    %1792 = vmatprep.subr.mxu0 0.0
    %1793 = vmatpush1.msra.mxu0 %v976
    %1794 = vmatprep.subr.mxu0 0.0
    %1795 = vmatpush1.msra.mxu0 %v977
    %1796 = vmatprep.subr.mxu0 0.0
    %1797 = vmatpush1.msra.mxu0 %v978
    %1798 = vmatprep.subr.mxu0 0.0
    %1799 = vmatpush1.msra.mxu0 %v979
    %1800 = vmatprep.subr.mxu0 0.0
    %1801 = vmatpush1.msra.mxu0 0.0
    %1802 = vmatprep.subr.mxu0 0.0
    %1803 = vmatpush1.msra.mxu0 0.0
    %1804 = vmatprep.subr.mxu0 0.0
    %1805 = vmatpush1.msra.mxu0 0.0
    %1806 = vmatprep.subr.mxu0 0.0
    %1807 = vmatpush1.msra.mxu0 0.0
    %1808 = vmatprep.subr.mxu0 0.0
    %1809 = vmatpush1.msra.mxu0 0.0
    %1810 = vmatprep.subr.mxu0 0.0
    %1811 = vmatpush1.msra.mxu0 0.0
    %1812 = vmatprep.subr.mxu0 0.0
    %1813 = vmatpush1.msra.mxu0 0.0
    %1814 = vmatprep.subr.mxu0 0.0
    %1815 = vmatpush1.msra.mxu0 0.0
    %1816 = vmatprep.subr.mxu0 0.0
    %1817 = vmatpush1.msra.mxu0 0.0
    %1818 = vmatprep.subr.mxu0 0.0
    %1819 = vmatpush1.msra.mxu0 0.0
    %1820 = vmatprep.subr.mxu0 0.0
    %1821 = vmatpush1.msra.mxu0 0.0
    %1822 = vmatprep.subr.mxu0 0.0
    %1823 = vmatpush1.msra.mxu0 0.0
    %1824 = vmatprep.subr.mxu0 0.0
    %1825 = vmatpush1.msra.mxu0 0.0
    %1826 = vmatprep.subr.mxu0 0.0
    %1827 = vmatpush1.msra.mxu0 0.0
    %1828 = vmatprep.subr.mxu0 0.0
    %1829 = vmatpush1.msra.mxu0 0.0
    %1830 = vmatprep.subr.mxu0 0.0
    %1831 = vmatpush1.msra.mxu0 0.0
    %1832 = vmatprep.subr.mxu0 0.0
    %1833 = vmatpush1.msra.mxu0 0.0
    %1834 = vmatprep.subr.mxu0 0.0
    %1835 = vmatpush1.msra.mxu0 0.0
    %1836 = vmatprep.subr.mxu0 0.0
    %1837 = vmatpush1.msra.mxu0 0.0
    %1838 = vmatprep.subr.mxu0 0.0
    %1839 = vmatpush1.msra.mxu0 0.0
    %1840 = vmatprep.subr.mxu0 0.0
    %1841 = vmatpush1.msra.mxu0 0.0
    %1842 = vmatprep.subr.mxu0 0.0
    %1843 = vmatpush1.msra.mxu0 0.0
    %1844 = vmatprep.subr.mxu0 0.0
    %1845 = vmatpush1.msra.mxu0 0.0
    %1846 = vmatprep.subr.mxu0 0.0
    %1847 = vmatpush1.msra.mxu0 0.0
    %1848 = vmatprep.subr.mxu0 0.0
    %1849 = vmatpush1.msra.mxu0 0.0
    %1850 = vmatprep.subr.mxu0 0.0
    %1851 = vmatpush1.msra.mxu0 0.0
    %1852 = vmatprep.subr.mxu0 0.0
    %1853 = vmatpush1.msra.mxu0 0.0
    %1854 = vmatprep.subr.mxu0 0.0
    %1855 = vmatpush1.msra.mxu0 0.0
    %1856 = vmatprep.mubr.f32.mxu0 0.0
    %1857 = vmatmul.mubr.f32.gmra.mrb[0].mxu0 %v1720
    %v1858 = vpop.f32.mrb[0].mxu0
    %v1859 = vadd.f32 0.0, %v1858
    %v1860 = vpop.f32.mrb[0].mxu0
    %1861 = vdwg.mxu0
    %1862 = vmatprep.subr.mxu0 0.0
    %1863 = vmatpush1.msra.mxu0 %v981
    %1864 = vmatprep.subr.mxu0 0.0
    %1865 = vmatpush1.msra.mxu0 %v982
    %1866 = vmatprep.subr.mxu0 0.0
    %1867 = vmatpush1.msra.mxu0 %v983
    %1868 = vmatprep.subr.mxu0 0.0
    %1869 = vmatpush1.msra.mxu0 %v984
    %1870 = vmatprep.subr.mxu0 0.0
    %1871 = vmatpush1.msra.mxu0 0.0
    %1872 = vmatprep.subr.mxu0 0.0
    %1873 = vmatpush1.msra.mxu0 0.0
    %1874 = vmatprep.subr.mxu0 0.0
    %1875 = vmatpush1.msra.mxu0 0.0
    %1876 = vmatprep.subr.mxu0 0.0
    %1877 = vmatpush1.msra.mxu0 0.0
    %1878 = vmatprep.subr.mxu0 0.0
    %1879 = vmatpush1.msra.mxu0 0.0
    %1880 = vmatprep.subr.mxu0 0.0
    %1881 = vmatpush1.msra.mxu0 0.0
    %1882 = vmatprep.subr.mxu0 0.0
    %1883 = vmatpush1.msra.mxu0 0.0
    %1884 = vmatprep.subr.mxu0 0.0
    %1885 = vmatpush1.msra.mxu0 0.0
    %1886 = vmatprep.subr.mxu0 0.0
    %1887 = vmatpush1.msra.mxu0 0.0
    %1888 = vmatprep.subr.mxu0 0.0
    %1889 = vmatpush1.msra.mxu0 0.0
    %1890 = vmatprep.subr.mxu0 0.0
    %1891 = vmatpush1.msra.mxu0 0.0
    %1892 = vmatprep.subr.mxu0 0.0
    %1893 = vmatpush1.msra.mxu0 0.0
    %1894 = vmatprep.subr.mxu0 0.0
    %1895 = vmatpush1.msra.mxu0 0.0
    %1896 = vmatprep.subr.mxu0 0.0
    %1897 = vmatpush1.msra.mxu0 0.0
    %1898 = vmatprep.subr.mxu0 0.0
    %1899 = vmatpush1.msra.mxu0 0.0
    %1900 = vmatprep.subr.mxu0 0.0
    %1901 = vmatpush1.msra.mxu0 0.0
    %1902 = vmatprep.subr.mxu0 0.0
    %1903 = vmatpush1.msra.mxu0 0.0
    %1904 = vmatprep.subr.mxu0 0.0
    %1905 = vmatpush1.msra.mxu0 0.0
    %1906 = vmatprep.subr.mxu0 0.0
    %1907 = vmatpush1.msra.mxu0 0.0
    %1908 = vmatprep.subr.mxu0 0.0
    %1909 = vmatpush1.msra.mxu0 0.0
    %1910 = vmatprep.subr.mxu0 0.0
    %1911 = vmatpush1.msra.mxu0 0.0
    %1912 = vmatprep.subr.mxu0 0.0
    %1913 = vmatpush1.msra.mxu0 0.0
    %1914 = vmatprep.subr.mxu0 0.0
    %1915 = vmatpush1.msra.mxu0 0.0
    %1916 = vmatprep.subr.mxu0 0.0
    %1917 = vmatpush1.msra.mxu0 0.0
    %1918 = vmatprep.subr.mxu0 0.0
    %1919 = vmatpush1.msra.mxu0 0.0
    %1920 = vmatprep.subr.mxu0 0.0
    %1921 = vmatpush1.msra.mxu0 0.0
    %1922 = vmatprep.subr.mxu0 0.0
    %1923 = vmatpush1.msra.mxu0 0.0
    %1924 = vmatprep.subr.mxu0 0.0
    %1925 = vmatpush1.msra.mxu0 0.0
    %1926 = vmatprep.mubr.f32.mxu0 0.0
    %1927 = vmatmul.mubr.f32.gmra.mrb[0].mxu0 %v1720
    %v1928 = vpop.f32.mrb[0].mxu0
    %v1929 = vadd.f32 %v1134, %v1928
    %v1930 = vpop.f32.mrb[0].mxu0
    %1931 = vdwg.mxu0
    %v1933 = vrot.slane %v1789, 2
    %v1935 = vadd.f32 %v787, %v1933
    %v1936 = vxor.u32 %v1935, 2147483648
    %v1937 = vmul.f32 %v1936, 1.442695
    %v1938 = vpow.pop %v1937
    %v1939 = vadd.f32 %v1938, 1.0
    %v1940 = vrcp.pop %v1939
    %v1941 = vmul.f32 1.0, %v1940
    %v1943 = vrot.slane %v1859, 2
    %v1945 = vadd.f32 %v875, %v1943
    %v1946 = vxor.u32 %v1945, 2147483648
    %v1947 = vmul.f32 %v1946, 1.442695
    %v1948 = vpow.pop %v1947
    %v1949 = vadd.f32 %v1948, 1.0
    %v1950 = vrcp.pop %v1949
    %v1951 = vmul.f32 1.0, %v1950
    %v1953 = vrot.slane %v1929, 2
    %v1955 = vmul.f32 %v1941, %v1953
    %v1956 = vadd.f32 %v963, %v1955
    %v1957 = vtanh.pop %v1956
    %v1958 = vsub.f32 1.0, %v1951
    %v1959 = vmul.f32 %v1958, %v1957
    %v1960 = vrot.slane %v1717, 6
    %v1962 = vmul.f32 %v1951, %v1960
    %v1963 = vadd.f32 %v1959, %v1962
    %v1965 = vrot.slane %v1963, 6
    %v1966 = vsel %vm713, %v1965, 0
    %1968 = vmatprep.subr.mxu0 0.0
    %1969 = vmatpush1.msra.mxu0 %v971
    %1970 = vmatprep.subr.mxu0 0.0
    %1971 = vmatpush1.msra.mxu0 %v972
    %1972 = vmatprep.subr.mxu0 0.0
    %1973 = vmatpush1.msra.mxu0 %v973
    %1974 = vmatprep.subr.mxu0 0.0
    %1975 = vmatpush1.msra.mxu0 %v974
    %1976 = vmatprep.subr.mxu0 0.0
    %1977 = vmatpush1.msra.mxu0 0.0
    %1978 = vmatprep.subr.mxu0 0.0
    %1979 = vmatpush1.msra.mxu0 0.0
    %1980 = vmatprep.subr.mxu0 0.0
    %1981 = vmatpush1.msra.mxu0 0.0
    %1982 = vmatprep.subr.mxu0 0.0
    %1983 = vmatpush1.msra.mxu0 0.0
    %1984 = vmatprep.subr.mxu0 0.0
    %1985 = vmatpush1.msra.mxu0 0.0
    %1986 = vmatprep.subr.mxu0 0.0
    %1987 = vmatpush1.msra.mxu0 0.0
    %1988 = vmatprep.subr.mxu0 0.0
    %1989 = vmatpush1.msra.mxu0 0.0
    %1990 = vmatprep.subr.mxu0 0.0
    %1991 = vmatpush1.msra.mxu0 0.0
    %1992 = vmatprep.subr.mxu0 0.0
    %1993 = vmatpush1.msra.mxu0 0.0
    %1994 = vmatprep.subr.mxu0 0.0
    %1995 = vmatpush1.msra.mxu0 0.0
    %1996 = vmatprep.subr.mxu0 0.0
    %1997 = vmatpush1.msra.mxu0 0.0
    %1998 = vmatprep.subr.mxu0 0.0
    %1999 = vmatpush1.msra.mxu0 0.0
    %2000 = vmatprep.subr.mxu0 0.0
    %2001 = vmatpush1.msra.mxu0 0.0
    %2002 = vmatprep.subr.mxu0 0.0
    %2003 = vmatpush1.msra.mxu0 0.0
    %2004 = vmatprep.subr.mxu0 0.0
    %2005 = vmatpush1.msra.mxu0 0.0
    %2006 = vmatprep.subr.mxu0 0.0
    %2007 = vmatpush1.msra.mxu0 0.0
    %2008 = vmatprep.subr.mxu0 0.0
    %2009 = vmatpush1.msra.mxu0 0.0
    %2010 = vmatprep.subr.mxu0 0.0
    %2011 = vmatpush1.msra.mxu0 0.0
    %2012 = vmatprep.subr.mxu0 0.0
    %2013 = vmatpush1.msra.mxu0 0.0
    %2014 = vmatprep.subr.mxu0 0.0
    %2015 = vmatpush1.msra.mxu0 0.0
    %2016 = vmatprep.subr.mxu0 0.0
    %2017 = vmatpush1.msra.mxu0 0.0
    %2018 = vmatprep.subr.mxu0 0.0
    %2019 = vmatpush1.msra.mxu0 0.0
    %2020 = vmatprep.subr.mxu0 0.0
    %2021 = vmatpush1.msra.mxu0 0.0
    %2022 = vmatprep.subr.mxu0 0.0
    %2023 = vmatpush1.msra.mxu0 0.0
    %2024 = vmatprep.subr.mxu0 0.0
    %2025 = vmatpush1.msra.mxu0 0.0
    %2026 = vmatprep.subr.mxu0 0.0
    %2027 = vmatpush1.msra.mxu0 0.0
    %2028 = vmatprep.subr.mxu0 0.0
    %2029 = vmatpush1.msra.mxu0 0.0
    %2030 = vmatprep.subr.mxu0 0.0
    %2031 = vmatpush1.msra.mxu0 0.0
    %2032 = vmatprep.mubr.f32.mxu0 0.0
    %2033 = vmatmul.mubr.f32.gmra.mrb[0].mxu0 %v1966
    %v2034 = vpop.f32.mrb[0].mxu0
    %v2035 = vadd.f32 0.0, %v2034
    %v2036 = vpop.f32.mrb[0].mxu0
    %2037 = vdwg.mxu0
    %2038 = vmatprep.subr.mxu0 0.0
    %2039 = vmatpush1.msra.mxu0 %v976
    %2040 = vmatprep.subr.mxu0 0.0
    %2041 = vmatpush1.msra.mxu0 %v977
    %2042 = vmatprep.subr.mxu0 0.0
    %2043 = vmatpush1.msra.mxu0 %v978
    %2044 = vmatprep.subr.mxu0 0.0
    %2045 = vmatpush1.msra.mxu0 %v979
    %2046 = vmatprep.subr.mxu0 0.0
    %2047 = vmatpush1.msra.mxu0 0.0
    %2048 = vmatprep.subr.mxu0 0.0
    %2049 = vmatpush1.msra.mxu0 0.0
    %2050 = vmatprep.subr.mxu0 0.0
    %2051 = vmatpush1.msra.mxu0 0.0
    %2052 = vmatprep.subr.mxu0 0.0
    %2053 = vmatpush1.msra.mxu0 0.0
    %2054 = vmatprep.subr.mxu0 0.0
    %2055 = vmatpush1.msra.mxu0 0.0
    %2056 = vmatprep.subr.mxu0 0.0
    %2057 = vmatpush1.msra.mxu0 0.0
    %2058 = vmatprep.subr.mxu0 0.0
    %2059 = vmatpush1.msra.mxu0 0.0
    %2060 = vmatprep.subr.mxu0 0.0
    %2061 = vmatpush1.msra.mxu0 0.0
    %2062 = vmatprep.subr.mxu0 0.0
    %2063 = vmatpush1.msra.mxu0 0.0
    %2064 = vmatprep.subr.mxu0 0.0
    %2065 = vmatpush1.msra.mxu0 0.0
    %2066 = vmatprep.subr.mxu0 0.0
    %2067 = vmatpush1.msra.mxu0 0.0
    %2068 = vmatprep.subr.mxu0 0.0
    %2069 = vmatpush1.msra.mxu0 0.0
    %2070 = vmatprep.subr.mxu0 0.0
    %2071 = vmatpush1.msra.mxu0 0.0
    %2072 = vmatprep.subr.mxu0 0.0
    %2073 = vmatpush1.msra.mxu0 0.0
    %2074 = vmatprep.subr.mxu0 0.0
    %2075 = vmatpush1.msra.mxu0 0.0
    %2076 = vmatprep.subr.mxu0 0.0
    %2077 = vmatpush1.msra.mxu0 0.0
    %2078 = vmatprep.subr.mxu0 0.0
    %2079 = vmatpush1.msra.mxu0 0.0
    %2080 = vmatprep.subr.mxu0 0.0
    %2081 = vmatpush1.msra.mxu0 0.0
    %2082 = vmatprep.subr.mxu0 0.0
    %2083 = vmatpush1.msra.mxu0 0.0
    %2084 = vmatprep.subr.mxu0 0.0
    %2085 = vmatpush1.msra.mxu0 0.0
    %2086 = vmatprep.subr.mxu0 0.0
    %2087 = vmatpush1.msra.mxu0 0.0
    %2088 = vmatprep.subr.mxu0 0.0
    %2089 = vmatpush1.msra.mxu0 0.0
    %2090 = vmatprep.subr.mxu0 0.0
    %2091 = vmatpush1.msra.mxu0 0.0
    %2092 = vmatprep.subr.mxu0 0.0
    %2093 = vmatpush1.msra.mxu0 0.0
    %2094 = vmatprep.subr.mxu0 0.0
    %2095 = vmatpush1.msra.mxu0 0.0
    %2096 = vmatprep.subr.mxu0 0.0
    %2097 = vmatpush1.msra.mxu0 0.0
    %2098 = vmatprep.subr.mxu0 0.0
    %2099 = vmatpush1.msra.mxu0 0.0
    %2100 = vmatprep.subr.mxu0 0.0
    %2101 = vmatpush1.msra.mxu0 0.0
    %2102 = vmatprep.mubr.f32.mxu0 0.0
    %2103 = vmatmul.mubr.f32.gmra.mrb[0].mxu0 %v1966
    %v2104 = vpop.f32.mrb[0].mxu0
    %v2105 = vadd.f32 0.0, %v2104
    %v2106 = vpop.f32.mrb[0].mxu0
    %2107 = vdwg.mxu0
    %2108 = vmatprep.subr.mxu0 0.0
    %2109 = vmatpush1.msra.mxu0 %v981
    %2110 = vmatprep.subr.mxu0 0.0
    %2111 = vmatpush1.msra.mxu0 %v982
    %2112 = vmatprep.subr.mxu0 0.0
    %2113 = vmatpush1.msra.mxu0 %v983
    %2114 = vmatprep.subr.mxu0 0.0
    %2115 = vmatpush1.msra.mxu0 %v984
    %2116 = vmatprep.subr.mxu0 0.0
    %2117 = vmatpush1.msra.mxu0 0.0
    %2118 = vmatprep.subr.mxu0 0.0
    %2119 = vmatpush1.msra.mxu0 0.0
    %2120 = vmatprep.subr.mxu0 0.0
    %2121 = vmatpush1.msra.mxu0 0.0
    %2122 = vmatprep.subr.mxu0 0.0
    %2123 = vmatpush1.msra.mxu0 0.0
    %2124 = vmatprep.subr.mxu0 0.0
    %2125 = vmatpush1.msra.mxu0 0.0
    %2126 = vmatprep.subr.mxu0 0.0
    %2127 = vmatpush1.msra.mxu0 0.0
    %2128 = vmatprep.subr.mxu0 0.0
    %2129 = vmatpush1.msra.mxu0 0.0
    %2130 = vmatprep.subr.mxu0 0.0
    %2131 = vmatpush1.msra.mxu0 0.0
    %2132 = vmatprep.subr.mxu0 0.0
    %2133 = vmatpush1.msra.mxu0 0.0
    %2134 = vmatprep.subr.mxu0 0.0
    %2135 = vmatpush1.msra.mxu0 0.0
    %2136 = vmatprep.subr.mxu0 0.0
    %2137 = vmatpush1.msra.mxu0 0.0
    %2138 = vmatprep.subr.mxu0 0.0
    %2139 = vmatpush1.msra.mxu0 0.0
    %2140 = vmatprep.subr.mxu0 0.0
    %2141 = vmatpush1.msra.mxu0 0.0
    %2142 = vmatprep.subr.mxu0 0.0
    %2143 = vmatpush1.msra.mxu0 0.0
    %2144 = vmatprep.subr.mxu0 0.0
    %2145 = vmatpush1.msra.mxu0 0.0
    %2146 = vmatprep.subr.mxu0 0.0
    %2147 = vmatpush1.msra.mxu0 0.0
    %2148 = vmatprep.subr.mxu0 0.0
    %2149 = vmatpush1.msra.mxu0 0.0
    %2150 = vmatprep.subr.mxu0 0.0
    %2151 = vmatpush1.msra.mxu0 0.0
    %2152 = vmatprep.subr.mxu0 0.0
    %2153 = vmatpush1.msra.mxu0 0.0
    %2154 = vmatprep.subr.mxu0 0.0
    %2155 = vmatpush1.msra.mxu0 0.0
    %2156 = vmatprep.subr.mxu0 0.0
    %2157 = vmatpush1.msra.mxu0 0.0
    %2158 = vmatprep.subr.mxu0 0.0
    %2159 = vmatpush1.msra.mxu0 0.0
    %2160 = vmatprep.subr.mxu0 0.0
    %2161 = vmatpush1.msra.mxu0 0.0
    %2162 = vmatprep.subr.mxu0 0.0
    %2163 = vmatpush1.msra.mxu0 0.0
    %2164 = vmatprep.subr.mxu0 0.0
    %2165 = vmatpush1.msra.mxu0 0.0
    %2166 = vmatprep.subr.mxu0 0.0
    %2167 = vmatpush1.msra.mxu0 0.0
    %2168 = vmatprep.subr.mxu0 0.0
    %2169 = vmatpush1.msra.mxu0 0.0
    %2170 = vmatprep.subr.mxu0 0.0
    %2171 = vmatpush1.msra.mxu0 0.0
    %2172 = vmatprep.mubr.f32.mxu0 0.0
    %2173 = vmatmul.mubr.f32.gmra.mrb[0].mxu0 %v1966
    %v2174 = vpop.f32.mrb[0].mxu0
    %v2175 = vadd.f32 %v1134, %v2174
    %v2176 = vpop.f32.mrb[0].mxu0
    %2177 = vdwg.mxu0
    %v2178 = vadd.f32 %v792, %v2035
    %v2179 = vxor.u32 %v2178, 2147483648
    %v2180 = vmul.f32 %v2179, 1.442695
    %v2181 = vpow.pop %v2180
    %v2182 = vadd.f32 %v2181, 1.0
    %v2183 = vrcp.pop %v2182
    %v2184 = vmul.f32 1.0, %v2183
    %v2185 = vadd.f32 %v880, %v2105
    %v2186 = vxor.u32 %v2185, 2147483648
    %v2187 = vmul.f32 %v2186, 1.442695
    %v2188 = vpow.pop %v2187
    %v2189 = vadd.f32 %v2188, 1.0
    %v2190 = vrcp.pop %v2189
    %v2191 = vmul.f32 1.0, %v2190
    %v2192 = vmul.f32 %v2184, %v2175
    %v2193 = vadd.f32 %v968, %v2192
    %v2194 = vtanh.pop %v2193
    %v2195 = vsub.f32 1.0, %v2191
    %v2196 = vmul.f32 %v2195, %v2194
    %v2198 = vmul.f32 %v2191, %v1965
    %v2199 = vadd.f32 %v2196, %v2198
    %v2201 = vsel %vm713, %v2199, 0
    %2203 = vmatprep.subr.mxu0 0.0
    %2204 = vmatpush1.msra.mxu0 %v971
    %2205 = vmatprep.subr.mxu0 0.0
    %2206 = vmatpush1.msra.mxu0 %v972
    %2207 = vmatprep.subr.mxu0 0.0
    %2208 = vmatpush1.msra.mxu0 %v973
    %2209 = vmatprep.subr.mxu0 0.0
    %2210 = vmatpush1.msra.mxu0 %v974
    %2211 = vmatprep.subr.mxu0 0.0
    %2212 = vmatpush1.msra.mxu0 0.0
    %2213 = vmatprep.subr.mxu0 0.0
    %2214 = vmatpush1.msra.mxu0 0.0
    %2215 = vmatprep.subr.mxu0 0.0
    %2216 = vmatpush1.msra.mxu0 0.0
    %2217 = vmatprep.subr.mxu0 0.0
    %2218 = vmatpush1.msra.mxu0 0.0
    %2219 = vmatprep.subr.mxu0 0.0
    %2220 = vmatpush1.msra.mxu0 0.0
    %2221 = vmatprep.subr.mxu0 0.0
    %2222 = vmatpush1.msra.mxu0 0.0
    %2223 = vmatprep.subr.mxu0 0.0
    %2224 = vmatpush1.msra.mxu0 0.0
    %2225 = vmatprep.subr.mxu0 0.0
    %2226 = vmatpush1.msra.mxu0 0.0
    %2227 = vmatprep.subr.mxu0 0.0
    %2228 = vmatpush1.msra.mxu0 0.0
    %2229 = vmatprep.subr.mxu0 0.0
    %2230 = vmatpush1.msra.mxu0 0.0
    %2231 = vmatprep.subr.mxu0 0.0
    %2232 = vmatpush1.msra.mxu0 0.0
    %2233 = vmatprep.subr.mxu0 0.0
    %2234 = vmatpush1.msra.mxu0 0.0
    %2235 = vmatprep.subr.mxu0 0.0
    %2236 = vmatpush1.msra.mxu0 0.0
    %2237 = vmatprep.subr.mxu0 0.0
    %2238 = vmatpush1.msra.mxu0 0.0
    %2239 = vmatprep.subr.mxu0 0.0
    %2240 = vmatpush1.msra.mxu0 0.0
    %2241 = vmatprep.subr.mxu0 0.0
    %2242 = vmatpush1.msra.mxu0 0.0
    %2243 = vmatprep.subr.mxu0 0.0
    %2244 = vmatpush1.msra.mxu0 0.0
    %2245 = vmatprep.subr.mxu0 0.0
    %2246 = vmatpush1.msra.mxu0 0.0
    %2247 = vmatprep.subr.mxu0 0.0
    %2248 = vmatpush1.msra.mxu0 0.0
    %2249 = vmatprep.subr.mxu0 0.0
    %2250 = vmatpush1.msra.mxu0 0.0
    %2251 = vmatprep.subr.mxu0 0.0
    %2252 = vmatpush1.msra.mxu0 0.0
    %2253 = vmatprep.subr.mxu0 0.0
    %2254 = vmatpush1.msra.mxu0 0.0
    %2255 = vmatprep.subr.mxu0 0.0
    %2256 = vmatpush1.msra.mxu0 0.0
    %2257 = vmatprep.subr.mxu0 0.0
    %2258 = vmatpush1.msra.mxu0 0.0
    %2259 = vmatprep.subr.mxu0 0.0
    %2260 = vmatpush1.msra.mxu0 0.0
    %2261 = vmatprep.subr.mxu0 0.0
    %2262 = vmatpush1.msra.mxu0 0.0
    %2263 = vmatprep.subr.mxu0 0.0
    %2264 = vmatpush1.msra.mxu0 0.0
    %2265 = vmatprep.subr.mxu0 0.0
    %2266 = vmatpush1.msra.mxu0 0.0
    %2267 = vmatprep.mubr.f32.mxu0 0.0
    %2268 = vmatmul.mubr.f32.gmra.mrb[0].mxu0 %v2201
    %v2269 = vpop.f32.mrb[0].mxu0
    %v2270 = vadd.f32 0.0, %v2269
    %v2271 = vpop.f32.mrb[0].mxu0
    %2272 = vdwg.mxu0
    %2273 = vmatprep.subr.mxu0 0.0
    %2274 = vmatpush1.msra.mxu0 %v976
    %2275 = vmatprep.subr.mxu0 0.0
    %2276 = vmatpush1.msra.mxu0 %v977
    %2277 = vmatprep.subr.mxu0 0.0
    %2278 = vmatpush1.msra.mxu0 %v978
    %2279 = vmatprep.subr.mxu0 0.0
    %2280 = vmatpush1.msra.mxu0 %v979
    %2281 = vmatprep.subr.mxu0 0.0
    %2282 = vmatpush1.msra.mxu0 0.0
    %2283 = vmatprep.subr.mxu0 0.0
    %2284 = vmatpush1.msra.mxu0 0.0
    %2285 = vmatprep.subr.mxu0 0.0
    %2286 = vmatpush1.msra.mxu0 0.0
    %2287 = vmatprep.subr.mxu0 0.0
    %2288 = vmatpush1.msra.mxu0 0.0
    %2289 = vmatprep.subr.mxu0 0.0
    %2290 = vmatpush1.msra.mxu0 0.0
    %2291 = vmatprep.subr.mxu0 0.0
    %2292 = vmatpush1.msra.mxu0 0.0
    %2293 = vmatprep.subr.mxu0 0.0
    %2294 = vmatpush1.msra.mxu0 0.0
    %2295 = vmatprep.subr.mxu0 0.0
    %2296 = vmatpush1.msra.mxu0 0.0
    %2297 = vmatprep.subr.mxu0 0.0
    %2298 = vmatpush1.msra.mxu0 0.0
    %2299 = vmatprep.subr.mxu0 0.0
    %2300 = vmatpush1.msra.mxu0 0.0
    %2301 = vmatprep.subr.mxu0 0.0
    %2302 = vmatpush1.msra.mxu0 0.0
    %2303 = vmatprep.subr.mxu0 0.0
    %2304 = vmatpush1.msra.mxu0 0.0
    %2305 = vmatprep.subr.mxu0 0.0
    %2306 = vmatpush1.msra.mxu0 0.0
    %2307 = vmatprep.subr.mxu0 0.0
    %2308 = vmatpush1.msra.mxu0 0.0
    %2309 = vmatprep.subr.mxu0 0.0
    %2310 = vmatpush1.msra.mxu0 0.0
    %2311 = vmatprep.subr.mxu0 0.0
    %2312 = vmatpush1.msra.mxu0 0.0
    %2313 = vmatprep.subr.mxu0 0.0
    %2314 = vmatpush1.msra.mxu0 0.0
    %2315 = vmatprep.subr.mxu0 0.0
    %2316 = vmatpush1.msra.mxu0 0.0
    %2317 = vmatprep.subr.mxu0 0.0
    %2318 = vmatpush1.msra.mxu0 0.0
    %2319 = vmatprep.subr.mxu0 0.0
    %2320 = vmatpush1.msra.mxu0 0.0
    %2321 = vmatprep.subr.mxu0 0.0
    %2322 = vmatpush1.msra.mxu0 0.0
    %2323 = vmatprep.subr.mxu0 0.0
    %2324 = vmatpush1.msra.mxu0 0.0
    %2325 = vmatprep.subr.mxu0 0.0
    %2326 = vmatpush1.msra.mxu0 0.0
    %2327 = vmatprep.subr.mxu0 0.0
    %2328 = vmatpush1.msra.mxu0 0.0
    %2329 = vmatprep.subr.mxu0 0.0
    %2330 = vmatpush1.msra.mxu0 0.0
    %2331 = vmatprep.subr.mxu0 0.0
    %2332 = vmatpush1.msra.mxu0 0.0
    %2333 = vmatprep.subr.mxu0 0.0
    %2334 = vmatpush1.msra.mxu0 0.0
    %2335 = vmatprep.subr.mxu0 0.0
    %2336 = vmatpush1.msra.mxu0 0.0
    %2337 = vmatprep.mubr.f32.mxu0 0.0
    %2338 = vmatmul.mubr.f32.gmra.mrb[0].mxu0 %v2201
    %v2339 = vpop.f32.mrb[0].mxu0
    %v2340 = vadd.f32 0.0, %v2339
    %v2341 = vpop.f32.mrb[0].mxu0
    %2342 = vdwg.mxu0
    %2343 = vmatprep.subr.mxu0 0.0
    %2344 = vmatpush1.msra.mxu0 %v981
    %2345 = vmatprep.subr.mxu0 0.0
    %2346 = vmatpush1.msra.mxu0 %v982
    %2347 = vmatprep.subr.mxu0 0.0
    %2348 = vmatpush1.msra.mxu0 %v983
    %2349 = vmatprep.subr.mxu0 0.0
    %2350 = vmatpush1.msra.mxu0 %v984
    %2351 = vmatprep.subr.mxu0 0.0
    %2352 = vmatpush1.msra.mxu0 0.0
    %2353 = vmatprep.subr.mxu0 0.0
    %2354 = vmatpush1.msra.mxu0 0.0
    %2355 = vmatprep.subr.mxu0 0.0
    %2356 = vmatpush1.msra.mxu0 0.0
    %2357 = vmatprep.subr.mxu0 0.0
    %2358 = vmatpush1.msra.mxu0 0.0
    %2359 = vmatprep.subr.mxu0 0.0
    %2360 = vmatpush1.msra.mxu0 0.0
    %2361 = vmatprep.subr.mxu0 0.0
    %2362 = vmatpush1.msra.mxu0 0.0
    %2363 = vmatprep.subr.mxu0 0.0
    %2364 = vmatpush1.msra.mxu0 0.0
    %2365 = vmatprep.subr.mxu0 0.0
    %2366 = vmatpush1.msra.mxu0 0.0
    %2367 = vmatprep.subr.mxu0 0.0
    %2368 = vmatpush1.msra.mxu0 0.0
    %2369 = vmatprep.subr.mxu0 0.0
    %2370 = vmatpush1.msra.mxu0 0.0
    %2371 = vmatprep.subr.mxu0 0.0
    %2372 = vmatpush1.msra.mxu0 0.0
    %2373 = vmatprep.subr.mxu0 0.0
    %2374 = vmatpush1.msra.mxu0 0.0
    %2375 = vmatprep.subr.mxu0 0.0
    %2376 = vmatpush1.msra.mxu0 0.0
    %2377 = vmatprep.subr.mxu0 0.0
    %2378 = vmatpush1.msra.mxu0 0.0
    %2379 = vmatprep.subr.mxu0 0.0
    %2380 = vmatpush1.msra.mxu0 0.0
    %2381 = vmatprep.subr.mxu0 0.0
    %2382 = vmatpush1.msra.mxu0 0.0
    %2383 = vmatprep.subr.mxu0 0.0
    %2384 = vmatpush1.msra.mxu0 0.0
    %2385 = vmatprep.subr.mxu0 0.0
    %2386 = vmatpush1.msra.mxu0 0.0
    %2387 = vmatprep.subr.mxu0 0.0
    %2388 = vmatpush1.msra.mxu0 0.0
    %2389 = vmatprep.subr.mxu0 0.0
    %2390 = vmatpush1.msra.mxu0 0.0
    %2391 = vmatprep.subr.mxu0 0.0
    %2392 = vmatpush1.msra.mxu0 0.0
    %2393 = vmatprep.subr.mxu0 0.0
    %2394 = vmatpush1.msra.mxu0 0.0
    %2395 = vmatprep.subr.mxu0 0.0
    %2396 = vmatpush1.msra.mxu0 0.0
    %2397 = vmatprep.subr.mxu0 0.0
    %2398 = vmatpush1.msra.mxu0 0.0
    %2399 = vmatprep.subr.mxu0 0.0
    %2400 = vmatpush1.msra.mxu0 0.0
    %2401 = vmatprep.subr.mxu0 0.0
    %2402 = vmatpush1.msra.mxu0 0.0
    %2403 = vmatprep.subr.mxu0 0.0
    %2404 = vmatpush1.msra.mxu0 0.0
    %2405 = vmatprep.subr.mxu0 0.0
    %2406 = vmatpush1.msra.mxu0 0.0
    %2407 = vmatprep.mubr.f32.mxu0 0.0
    %2408 = vmatmul.mubr.f32.gmra.mrb[0].mxu0 %v2201
    %v2409 = vpop.f32.mrb[0].mxu0
    %v2410 = vadd.f32 %v1134, %v2409
    %v2411 = vpop.f32.mrb[0].mxu0
    %2412 = vdwg.mxu0
    %v2414 = vrot.slane %v2270, 6
    %v2416 = vadd.f32 %v792, %v2414
    %v2417 = vxor.u32 %v2416, 2147483648
    %v2418 = vmul.f32 %v2417, 1.442695
    %v2419 = vpow.pop %v2418
    %v2420 = vadd.f32 %v2419, 1.0
    %v2421 = vrcp.pop %v2420
    %v2422 = vmul.f32 1.0, %v2421
    %v2424 = vrot.slane %v2340, 6
    %v2426 = vadd.f32 %v880, %v2424
    %v2427 = vxor.u32 %v2426, 2147483648
    %v2428 = vmul.f32 %v2427, 1.442695
    %v2429 = vpow.pop %v2428
    %v2430 = vadd.f32 %v2429, 1.0
    %v2431 = vrcp.pop %v2430
    %v2432 = vmul.f32 1.0, %v2431
    %v2434 = vrot.slane %v2410, 6
    %v2436 = vmul.f32 %v2422, %v2434
    %v2437 = vadd.f32 %v968, %v2436
    %v2438 = vtanh.pop %v2437
    %v2439 = vsub.f32 1.0, %v2432
    %v2440 = vmul.f32 %v2439, %v2438
    %v2441 = vrot.slane %v2199, 6
    %v2443 = vmul.f32 %v2432, %v2441
    %v2444 = vadd.f32 %v2440, %v2443
    %v2446 = vrot.slane %v2444, 2
    %v2447 = vsel %vm713, %v2446, 0
    %2449 = vmatprep.subr.mxu0 0.0
    %2450 = vmatpush1.msra.mxu0 %v971
    %2451 = vmatprep.subr.mxu0 0.0
    %2452 = vmatpush1.msra.mxu0 %v972
    %2453 = vmatprep.subr.mxu0 0.0
    %2454 = vmatpush1.msra.mxu0 %v973
    %2455 = vmatprep.subr.mxu0 0.0
    %2456 = vmatpush1.msra.mxu0 %v974
    %2457 = vmatprep.subr.mxu0 0.0
    %2458 = vmatpush1.msra.mxu0 0.0
    %2459 = vmatprep.subr.mxu0 0.0
    %2460 = vmatpush1.msra.mxu0 0.0
    %2461 = vmatprep.subr.mxu0 0.0
    %2462 = vmatpush1.msra.mxu0 0.0
    %2463 = vmatprep.subr.mxu0 0.0
    %2464 = vmatpush1.msra.mxu0 0.0
    %2465 = vmatprep.subr.mxu0 0.0
    %2466 = vmatpush1.msra.mxu0 0.0
    %2467 = vmatprep.subr.mxu0 0.0
    %2468 = vmatpush1.msra.mxu0 0.0
    %2469 = vmatprep.subr.mxu0 0.0
    %2470 = vmatpush1.msra.mxu0 0.0
    %2471 = vmatprep.subr.mxu0 0.0
    %2472 = vmatpush1.msra.mxu0 0.0
    %2473 = vmatprep.subr.mxu0 0.0
    %2474 = vmatpush1.msra.mxu0 0.0
    %2475 = vmatprep.subr.mxu0 0.0
    %2476 = vmatpush1.msra.mxu0 0.0
    %2477 = vmatprep.subr.mxu0 0.0
    %2478 = vmatpush1.msra.mxu0 0.0
    %2479 = vmatprep.subr.mxu0 0.0
    %2480 = vmatpush1.msra.mxu0 0.0
    %2481 = vmatprep.subr.mxu0 0.0
    %2482 = vmatpush1.msra.mxu0 0.0
    %2483 = vmatprep.subr.mxu0 0.0
    %2484 = vmatpush1.msra.mxu0 0.0
    %2485 = vmatprep.subr.mxu0 0.0
    %2486 = vmatpush1.msra.mxu0 0.0
    %2487 = vmatprep.subr.mxu0 0.0
    %2488 = vmatpush1.msra.mxu0 0.0
    %2489 = vmatprep.subr.mxu0 0.0
    %2490 = vmatpush1.msra.mxu0 0.0
    %2491 = vmatprep.subr.mxu0 0.0
    %2492 = vmatpush1.msra.mxu0 0.0
    %2493 = vmatprep.subr.mxu0 0.0
    %2494 = vmatpush1.msra.mxu0 0.0
    %2495 = vmatprep.subr.mxu0 0.0
    %2496 = vmatpush1.msra.mxu0 0.0
    %2497 = vmatprep.subr.mxu0 0.0
    %2498 = vmatpush1.msra.mxu0 0.0
    %2499 = vmatprep.subr.mxu0 0.0
    %2500 = vmatpush1.msra.mxu0 0.0
    %2501 = vmatprep.subr.mxu0 0.0
    %2502 = vmatpush1.msra.mxu0 0.0
    %2503 = vmatprep.subr.mxu0 0.0
    %2504 = vmatpush1.msra.mxu0 0.0
    %2505 = vmatprep.subr.mxu0 0.0
    %2506 = vmatpush1.msra.mxu0 0.0
    %2507 = vmatprep.subr.mxu0 0.0
    %2508 = vmatpush1.msra.mxu0 0.0
    %2509 = vmatprep.subr.mxu0 0.0
    %2510 = vmatpush1.msra.mxu0 0.0
    %2511 = vmatprep.subr.mxu0 0.0
    %2512 = vmatpush1.msra.mxu0 0.0
    %2513 = vmatprep.mubr.f32.mxu0 0.0
    %2514 = vmatmul.mubr.f32.gmra.mrb[0].mxu0 %v2447
    %v2515 = vpop.f32.mrb[0].mxu0
    %v2516 = vadd.f32 0.0, %v2515
    %v2517 = vpop.f32.mrb[0].mxu0
    %2518 = vdwg.mxu0
    %2519 = vmatprep.subr.mxu0 0.0
    %2520 = vmatpush1.msra.mxu0 %v976
    %2521 = vmatprep.subr.mxu0 0.0
    %2522 = vmatpush1.msra.mxu0 %v977
    %2523 = vmatprep.subr.mxu0 0.0
    %2524 = vmatpush1.msra.mxu0 %v978
    %2525 = vmatprep.subr.mxu0 0.0
    %2526 = vmatpush1.msra.mxu0 %v979
    %2527 = vmatprep.subr.mxu0 0.0
    %2528 = vmatpush1.msra.mxu0 0.0
    %2529 = vmatprep.subr.mxu0 0.0
    %2530 = vmatpush1.msra.mxu0 0.0
    %2531 = vmatprep.subr.mxu0 0.0
    %2532 = vmatpush1.msra.mxu0 0.0
    %2533 = vmatprep.subr.mxu0 0.0
    %2534 = vmatpush1.msra.mxu0 0.0
    %2535 = vmatprep.subr.mxu0 0.0
    %2536 = vmatpush1.msra.mxu0 0.0
    %2537 = vmatprep.subr.mxu0 0.0
    %2538 = vmatpush1.msra.mxu0 0.0
    %2539 = vmatprep.subr.mxu0 0.0
    %2540 = vmatpush1.msra.mxu0 0.0
    %2541 = vmatprep.subr.mxu0 0.0
    %2542 = vmatpush1.msra.mxu0 0.0
    %2543 = vmatprep.subr.mxu0 0.0
    %2544 = vmatpush1.msra.mxu0 0.0
    %2545 = vmatprep.subr.mxu0 0.0
    %2546 = vmatpush1.msra.mxu0 0.0
    %2547 = vmatprep.subr.mxu0 0.0
    %2548 = vmatpush1.msra.mxu0 0.0
    %2549 = vmatprep.subr.mxu0 0.0
    %2550 = vmatpush1.msra.mxu0 0.0
    %2551 = vmatprep.subr.mxu0 0.0
    %2552 = vmatpush1.msra.mxu0 0.0
    %2553 = vmatprep.subr.mxu0 0.0
    %2554 = vmatpush1.msra.mxu0 0.0
    %2555 = vmatprep.subr.mxu0 0.0
    %2556 = vmatpush1.msra.mxu0 0.0
    %2557 = vmatprep.subr.mxu0 0.0
    %2558 = vmatpush1.msra.mxu0 0.0
    %2559 = vmatprep.subr.mxu0 0.0
    %2560 = vmatpush1.msra.mxu0 0.0
    %2561 = vmatprep.subr.mxu0 0.0
    %2562 = vmatpush1.msra.mxu0 0.0
    %2563 = vmatprep.subr.mxu0 0.0
    %2564 = vmatpush1.msra.mxu0 0.0
    %2565 = vmatprep.subr.mxu0 0.0
    %2566 = vmatpush1.msra.mxu0 0.0
    %2567 = vmatprep.subr.mxu0 0.0
    %2568 = vmatpush1.msra.mxu0 0.0
    %2569 = vmatprep.subr.mxu0 0.0
    %2570 = vmatpush1.msra.mxu0 0.0
    %2571 = vmatprep.subr.mxu0 0.0
    %2572 = vmatpush1.msra.mxu0 0.0
    %2573 = vmatprep.subr.mxu0 0.0
    %2574 = vmatpush1.msra.mxu0 0.0
    %2575 = vmatprep.subr.mxu0 0.0
    %2576 = vmatpush1.msra.mxu0 0.0
    %2577 = vmatprep.subr.mxu0 0.0
    %2578 = vmatpush1.msra.mxu0 0.0
    %2579 = vmatprep.subr.mxu0 0.0
    %2580 = vmatpush1.msra.mxu0 0.0
    %2581 = vmatprep.subr.mxu0 0.0
    %2582 = vmatpush1.msra.mxu0 0.0
    %2583 = vmatprep.mubr.f32.mxu0 0.0
    %2584 = vmatmul.mubr.f32.gmra.mrb[0].mxu0 %v2447
    %v2585 = vpop.f32.mrb[0].mxu0
    %v2586 = vadd.f32 0.0, %v2585
    %v2587 = vpop.f32.mrb[0].mxu0
    %2588 = vdwg.mxu0
    %2589 = vmatprep.subr.mxu0 0.0
    %2590 = vmatpush1.msra.mxu0 %v981
    %2591 = vmatprep.subr.mxu0 0.0
    %2592 = vmatpush1.msra.mxu0 %v982
    %2593 = vmatprep.subr.mxu0 0.0
    %2594 = vmatpush1.msra.mxu0 %v983
    %2595 = vmatprep.subr.mxu0 0.0
    %2596 = vmatpush1.msra.mxu0 %v984
    %2597 = vmatprep.subr.mxu0 0.0
    %2598 = vmatpush1.msra.mxu0 0.0
    %2599 = vmatprep.subr.mxu0 0.0
    %2600 = vmatpush1.msra.mxu0 0.0
    %2601 = vmatprep.subr.mxu0 0.0
    %2602 = vmatpush1.msra.mxu0 0.0
    %2603 = vmatprep.subr.mxu0 0.0
    %2604 = vmatpush1.msra.mxu0 0.0
    %2605 = vmatprep.subr.mxu0 0.0
    %2606 = vmatpush1.msra.mxu0 0.0
    %2607 = vmatprep.subr.mxu0 0.0
    %2608 = vmatpush1.msra.mxu0 0.0
    %2609 = vmatprep.subr.mxu0 0.0
    %2610 = vmatpush1.msra.mxu0 0.0
    %2611 = vmatprep.subr.mxu0 0.0
    %2612 = vmatpush1.msra.mxu0 0.0
    %2613 = vmatprep.subr.mxu0 0.0
    %2614 = vmatpush1.msra.mxu0 0.0
    %2615 = vmatprep.subr.mxu0 0.0
    %2616 = vmatpush1.msra.mxu0 0.0
    %2617 = vmatprep.subr.mxu0 0.0
    %2618 = vmatpush1.msra.mxu0 0.0
    %2619 = vmatprep.subr.mxu0 0.0
    %2620 = vmatpush1.msra.mxu0 0.0
    %2621 = vmatprep.subr.mxu0 0.0
    %2622 = vmatpush1.msra.mxu0 0.0
    %2623 = vmatprep.subr.mxu0 0.0
    %2624 = vmatpush1.msra.mxu0 0.0
    %2625 = vmatprep.subr.mxu0 0.0
    %2626 = vmatpush1.msra.mxu0 0.0
    %2627 = vmatprep.subr.mxu0 0.0
    %2628 = vmatpush1.msra.mxu0 0.0
    %2629 = vmatprep.subr.mxu0 0.0
    %2630 = vmatpush1.msra.mxu0 0.0
    %2631 = vmatprep.subr.mxu0 0.0
    %2632 = vmatpush1.msra.mxu0 0.0
    %2633 = vmatprep.subr.mxu0 0.0
    %2634 = vmatpush1.msra.mxu0 0.0
    %2635 = vmatprep.subr.mxu0 0.0
    %2636 = vmatpush1.msra.mxu0 0.0
    %2637 = vmatprep.subr.mxu0 0.0
    %2638 = vmatpush1.msra.mxu0 0.0
    %2639 = vmatprep.subr.mxu0 0.0
    %2640 = vmatpush1.msra.mxu0 0.0
    %2641 = vmatprep.subr.mxu0 0.0
    %2642 = vmatpush1.msra.mxu0 0.0
    %2643 = vmatprep.subr.mxu0 0.0
    %2644 = vmatpush1.msra.mxu0 0.0
    %2645 = vmatprep.subr.mxu0 0.0
    %2646 = vmatpush1.msra.mxu0 0.0
    %2647 = vmatprep.subr.mxu0 0.0
    %2648 = vmatpush1.msra.mxu0 0.0
    %2649 = vmatprep.subr.mxu0 0.0
    %2650 = vmatpush1.msra.mxu0 0.0
    %2651 = vmatprep.subr.mxu0 0.0
    %2652 = vmatpush1.msra.mxu0 0.0
    %2653 = vmatprep.mubr.f32.mxu0 0.0
    %2654 = vmatmul.mubr.f32.gmra.mrb[0].mxu0 %v2447
    %v2655 = vpop.f32.mrb[0].mxu0
    %v2656 = vadd.f32 %v1134, %v2655
    %v2657 = vpop.f32.mrb[0].mxu0
    %2658 = vdwg.mxu0
    %v2660 = vrot.slane %v2516, 4
    %v2662 = vadd.f32 %v792, %v2660
    %v2663 = vxor.u32 %v2662, 2147483648
    %v2664 = vmul.f32 %v2663, 1.442695
    %v2665 = vpow.pop %v2664
    %v2666 = vadd.f32 %v2665, 1.0
    %v2667 = vrcp.pop %v2666
    %v2668 = vmul.f32 1.0, %v2667
    %v2670 = vrot.slane %v2586, 4
    %v2672 = vadd.f32 %v880, %v2670
    %v2673 = vxor.u32 %v2672, 2147483648
    %v2674 = vmul.f32 %v2673, 1.442695
    %v2675 = vpow.pop %v2674
    %v2676 = vadd.f32 %v2675, 1.0
    %v2677 = vrcp.pop %v2676
    %v2678 = vmul.f32 1.0, %v2677
    %v2680 = vrot.slane %v2656, 4
    %v2682 = vmul.f32 %v2668, %v2680
    %v2683 = vadd.f32 %v968, %v2682
    %v2684 = vtanh.pop %v2683
    %v2685 = vsub.f32 1.0, %v2678
    %v2686 = vmul.f32 %v2685, %v2684
    %v2687 = vrot.slane %v2444, 6
    %v2689 = vmul.f32 %v2678, %v2687
    %v2690 = vadd.f32 %v2686, %v2689
    %v2692 = vrot.slane %v2690, 4
    %v2693 = vsel %vm713, %v2692, 0
    %2695 = vmatprep.subr.mxu0 0.0
    %2696 = vmatpush1.msra.mxu0 %v971
    %2697 = vmatprep.subr.mxu0 0.0
    %2698 = vmatpush1.msra.mxu0 %v972
    %2699 = vmatprep.subr.mxu0 0.0
    %2700 = vmatpush1.msra.mxu0 %v973
    %2701 = vmatprep.subr.mxu0 0.0
    %2702 = vmatpush1.msra.mxu0 %v974
    %2703 = vmatprep.subr.mxu0 0.0
    %2704 = vmatpush1.msra.mxu0 0.0
    %2705 = vmatprep.subr.mxu0 0.0
    %2706 = vmatpush1.msra.mxu0 0.0
    %2707 = vmatprep.subr.mxu0 0.0
    %2708 = vmatpush1.msra.mxu0 0.0
    %2709 = vmatprep.subr.mxu0 0.0
    %2710 = vmatpush1.msra.mxu0 0.0
    %2711 = vmatprep.subr.mxu0 0.0
    %2712 = vmatpush1.msra.mxu0 0.0
    %2713 = vmatprep.subr.mxu0 0.0
    %2714 = vmatpush1.msra.mxu0 0.0
    %2715 = vmatprep.subr.mxu0 0.0
    %2716 = vmatpush1.msra.mxu0 0.0
    %2717 = vmatprep.subr.mxu0 0.0
    %2718 = vmatpush1.msra.mxu0 0.0
    %2719 = vmatprep.subr.mxu0 0.0
    %2720 = vmatpush1.msra.mxu0 0.0
    %2721 = vmatprep.subr.mxu0 0.0
    %2722 = vmatpush1.msra.mxu0 0.0
    %2723 = vmatprep.subr.mxu0 0.0
    %2724 = vmatpush1.msra.mxu0 0.0
    %2725 = vmatprep.subr.mxu0 0.0
    %2726 = vmatpush1.msra.mxu0 0.0
    %2727 = vmatprep.subr.mxu0 0.0
    %2728 = vmatpush1.msra.mxu0 0.0
    %2729 = vmatprep.subr.mxu0 0.0
    %2730 = vmatpush1.msra.mxu0 0.0
    %2731 = vmatprep.subr.mxu0 0.0
    %2732 = vmatpush1.msra.mxu0 0.0
    %2733 = vmatprep.subr.mxu0 0.0
    %2734 = vmatpush1.msra.mxu0 0.0
    %2735 = vmatprep.subr.mxu0 0.0
    %2736 = vmatpush1.msra.mxu0 0.0
    %2737 = vmatprep.subr.mxu0 0.0
    %2738 = vmatpush1.msra.mxu0 0.0
    %2739 = vmatprep.subr.mxu0 0.0
    %2740 = vmatpush1.msra.mxu0 0.0
    %2741 = vmatprep.subr.mxu0 0.0
    %2742 = vmatpush1.msra.mxu0 0.0
    %2743 = vmatprep.subr.mxu0 0.0
    %2744 = vmatpush1.msra.mxu0 0.0
    %2745 = vmatprep.subr.mxu0 0.0
    %2746 = vmatpush1.msra.mxu0 0.0
    %2747 = vmatprep.subr.mxu0 0.0
    %2748 = vmatpush1.msra.mxu0 0.0
    %2749 = vmatprep.subr.mxu0 0.0
    %2750 = vmatpush1.msra.mxu0 0.0
    %2751 = vmatprep.subr.mxu0 0.0
    %2752 = vmatpush1.msra.mxu0 0.0
    %2753 = vmatprep.subr.mxu0 0.0
    %2754 = vmatpush1.msra.mxu0 0.0
    %2755 = vmatprep.subr.mxu0 0.0
    %2756 = vmatpush1.msra.mxu0 0.0
    %2757 = vmatprep.subr.mxu0 0.0
    %2758 = vmatpush1.msra.mxu0 0.0
    %2759 = vmatprep.mubr.f32.mxu0 0.0
    %2760 = vmatmul.mubr.f32.gmra.mrb[0].mxu0 %v2693
    %v2761 = vpop.f32.mrb[0].mxu0
    %v2762 = vadd.f32 0.0, %v2761
    %v2763 = vpop.f32.mrb[0].mxu0
    %2764 = vdwg.mxu0
    %2765 = vmatprep.subr.mxu0 0.0
    %2766 = vmatpush1.msra.mxu0 %v976
    %2767 = vmatprep.subr.mxu0 0.0
    %2768 = vmatpush1.msra.mxu0 %v977
    %2769 = vmatprep.subr.mxu0 0.0
    %2770 = vmatpush1.msra.mxu0 %v978
    %2771 = vmatprep.subr.mxu0 0.0
    %2772 = vmatpush1.msra.mxu0 %v979
    %2773 = vmatprep.subr.mxu0 0.0
    %2774 = vmatpush1.msra.mxu0 0.0
    %2775 = vmatprep.subr.mxu0 0.0
    %2776 = vmatpush1.msra.mxu0 0.0
    %2777 = vmatprep.subr.mxu0 0.0
    %2778 = vmatpush1.msra.mxu0 0.0
    %2779 = vmatprep.subr.mxu0 0.0
    %2780 = vmatpush1.msra.mxu0 0.0
    %2781 = vmatprep.subr.mxu0 0.0
    %2782 = vmatpush1.msra.mxu0 0.0
    %2783 = vmatprep.subr.mxu0 0.0
    %2784 = vmatpush1.msra.mxu0 0.0
    %2785 = vmatprep.subr.mxu0 0.0
    %2786 = vmatpush1.msra.mxu0 0.0
    %2787 = vmatprep.subr.mxu0 0.0
    %2788 = vmatpush1.msra.mxu0 0.0
    %2789 = vmatprep.subr.mxu0 0.0
    %2790 = vmatpush1.msra.mxu0 0.0
    %2791 = vmatprep.subr.mxu0 0.0
    %2792 = vmatpush1.msra.mxu0 0.0
    %2793 = vmatprep.subr.mxu0 0.0
    %2794 = vmatpush1.msra.mxu0 0.0
    %2795 = vmatprep.subr.mxu0 0.0
    %2796 = vmatpush1.msra.mxu0 0.0
    %2797 = vmatprep.subr.mxu0 0.0
    %2798 = vmatpush1.msra.mxu0 0.0
    %2799 = vmatprep.subr.mxu0 0.0
    %2800 = vmatpush1.msra.mxu0 0.0
    %2801 = vmatprep.subr.mxu0 0.0
    %2802 = vmatpush1.msra.mxu0 0.0
    %2803 = vmatprep.subr.mxu0 0.0
    %2804 = vmatpush1.msra.mxu0 0.0
    %2805 = vmatprep.subr.mxu0 0.0
    %2806 = vmatpush1.msra.mxu0 0.0
    %2807 = vmatprep.subr.mxu0 0.0
    %2808 = vmatpush1.msra.mxu0 0.0
    %2809 = vmatprep.subr.mxu0 0.0
    %2810 = vmatpush1.msra.mxu0 0.0
    %2811 = vmatprep.subr.mxu0 0.0
    %2812 = vmatpush1.msra.mxu0 0.0
    %2813 = vmatprep.subr.mxu0 0.0
    %2814 = vmatpush1.msra.mxu0 0.0
    %2815 = vmatprep.subr.mxu0 0.0
    %2816 = vmatpush1.msra.mxu0 0.0
    %2817 = vmatprep.subr.mxu0 0.0
    %2818 = vmatpush1.msra.mxu0 0.0
    %2819 = vmatprep.subr.mxu0 0.0
    %2820 = vmatpush1.msra.mxu0 0.0
    %2821 = vmatprep.subr.mxu0 0.0
    %2822 = vmatpush1.msra.mxu0 0.0
    %2823 = vmatprep.subr.mxu0 0.0
    %2824 = vmatpush1.msra.mxu0 0.0
    %2825 = vmatprep.subr.mxu0 0.0
    %2826 = vmatpush1.msra.mxu0 0.0
    %2827 = vmatprep.subr.mxu0 0.0
    %2828 = vmatpush1.msra.mxu0 0.0
    %2829 = vmatprep.mubr.f32.mxu0 0.0
    %2830 = vmatmul.mubr.f32.gmra.mrb[0].mxu0 %v2693
    %v2831 = vpop.f32.mrb[0].mxu0
    %v2832 = vadd.f32 0.0, %v2831
    %v2833 = vpop.f32.mrb[0].mxu0
    %2834 = vdwg.mxu0
    %2835 = vmatprep.subr.mxu0 0.0
    %2836 = vmatpush1.msra.mxu0 %v981
    %2837 = vmatprep.subr.mxu0 0.0
    %2838 = vmatpush1.msra.mxu0 %v982
    %2839 = vmatprep.subr.mxu0 0.0
    %2840 = vmatpush1.msra.mxu0 %v983
    %2841 = vmatprep.subr.mxu0 0.0
    %2842 = vmatpush1.msra.mxu0 %v984
    %2843 = vmatprep.subr.mxu0 0.0
    %2844 = vmatpush1.msra.mxu0 0.0
    %2845 = vmatprep.subr.mxu0 0.0
    %2846 = vmatpush1.msra.mxu0 0.0
    %2847 = vmatprep.subr.mxu0 0.0
    %2848 = vmatpush1.msra.mxu0 0.0
    %2849 = vmatprep.subr.mxu0 0.0
    %2850 = vmatpush1.msra.mxu0 0.0
    %2851 = vmatprep.subr.mxu0 0.0
    %2852 = vmatpush1.msra.mxu0 0.0
    %2853 = vmatprep.subr.mxu0 0.0
    %2854 = vmatpush1.msra.mxu0 0.0
    %2855 = vmatprep.subr.mxu0 0.0
    %2856 = vmatpush1.msra.mxu0 0.0
    %2857 = vmatprep.subr.mxu0 0.0
    %2858 = vmatpush1.msra.mxu0 0.0
    %2859 = vmatprep.subr.mxu0 0.0
    %2860 = vmatpush1.msra.mxu0 0.0
    %2861 = vmatprep.subr.mxu0 0.0
    %2862 = vmatpush1.msra.mxu0 0.0
    %2863 = vmatprep.subr.mxu0 0.0
    %2864 = vmatpush1.msra.mxu0 0.0
    %2865 = vmatprep.subr.mxu0 0.0
    %2866 = vmatpush1.msra.mxu0 0.0
    %2867 = vmatprep.subr.mxu0 0.0
    %2868 = vmatpush1.msra.mxu0 0.0
    %2869 = vmatprep.subr.mxu0 0.0
    %2870 = vmatpush1.msra.mxu0 0.0
    %2871 = vmatprep.subr.mxu0 0.0
    %2872 = vmatpush1.msra.mxu0 0.0
    %2873 = vmatprep.subr.mxu0 0.0
    %2874 = vmatpush1.msra.mxu0 0.0
    %2875 = vmatprep.subr.mxu0 0.0
    %2876 = vmatpush1.msra.mxu0 0.0
    %2877 = vmatprep.subr.mxu0 0.0
    %2878 = vmatpush1.msra.mxu0 0.0
    %2879 = vmatprep.subr.mxu0 0.0
    %2880 = vmatpush1.msra.mxu0 0.0
    %2881 = vmatprep.subr.mxu0 0.0
    %2882 = vmatpush1.msra.mxu0 0.0
    %2883 = vmatprep.subr.mxu0 0.0
    %2884 = vmatpush1.msra.mxu0 0.0
    %2885 = vmatprep.subr.mxu0 0.0
    %2886 = vmatpush1.msra.mxu0 0.0
    %2887 = vmatprep.subr.mxu0 0.0
    %2888 = vmatpush1.msra.mxu0 0.0
    %2889 = vmatprep.subr.mxu0 0.0
    %2890 = vmatpush1.msra.mxu0 0.0
    %2891 = vmatprep.subr.mxu0 0.0
    %2892 = vmatpush1.msra.mxu0 0.0
    %2893 = vmatprep.subr.mxu0 0.0
    %2894 = vmatpush1.msra.mxu0 0.0
    %2895 = vmatprep.subr.mxu0 0.0
    %2896 = vmatpush1.msra.mxu0 0.0
    %2897 = vmatprep.subr.mxu0 0.0
    %2898 = vmatpush1.msra.mxu0 0.0
    %2899 = vmatprep.mubr.f32.mxu0 0.0
    %2900 = vmatmul.mubr.f32.gmra.mrb[0].mxu0 %v2693
    %v2901 = vpop.f32.mrb[0].mxu0
    %v2902 = vadd.f32 %v1134, %v2901
    %v2903 = vpop.f32.mrb[0].mxu0
    %2904 = vdwg.mxu0
    %v2906 = vrot.slane %v2762, 2
    %v2908 = vadd.f32 %v792, %v2906
    %v2909 = vxor.u32 %v2908, 2147483648
    %v2910 = vmul.f32 %v2909, 1.442695
    %v2911 = vpow.pop %v2910
    %v2912 = vadd.f32 %v2911, 1.0
    %v2913 = vrcp.pop %v2912
    %v2914 = vmul.f32 1.0, %v2913
    %v2916 = vrot.slane %v2832, 2
    %v2918 = vadd.f32 %v880, %v2916
    %v2919 = vxor.u32 %v2918, 2147483648
    %v2920 = vmul.f32 %v2919, 1.442695
    %v2921 = vpow.pop %v2920
    %v2922 = vadd.f32 %v2921, 1.0
    %v2923 = vrcp.pop %v2922
    %v2924 = vmul.f32 1.0, %v2923
    %v2926 = vrot.slane %v2902, 2
    %v2928 = vmul.f32 %v2914, %v2926
    %v2929 = vadd.f32 %v968, %v2928
    %v2930 = vtanh.pop %v2929
    %v2931 = vsub.f32 1.0, %v2924
    %v2932 = vmul.f32 %v2931, %v2930
    %v2933 = vrot.slane %v2690, 6
    %v2935 = vmul.f32 %v2924, %v2933
    %v2936 = vadd.f32 %v2932, %v2935
    %vm2937 = vcmask 1041408
    %v2938 = vsel %vm2937, %v1226, %v1471
    %vm2939 = vcmask 1043456
    %v2940 = vsel %vm2939, %v2938, %v1717
    %vm2941 = vcmask 1045504
    %v2942 = vsel %vm2941, %v2940, %v1963
    %v2943 = vsel %vm2937, %v2199, %v2444
    %v2944 = vsel %vm2939, %v2943, %v2690
    %v2945 = vsel %vm2941, %v2944, %v2936
    %v2946 = vld [vmem:[#allocation7] sm:$0xff]
    %v2947 = vld [vmem:[#allocation7 + $0x8] sm:$0xff]
    %v2948 = vld [vmem:[#allocation7 + $0x10] sm:$0xff]
    %v2949 = vld [vmem:[#allocation7 + $0x18] sm:$0xff]
    %v2950 = vld [vmem:[%s7] sm:$0x1]
    %v2952 = vlaneseq
    %v2953 = vshrl.u32 %v2952, 7
    %v2954 = vsub.s32 0, %v2953
    %v2955 = vrot.slane %v2950, %v2954
    %v2958 = vsel %vm713, %v2942, 0
    %v2961 = vsel %vm713, %v2945, 0
    %2963 = vmatprep.subr.mxu0 0.0
    %2964 = vmatpush1.msra.mxu0 %v2946
    %2965 = vmatprep.subr.mxu0 0.0
    %2966 = vmatpush1.msra.mxu0 %v2947
    %2967 = vmatprep.subr.mxu0 0.0
    %2968 = vmatpush1.msra.mxu0 %v2948
    %2969 = vmatprep.subr.mxu0 0.0
    %2970 = vmatpush1.msra.mxu0 %v2949
    %2971 = vmatprep.subr.mxu0 0.0
    %2972 = vmatpush1.msra.mxu0 0.0
    %2973 = vmatprep.subr.mxu0 0.0
    %2974 = vmatpush1.msra.mxu0 0.0
    %2975 = vmatprep.subr.mxu0 0.0
    %2976 = vmatpush1.msra.mxu0 0.0
    %2977 = vmatprep.subr.mxu0 0.0
    %2978 = vmatpush1.msra.mxu0 0.0
    %2979 = vmatprep.subr.mxu0 0.0
    %2980 = vmatpush1.msra.mxu0 0.0
    %2981 = vmatprep.subr.mxu0 0.0
    %2982 = vmatpush1.msra.mxu0 0.0
    %2983 = vmatprep.subr.mxu0 0.0
    %2984 = vmatpush1.msra.mxu0 0.0
    %2985 = vmatprep.subr.mxu0 0.0
    %2986 = vmatpush1.msra.mxu0 0.0
    %2987 = vmatprep.subr.mxu0 0.0
    %2988 = vmatpush1.msra.mxu0 0.0
    %2989 = vmatprep.subr.mxu0 0.0
    %2990 = vmatpush1.msra.mxu0 0.0
    %2991 = vmatprep.subr.mxu0 0.0
    %2992 = vmatpush1.msra.mxu0 0.0
    %2993 = vmatprep.subr.mxu0 0.0
    %2994 = vmatpush1.msra.mxu0 0.0
    %2995 = vmatprep.subr.mxu0 0.0
    %2996 = vmatpush1.msra.mxu0 0.0
    %2997 = vmatprep.subr.mxu0 0.0
    %2998 = vmatpush1.msra.mxu0 0.0
    %2999 = vmatprep.subr.mxu0 0.0
    %3000 = vmatpush1.msra.mxu0 0.0
    %3001 = vmatprep.subr.mxu0 0.0
    %3002 = vmatpush1.msra.mxu0 0.0
    %3003 = vmatprep.subr.mxu0 0.0
    %3004 = vmatpush1.msra.mxu0 0.0
    %3005 = vmatprep.subr.mxu0 0.0
    %3006 = vmatpush1.msra.mxu0 0.0
    %3007 = vmatprep.subr.mxu0 0.0
    %3008 = vmatpush1.msra.mxu0 0.0
    %3009 = vmatprep.subr.mxu0 0.0
    %3010 = vmatpush1.msra.mxu0 0.0
    %3011 = vmatprep.subr.mxu0 0.0
    %3012 = vmatpush1.msra.mxu0 0.0
    %3013 = vmatprep.subr.mxu0 0.0
    %3014 = vmatpush1.msra.mxu0 0.0
    %3015 = vmatprep.subr.mxu0 0.0
    %3016 = vmatpush1.msra.mxu0 0.0
    %3017 = vmatprep.subr.mxu0 0.0
    %3018 = vmatpush1.msra.mxu0 0.0
    %3019 = vmatprep.subr.mxu0 0.0
    %3020 = vmatpush1.msra.mxu0 0.0
    %3021 = vmatprep.subr.mxu0 0.0
    %3022 = vmatpush1.msra.mxu0 0.0
    %3023 = vmatprep.subr.mxu0 0.0
    %3024 = vmatpush1.msra.mxu0 0.0
    %3025 = vmatprep.subr.mxu0 0.0
    %3026 = vmatpush1.msra.mxu0 0.0
    %3027 = vmatprep.mubr.f32.mxu0 0.0
    %3028 = vmatmul.mubr.f32.gmra.mrb[0].mxu0 %v2958
    %v3029 = vpop.f32.mrb[0].mxu0
    %v3030 = vadd.f32 %v2955, %v3029
    %v3031 = vpop.f32.mrb[0].mxu0
    %3032 = vmatprep.mubr.f32.mxu0 0.0
    %3033 = vmatmul.mubr.f32.gmra.mrb[0].mxu0 %v2961
    %v3034 = vpop.f32.mrb[0].mxu0
    %v3035 = vadd.f32 %v2955, %v3034
    %v3036 = vpop.f32.mrb[0].mxu0
    %3037 = vdwg.mxu0
    %s3038 = scalar_lea.vmem [#allocation7], 32
    %v3039 = vld [vmem:[%s3038] sm:$0xff]
    %v3040 = vld [vmem:[%s3038 + $0x8] sm:$0xff]
    %v3041 = vld [vmem:[%s3038 + $0x10] sm:$0xff]
    %v3042 = vld [vmem:[%s3038 + $0x18] sm:$0xff]
    %s3043 = scalar_lea.vmem %s7, 1
    %v3044 = vld [vmem:[%s3043] sm:$0x1]
    %v3046 = vlaneseq
    %v3047 = vshrl.u32 %v3046, 7
    %v3048 = vsub.s32 0, %v3047
    %v3049 = vrot.slane %v3044, %v3048
    %3051 = vmatprep.subr.mxu0 0.0
    %3052 = vmatpush1.msra.mxu0 %v3039
    %3053 = vmatprep.subr.mxu0 0.0
    %3054 = vmatpush1.msra.mxu0 %v3040
    %3055 = vmatprep.subr.mxu0 0.0
    %3056 = vmatpush1.msra.mxu0 %v3041
    %3057 = vmatprep.subr.mxu0 0.0
    %3058 = vmatpush1.msra.mxu0 %v3042
    %3059 = vmatprep.subr.mxu0 0.0
    %3060 = vmatpush1.msra.mxu0 0.0
    %3061 = vmatprep.subr.mxu0 0.0
    %3062 = vmatpush1.msra.mxu0 0.0
    %3063 = vmatprep.subr.mxu0 0.0
    %3064 = vmatpush1.msra.mxu0 0.0
    %3065 = vmatprep.subr.mxu0 0.0
    %3066 = vmatpush1.msra.mxu0 0.0
    %3067 = vmatprep.subr.mxu0 0.0
    %3068 = vmatpush1.msra.mxu0 0.0
    %3069 = vmatprep.subr.mxu0 0.0
    %3070 = vmatpush1.msra.mxu0 0.0
    %3071 = vmatprep.subr.mxu0 0.0
    %3072 = vmatpush1.msra.mxu0 0.0
    %3073 = vmatprep.subr.mxu0 0.0
    %3074 = vmatpush1.msra.mxu0 0.0
    %3075 = vmatprep.subr.mxu0 0.0
    %3076 = vmatpush1.msra.mxu0 0.0
    %3077 = vmatprep.subr.mxu0 0.0
    %3078 = vmatpush1.msra.mxu0 0.0
    %3079 = vmatprep.subr.mxu0 0.0
    %3080 = vmatpush1.msra.mxu0 0.0
    %3081 = vmatprep.subr.mxu0 0.0
    %3082 = vmatpush1.msra.mxu0 0.0
    %3083 = vmatprep.subr.mxu0 0.0
    %3084 = vmatpush1.msra.mxu0 0.0
    %3085 = vmatprep.subr.mxu0 0.0
    %3086 = vmatpush1.msra.mxu0 0.0
    %3087 = vmatprep.subr.mxu0 0.0
    %3088 = vmatpush1.msra.mxu0 0.0
    %3089 = vmatprep.subr.mxu0 0.0
    %3090 = vmatpush1.msra.mxu0 0.0
    %3091 = vmatprep.subr.mxu0 0.0
    %3092 = vmatpush1.msra.mxu0 0.0
    %3093 = vmatprep.subr.mxu0 0.0
    %3094 = vmatpush1.msra.mxu0 0.0
    %3095 = vmatprep.subr.mxu0 0.0
    %3096 = vmatpush1.msra.mxu0 0.0
    %3097 = vmatprep.subr.mxu0 0.0
    %3098 = vmatpush1.msra.mxu0 0.0
    %3099 = vmatprep.subr.mxu0 0.0
    %3100 = vmatpush1.msra.mxu0 0.0
    %3101 = vmatprep.subr.mxu0 0.0
    %3102 = vmatpush1.msra.mxu0 0.0
    %3103 = vmatprep.subr.mxu0 0.0
    %3104 = vmatpush1.msra.mxu0 0.0
    %3105 = vmatprep.subr.mxu0 0.0
    %3106 = vmatpush1.msra.mxu0 0.0
    %3107 = vmatprep.subr.mxu0 0.0
    %3108 = vmatpush1.msra.mxu0 0.0
    %3109 = vmatprep.subr.mxu0 0.0
    %3110 = vmatpush1.msra.mxu0 0.0
    %3111 = vmatprep.subr.mxu0 0.0
    %3112 = vmatpush1.msra.mxu0 0.0
    %3113 = vmatprep.subr.mxu0 0.0
    %3114 = vmatpush1.msra.mxu0 0.0
    %3115 = vmatprep.mubr.f32.mxu0 0.0
    %3116 = vmatmul.mubr.f32.gmra.mrb[0].mxu0 %v2958
    %v3117 = vpop.f32.mrb[0].mxu0
    %v3118 = vadd.f32 %v3049, %v3117
    %v3119 = vpop.f32.mrb[0].mxu0
    %3120 = vmatprep.mubr.f32.mxu0 0.0
    %3121 = vmatmul.mubr.f32.gmra.mrb[0].mxu0 %v2961
    %v3122 = vpop.f32.mrb[0].mxu0
    %v3123 = vadd.f32 %v3049, %v3122
    %v3124 = vpop.f32.mrb[0].mxu0
    %3125 = vdwg.mxu0
    %s3126 = scalar_lea.vmem [#allocation7], 64
    %v3127 = vld [vmem:[%s3126] sm:$0xff]
    %v3128 = vld [vmem:[%s3126 + $0x8] sm:$0xff]
    %v3129 = vld [vmem:[%s3126 + $0x10] sm:$0xff]
    %v3130 = vld [vmem:[%s3126 + $0x18] sm:$0xff]
    %s3131 = scalar_lea.vmem %s7, 2
    %v3132 = vld [vmem:[%s3131] sm:$0x1]
    %v3134 = vlaneseq
    %v3135 = vshrl.u32 %v3134, 7
    %v3136 = vsub.s32 0, %v3135
    %v3137 = vrot.slane %v3132, %v3136
    %3139 = vmatprep.subr.mxu0 0.0
    %3140 = vmatpush1.msra.mxu0 %v3127
    %3141 = vmatprep.subr.mxu0 0.0
    %3142 = vmatpush1.msra.mxu0 %v3128
    %3143 = vmatprep.subr.mxu0 0.0
    %3144 = vmatpush1.msra.mxu0 %v3129
    %3145 = vmatprep.subr.mxu0 0.0
    %3146 = vmatpush1.msra.mxu0 %v3130
    %3147 = vmatprep.subr.mxu0 0.0
    %3148 = vmatpush1.msra.mxu0 0.0
    %3149 = vmatprep.subr.mxu0 0.0
    %3150 = vmatpush1.msra.mxu0 0.0
    %3151 = vmatprep.subr.mxu0 0.0
    %3152 = vmatpush1.msra.mxu0 0.0
    %3153 = vmatprep.subr.mxu0 0.0
    %3154 = vmatpush1.msra.mxu0 0.0
    %3155 = vmatprep.subr.mxu0 0.0
    %3156 = vmatpush1.msra.mxu0 0.0
    %3157 = vmatprep.subr.mxu0 0.0
    %3158 = vmatpush1.msra.mxu0 0.0
    %3159 = vmatprep.subr.mxu0 0.0
    %3160 = vmatpush1.msra.mxu0 0.0
    %3161 = vmatprep.subr.mxu0 0.0
    %3162 = vmatpush1.msra.mxu0 0.0
    %3163 = vmatprep.subr.mxu0 0.0
    %3164 = vmatpush1.msra.mxu0 0.0
    %3165 = vmatprep.subr.mxu0 0.0
    %3166 = vmatpush1.msra.mxu0 0.0
    %3167 = vmatprep.subr.mxu0 0.0
    %3168 = vmatpush1.msra.mxu0 0.0
    %3169 = vmatprep.subr.mxu0 0.0
    %3170 = vmatpush1.msra.mxu0 0.0
    %3171 = vmatprep.subr.mxu0 0.0
    %3172 = vmatpush1.msra.mxu0 0.0
    %3173 = vmatprep.subr.mxu0 0.0
    %3174 = vmatpush1.msra.mxu0 0.0
    %3175 = vmatprep.subr.mxu0 0.0
    %3176 = vmatpush1.msra.mxu0 0.0
    %3177 = vmatprep.subr.mxu0 0.0
    %3178 = vmatpush1.msra.mxu0 0.0
    %3179 = vmatprep.subr.mxu0 0.0
    %3180 = vmatpush1.msra.mxu0 0.0
    %3181 = vmatprep.subr.mxu0 0.0
    %3182 = vmatpush1.msra.mxu0 0.0
    %3183 = vmatprep.subr.mxu0 0.0
    %3184 = vmatpush1.msra.mxu0 0.0
    %3185 = vmatprep.subr.mxu0 0.0
    %3186 = vmatpush1.msra.mxu0 0.0
    %3187 = vmatprep.subr.mxu0 0.0
    %3188 = vmatpush1.msra.mxu0 0.0
    %3189 = vmatprep.subr.mxu0 0.0
    %3190 = vmatpush1.msra.mxu0 0.0
    %3191 = vmatprep.subr.mxu0 0.0
    %3192 = vmatpush1.msra.mxu0 0.0
    %3193 = vmatprep.subr.mxu0 0.0
    %3194 = vmatpush1.msra.mxu0 0.0
    %3195 = vmatprep.subr.mxu0 0.0
    %3196 = vmatpush1.msra.mxu0 0.0
    %3197 = vmatprep.subr.mxu0 0.0
    %3198 = vmatpush1.msra.mxu0 0.0
    %3199 = vmatprep.subr.mxu0 0.0
    %3200 = vmatpush1.msra.mxu0 0.0
    %3201 = vmatprep.subr.mxu0 0.0
    %3202 = vmatpush1.msra.mxu0 0.0
    %3203 = vmatprep.mubr.f32.mxu0 0.0
    %3204 = vmatmul.mubr.f32.gmra.mrb[0].mxu0 %v2958
    %v3205 = vpop.f32.mrb[0].mxu0
    %v3206 = vadd.f32 %v3137, %v3205
    %v3207 = vpop.f32.mrb[0].mxu0
    %3208 = vmatprep.mubr.f32.mxu0 0.0
    %3209 = vmatmul.mubr.f32.gmra.mrb[0].mxu0 %v2961
    %v3210 = vpop.f32.mrb[0].mxu0
    %v3211 = vadd.f32 %v3137, %v3210
    %v3212 = vpop.f32.mrb[0].mxu0
    %3213 = vdwg.mxu0
    %v3214 = vld [vmem:[#allocation8] sm:$0xff]
    %v3215 = vld [vmem:[#allocation8 + $0x8] sm:$0xff]
    %v3216 = vld [vmem:[#allocation8 + $0x10] sm:$0xff]
    %v3217 = vld [vmem:[#allocation8 + $0x18] sm:$0xff]
    %s3218 = scalar_lea.vmem [#allocation8], 32
    %v3219 = vld [vmem:[%s3218] sm:$0xff]
    %v3220 = vld [vmem:[%s3218 + $0x8] sm:$0xff]
    %v3221 = vld [vmem:[%s3218 + $0x10] sm:$0xff]
    %v3222 = vld [vmem:[%s3218 + $0x18] sm:$0xff]
    %s3223 = scalar_lea.vmem [#allocation8], 64
    %v3224 = vld [vmem:[%s3223] sm:$0xff]
    %v3225 = vld [vmem:[%s3223 + $0x8] sm:$0xff]
    %v3226 = vld [vmem:[%s3223 + $0x10] sm:$0xff]
    %v3227 = vld [vmem:[%s3223 + $0x18] sm:$0xff]
    %s3228 = scalar_lea.vmem %s7, 3
    %v3229 = vld [vmem:[%s3228] sm:$0x1]
    %3230 = vmatprep.subr.mxu0 0.0
    %3231 = vmatpush1.msra.mxu0 %v3214
    %3232 = vmatprep.subr.mxu0 0.0
    %3233 = vmatpush1.msra.mxu0 %v3215
    %3234 = vmatprep.subr.mxu0 0.0
    %3235 = vmatpush1.msra.mxu0 %v3216
    %3236 = vmatprep.subr.mxu0 0.0
    %3237 = vmatpush1.msra.mxu0 %v3217
    %3238 = vmatprep.subr.mxu0 0.0
    %3239 = vmatpush1.msra.mxu0 0.0
    %3240 = vmatprep.subr.mxu0 0.0
    %3241 = vmatpush1.msra.mxu0 0.0
    %3242 = vmatprep.subr.mxu0 0.0
    %3243 = vmatpush1.msra.mxu0 0.0
    %3244 = vmatprep.subr.mxu0 0.0
    %3245 = vmatpush1.msra.mxu0 0.0
    %3246 = vmatprep.subr.mxu0 0.0
    %3247 = vmatpush1.msra.mxu0 0.0
    %3248 = vmatprep.subr.mxu0 0.0
    %3249 = vmatpush1.msra.mxu0 0.0
    %3250 = vmatprep.subr.mxu0 0.0
    %3251 = vmatpush1.msra.mxu0 0.0
    %3252 = vmatprep.subr.mxu0 0.0
    %3253 = vmatpush1.msra.mxu0 0.0
    %3254 = vmatprep.subr.mxu0 0.0
    %3255 = vmatpush1.msra.mxu0 0.0
    %3256 = vmatprep.subr.mxu0 0.0
    %3257 = vmatpush1.msra.mxu0 0.0
    %3258 = vmatprep.subr.mxu0 0.0
    %3259 = vmatpush1.msra.mxu0 0.0
    %3260 = vmatprep.subr.mxu0 0.0
    %3261 = vmatpush1.msra.mxu0 0.0
    %3262 = vmatprep.subr.mxu0 0.0
    %3263 = vmatpush1.msra.mxu0 0.0
    %3264 = vmatprep.subr.mxu0 0.0
    %3265 = vmatpush1.msra.mxu0 0.0
    %3266 = vmatprep.subr.mxu0 0.0
    %3267 = vmatpush1.msra.mxu0 0.0
    %3268 = vmatprep.subr.mxu0 0.0
    %3269 = vmatpush1.msra.mxu0 0.0
    %3270 = vmatprep.subr.mxu0 0.0
    %3271 = vmatpush1.msra.mxu0 0.0
    %3272 = vmatprep.subr.mxu0 0.0
    %3273 = vmatpush1.msra.mxu0 0.0
    %3274 = vmatprep.subr.mxu0 0.0
    %3275 = vmatpush1.msra.mxu0 0.0
    %3276 = vmatprep.subr.mxu0 0.0
    %3277 = vmatpush1.msra.mxu0 0.0
    %3278 = vmatprep.subr.mxu0 0.0
    %3279 = vmatpush1.msra.mxu0 0.0
    %3280 = vmatprep.subr.mxu0 0.0
    %3281 = vmatpush1.msra.mxu0 0.0
    %3282 = vmatprep.subr.mxu0 0.0
    %3283 = vmatpush1.msra.mxu0 0.0
    %3284 = vmatprep.subr.mxu0 0.0
    %3285 = vmatpush1.msra.mxu0 0.0
    %3286 = vmatprep.subr.mxu0 0.0
    %3287 = vmatpush1.msra.mxu0 0.0
    %3288 = vmatprep.subr.mxu0 0.0
    %3289 = vmatpush1.msra.mxu0 0.0
    %3290 = vmatprep.subr.mxu0 0.0
    %3291 = vmatpush1.msra.mxu0 0.0
    %3292 = vmatprep.subr.mxu0 0.0
    %3293 = vmatpush1.msra.mxu0 0.0
    %3294 = vmatprep.mubr.f32.mxu0 0.0
    %3295 = vmatmul.mubr.f32.gmra.mrb[0].mxu0 %v988
    %v3296 = vpop.f32.mrb[0].mxu0
    %v3297 = vadd.f32 0.0, %v3296
    %v3298 = vpop.f32.mrb[0].mxu0
    %3299 = vdwg.mxu0
    %3300 = vmatprep.subr.mxu0 0.0
    %3301 = vmatpush1.msra.mxu0 %v3219
    %3302 = vmatprep.subr.mxu0 0.0
    %3303 = vmatpush1.msra.mxu0 %v3220
    %3304 = vmatprep.subr.mxu0 0.0
    %3305 = vmatpush1.msra.mxu0 %v3221
    %3306 = vmatprep.subr.mxu0 0.0
    %3307 = vmatpush1.msra.mxu0 %v3222
    %3308 = vmatprep.subr.mxu0 0.0
    %3309 = vmatpush1.msra.mxu0 0.0
    %3310 = vmatprep.subr.mxu0 0.0
    %3311 = vmatpush1.msra.mxu0 0.0
    %3312 = vmatprep.subr.mxu0 0.0
    %3313 = vmatpush1.msra.mxu0 0.0
    %3314 = vmatprep.subr.mxu0 0.0
    %3315 = vmatpush1.msra.mxu0 0.0
    %3316 = vmatprep.subr.mxu0 0.0
    %3317 = vmatpush1.msra.mxu0 0.0
    %3318 = vmatprep.subr.mxu0 0.0
    %3319 = vmatpush1.msra.mxu0 0.0
    %3320 = vmatprep.subr.mxu0 0.0
    %3321 = vmatpush1.msra.mxu0 0.0
    %3322 = vmatprep.subr.mxu0 0.0
    %3323 = vmatpush1.msra.mxu0 0.0
    %3324 = vmatprep.subr.mxu0 0.0
    %3325 = vmatpush1.msra.mxu0 0.0
    %3326 = vmatprep.subr.mxu0 0.0
    %3327 = vmatpush1.msra.mxu0 0.0
    %3328 = vmatprep.subr.mxu0 0.0
    %3329 = vmatpush1.msra.mxu0 0.0
    %3330 = vmatprep.subr.mxu0 0.0
    %3331 = vmatpush1.msra.mxu0 0.0
    %3332 = vmatprep.subr.mxu0 0.0
    %3333 = vmatpush1.msra.mxu0 0.0
    %3334 = vmatprep.subr.mxu0 0.0
    %3335 = vmatpush1.msra.mxu0 0.0
    %3336 = vmatprep.subr.mxu0 0.0
    %3337 = vmatpush1.msra.mxu0 0.0
    %3338 = vmatprep.subr.mxu0 0.0
    %3339 = vmatpush1.msra.mxu0 0.0
    %3340 = vmatprep.subr.mxu0 0.0
    %3341 = vmatpush1.msra.mxu0 0.0
    %3342 = vmatprep.subr.mxu0 0.0
    %3343 = vmatpush1.msra.mxu0 0.0
    %3344 = vmatprep.subr.mxu0 0.0
    %3345 = vmatpush1.msra.mxu0 0.0
    %3346 = vmatprep.subr.mxu0 0.0
    %3347 = vmatpush1.msra.mxu0 0.0
    %3348 = vmatprep.subr.mxu0 0.0
    %3349 = vmatpush1.msra.mxu0 0.0
    %3350 = vmatprep.subr.mxu0 0.0
    %3351 = vmatpush1.msra.mxu0 0.0
    %3352 = vmatprep.subr.mxu0 0.0
    %3353 = vmatpush1.msra.mxu0 0.0
    %3354 = vmatprep.subr.mxu0 0.0
    %3355 = vmatpush1.msra.mxu0 0.0
    %3356 = vmatprep.subr.mxu0 0.0
    %3357 = vmatpush1.msra.mxu0 0.0
    %3358 = vmatprep.subr.mxu0 0.0
    %3359 = vmatpush1.msra.mxu0 0.0
    %3360 = vmatprep.subr.mxu0 0.0
    %3361 = vmatpush1.msra.mxu0 0.0
    %3362 = vmatprep.subr.mxu0 0.0
    %3363 = vmatpush1.msra.mxu0 0.0
    %3364 = vmatprep.mubr.f32.mxu0 0.0
    %3365 = vmatmul.mubr.f32.gmra.mrb[0].mxu0 %v988
    %v3366 = vpop.f32.mrb[0].mxu0
    %v3367 = vadd.f32 0.0, %v3366
    %v3368 = vpop.f32.mrb[0].mxu0
    %3369 = vdwg.mxu0
    %v3371 = vlaneseq
    %v3372 = vshrl.u32 %v3371, 7
    %v3373 = vsub.s32 0, %v3372
    %v3374 = vrot.slane %v3229, %v3373
    %3376 = vmatprep.subr.mxu0 0.0
    %3377 = vmatpush1.msra.mxu0 %v3224
    %3378 = vmatprep.subr.mxu0 0.0
    %3379 = vmatpush1.msra.mxu0 %v3225
    %3380 = vmatprep.subr.mxu0 0.0
    %3381 = vmatpush1.msra.mxu0 %v3226
    %3382 = vmatprep.subr.mxu0 0.0
    %3383 = vmatpush1.msra.mxu0 %v3227
    %3384 = vmatprep.subr.mxu0 0.0
    %3385 = vmatpush1.msra.mxu0 0.0
    %3386 = vmatprep.subr.mxu0 0.0
    %3387 = vmatpush1.msra.mxu0 0.0
    %3388 = vmatprep.subr.mxu0 0.0
    %3389 = vmatpush1.msra.mxu0 0.0
    %3390 = vmatprep.subr.mxu0 0.0
    %3391 = vmatpush1.msra.mxu0 0.0
    %3392 = vmatprep.subr.mxu0 0.0
    %3393 = vmatpush1.msra.mxu0 0.0
    %3394 = vmatprep.subr.mxu0 0.0
    %3395 = vmatpush1.msra.mxu0 0.0
    %3396 = vmatprep.subr.mxu0 0.0
    %3397 = vmatpush1.msra.mxu0 0.0
    %3398 = vmatprep.subr.mxu0 0.0
    %3399 = vmatpush1.msra.mxu0 0.0
    %3400 = vmatprep.subr.mxu0 0.0
    %3401 = vmatpush1.msra.mxu0 0.0
    %3402 = vmatprep.subr.mxu0 0.0
    %3403 = vmatpush1.msra.mxu0 0.0
    %3404 = vmatprep.subr.mxu0 0.0
    %3405 = vmatpush1.msra.mxu0 0.0
    %3406 = vmatprep.subr.mxu0 0.0
    %3407 = vmatpush1.msra.mxu0 0.0
    %3408 = vmatprep.subr.mxu0 0.0
    %3409 = vmatpush1.msra.mxu0 0.0
    %3410 = vmatprep.subr.mxu0 0.0
    %3411 = vmatpush1.msra.mxu0 0.0
    %3412 = vmatprep.subr.mxu0 0.0
    %3413 = vmatpush1.msra.mxu0 0.0
    %3414 = vmatprep.subr.mxu0 0.0
    %3415 = vmatpush1.msra.mxu0 0.0
    %3416 = vmatprep.subr.mxu0 0.0
    %3417 = vmatpush1.msra.mxu0 0.0
    %3418 = vmatprep.subr.mxu0 0.0
    %3419 = vmatpush1.msra.mxu0 0.0
    %3420 = vmatprep.subr.mxu0 0.0
    %3421 = vmatpush1.msra.mxu0 0.0
    %3422 = vmatprep.subr.mxu0 0.0
    %3423 = vmatpush1.msra.mxu0 0.0
    %3424 = vmatprep.subr.mxu0 0.0
    %3425 = vmatpush1.msra.mxu0 0.0
    %3426 = vmatprep.subr.mxu0 0.0
    %3427 = vmatpush1.msra.mxu0 0.0
    %3428 = vmatprep.subr.mxu0 0.0
    %3429 = vmatpush1.msra.mxu0 0.0
    %3430 = vmatprep.subr.mxu0 0.0
    %3431 = vmatpush1.msra.mxu0 0.0
    %3432 = vmatprep.subr.mxu0 0.0
    %3433 = vmatpush1.msra.mxu0 0.0
    %3434 = vmatprep.subr.mxu0 0.0
    %3435 = vmatpush1.msra.mxu0 0.0
    %3436 = vmatprep.subr.mxu0 0.0
    %3437 = vmatpush1.msra.mxu0 0.0
    %3438 = vmatprep.subr.mxu0 0.0
    %3439 = vmatpush1.msra.mxu0 0.0
    %3440 = vmatprep.mubr.f32.mxu0 0.0
    %3441 = vmatmul.mubr.f32.gmra.mrb[0].mxu0 %v988
    %v3442 = vpop.f32.mrb[0].mxu0
    %v3443 = vadd.f32 %v3374, %v3442
    %v3444 = vpop.f32.mrb[0].mxu0
    %3445 = vdwg.mxu0
    %v3446 = vadd.f32 %v3030, %v3297
    %v3447 = vxor.u32 %v3446, 2147483648
    %v3448 = vmul.f32 %v3447, 1.442695
    %v3449 = vpow.pop %v3448
    %v3450 = vadd.f32 %v3449, 1.0
    %v3451 = vrcp.pop %v3450
    %v3452 = vmul.f32 1.0, %v3451
    %v3453 = vadd.f32 %v3118, %v3367
    %v3454 = vxor.u32 %v3453, 2147483648
    %v3455 = vmul.f32 %v3454, 1.442695
    %v3456 = vpow.pop %v3455
    %v3457 = vadd.f32 %v3456, 1.0
    %v3458 = vrcp.pop %v3457
    %v3459 = vmul.f32 1.0, %v3458
    %v3460 = vmul.f32 %v3452, %v3443
    %v3461 = vadd.f32 %v3206, %v3460
    %v3462 = vtanh.pop %v3461
    %v3463 = vsub.f32 1.0, %v3459
    %v3464 = vmul.f32 %v3463, %v3462
    %v3465 = vmul.f32 %v3459, 0.0
    %v3466 = vadd.f32 %v3464, %v3465
    %v3468 = vsel %vm713, %v3466, 0
    %3470 = vmatprep.subr.mxu0 0.0
    %3471 = vmatpush1.msra.mxu0 %v3214
    %3472 = vmatprep.subr.mxu0 0.0
    %3473 = vmatpush1.msra.mxu0 %v3215
    %3474 = vmatprep.subr.mxu0 0.0
    %3475 = vmatpush1.msra.mxu0 %v3216
    %3476 = vmatprep.subr.mxu0 0.0
    %3477 = vmatpush1.msra.mxu0 %v3217
    %3478 = vmatprep.subr.mxu0 0.0
    %3479 = vmatpush1.msra.mxu0 0.0
    %3480 = vmatprep.subr.mxu0 0.0
    %3481 = vmatpush1.msra.mxu0 0.0
    %3482 = vmatprep.subr.mxu0 0.0
    %3483 = vmatpush1.msra.mxu0 0.0
    %3484 = vmatprep.subr.mxu0 0.0
    %3485 = vmatpush1.msra.mxu0 0.0
    %3486 = vmatprep.subr.mxu0 0.0
    %3487 = vmatpush1.msra.mxu0 0.0
    %3488 = vmatprep.subr.mxu0 0.0
    %3489 = vmatpush1.msra.mxu0 0.0
    %3490 = vmatprep.subr.mxu0 0.0
    %3491 = vmatpush1.msra.mxu0 0.0
    %3492 = vmatprep.subr.mxu0 0.0
    %3493 = vmatpush1.msra.mxu0 0.0
    %3494 = vmatprep.subr.mxu0 0.0
    %3495 = vmatpush1.msra.mxu0 0.0
    %3496 = vmatprep.subr.mxu0 0.0
    %3497 = vmatpush1.msra.mxu0 0.0
    %3498 = vmatprep.subr.mxu0 0.0
    %3499 = vmatpush1.msra.mxu0 0.0
    %3500 = vmatprep.subr.mxu0 0.0
    %3501 = vmatpush1.msra.mxu0 0.0
    %3502 = vmatprep.subr.mxu0 0.0
    %3503 = vmatpush1.msra.mxu0 0.0
    %3504 = vmatprep.subr.mxu0 0.0
    %3505 = vmatpush1.msra.mxu0 0.0
    %3506 = vmatprep.subr.mxu0 0.0
    %3507 = vmatpush1.msra.mxu0 0.0
    %3508 = vmatprep.subr.mxu0 0.0
    %3509 = vmatpush1.msra.mxu0 0.0
    %3510 = vmatprep.subr.mxu0 0.0
    %3511 = vmatpush1.msra.mxu0 0.0
    %3512 = vmatprep.subr.mxu0 0.0
    %3513 = vmatpush1.msra.mxu0 0.0
    %3514 = vmatprep.subr.mxu0 0.0
    %3515 = vmatpush1.msra.mxu0 0.0
    %3516 = vmatprep.subr.mxu0 0.0
    %3517 = vmatpush1.msra.mxu0 0.0
    %3518 = vmatprep.subr.mxu0 0.0
    %3519 = vmatpush1.msra.mxu0 0.0
    %3520 = vmatprep.subr.mxu0 0.0
    %3521 = vmatpush1.msra.mxu0 0.0
    %3522 = vmatprep.subr.mxu0 0.0
    %3523 = vmatpush1.msra.mxu0 0.0
    %3524 = vmatprep.subr.mxu0 0.0
    %3525 = vmatpush1.msra.mxu0 0.0
    %3526 = vmatprep.subr.mxu0 0.0
    %3527 = vmatpush1.msra.mxu0 0.0
    %3528 = vmatprep.subr.mxu0 0.0
    %3529 = vmatpush1.msra.mxu0 0.0
    %3530 = vmatprep.subr.mxu0 0.0
    %3531 = vmatpush1.msra.mxu0 0.0
    %3532 = vmatprep.subr.mxu0 0.0
    %3533 = vmatpush1.msra.mxu0 0.0
    %3534 = vmatprep.mubr.f32.mxu0 0.0
    %3535 = vmatmul.mubr.f32.gmra.mrb[0].mxu0 %v3468
    %v3536 = vpop.f32.mrb[0].mxu0
    %v3537 = vadd.f32 0.0, %v3536
    %v3538 = vpop.f32.mrb[0].mxu0
    %3539 = vdwg.mxu0
    %3540 = vmatprep.subr.mxu0 0.0
    %3541 = vmatpush1.msra.mxu0 %v3219
    %3542 = vmatprep.subr.mxu0 0.0
    %3543 = vmatpush1.msra.mxu0 %v3220
    %3544 = vmatprep.subr.mxu0 0.0
    %3545 = vmatpush1.msra.mxu0 %v3221
    %3546 = vmatprep.subr.mxu0 0.0
    %3547 = vmatpush1.msra.mxu0 %v3222
    %3548 = vmatprep.subr.mxu0 0.0
    %3549 = vmatpush1.msra.mxu0 0.0
    %3550 = vmatprep.subr.mxu0 0.0
    %3551 = vmatpush1.msra.mxu0 0.0
    %3552 = vmatprep.subr.mxu0 0.0
    %3553 = vmatpush1.msra.mxu0 0.0
    %3554 = vmatprep.subr.mxu0 0.0
    %3555 = vmatpush1.msra.mxu0 0.0
    %3556 = vmatprep.subr.mxu0 0.0
    %3557 = vmatpush1.msra.mxu0 0.0
    %3558 = vmatprep.subr.mxu0 0.0
    %3559 = vmatpush1.msra.mxu0 0.0
    %3560 = vmatprep.subr.mxu0 0.0
    %3561 = vmatpush1.msra.mxu0 0.0
    %3562 = vmatprep.subr.mxu0 0.0
    %3563 = vmatpush1.msra.mxu0 0.0
    %3564 = vmatprep.subr.mxu0 0.0
    %3565 = vmatpush1.msra.mxu0 0.0
    %3566 = vmatprep.subr.mxu0 0.0
    %3567 = vmatpush1.msra.mxu0 0.0
    %3568 = vmatprep.subr.mxu0 0.0
    %3569 = vmatpush1.msra.mxu0 0.0
    %3570 = vmatprep.subr.mxu0 0.0
    %3571 = vmatpush1.msra.mxu0 0.0
    %3572 = vmatprep.subr.mxu0 0.0
    %3573 = vmatpush1.msra.mxu0 0.0
    %3574 = vmatprep.subr.mxu0 0.0
    %3575 = vmatpush1.msra.mxu0 0.0
    %3576 = vmatprep.subr.mxu0 0.0
    %3577 = vmatpush1.msra.mxu0 0.0
    %3578 = vmatprep.subr.mxu0 0.0
    %3579 = vmatpush1.msra.mxu0 0.0
    %3580 = vmatprep.subr.mxu0 0.0
    %3581 = vmatpush1.msra.mxu0 0.0
    %3582 = vmatprep.subr.mxu0 0.0
    %3583 = vmatpush1.msra.mxu0 0.0
    %3584 = vmatprep.subr.mxu0 0.0
    %3585 = vmatpush1.msra.mxu0 0.0
    %3586 = vmatprep.subr.mxu0 0.0
    %3587 = vmatpush1.msra.mxu0 0.0
    %3588 = vmatprep.subr.mxu0 0.0
    %3589 = vmatpush1.msra.mxu0 0.0
    %3590 = vmatprep.subr.mxu0 0.0
    %3591 = vmatpush1.msra.mxu0 0.0
    %3592 = vmatprep.subr.mxu0 0.0
    %3593 = vmatpush1.msra.mxu0 0.0
    %3594 = vmatprep.subr.mxu0 0.0
    %3595 = vmatpush1.msra.mxu0 0.0
    %3596 = vmatprep.subr.mxu0 0.0
    %3597 = vmatpush1.msra.mxu0 0.0
    %3598 = vmatprep.subr.mxu0 0.0
    %3599 = vmatpush1.msra.mxu0 0.0
    %3600 = vmatprep.subr.mxu0 0.0
    %3601 = vmatpush1.msra.mxu0 0.0
    %3602 = vmatprep.subr.mxu0 0.0
    %3603 = vmatpush1.msra.mxu0 0.0
    %3604 = vmatprep.mubr.f32.mxu0 0.0
    %3605 = vmatmul.mubr.f32.gmra.mrb[0].mxu0 %v3468
    %v3606 = vpop.f32.mrb[0].mxu0
    %v3607 = vadd.f32 0.0, %v3606
    %v3608 = vpop.f32.mrb[0].mxu0
    %3609 = vdwg.mxu0
    %3610 = vmatprep.subr.mxu0 0.0
    %3611 = vmatpush1.msra.mxu0 %v3224
    %3612 = vmatprep.subr.mxu0 0.0
    %3613 = vmatpush1.msra.mxu0 %v3225
    %3614 = vmatprep.subr.mxu0 0.0
    %3615 = vmatpush1.msra.mxu0 %v3226
    %3616 = vmatprep.subr.mxu0 0.0
    %3617 = vmatpush1.msra.mxu0 %v3227
    %3618 = vmatprep.subr.mxu0 0.0
    %3619 = vmatpush1.msra.mxu0 0.0
    %3620 = vmatprep.subr.mxu0 0.0
    %3621 = vmatpush1.msra.mxu0 0.0
    %3622 = vmatprep.subr.mxu0 0.0
    %3623 = vmatpush1.msra.mxu0 0.0
    %3624 = vmatprep.subr.mxu0 0.0
    %3625 = vmatpush1.msra.mxu0 0.0
    %3626 = vmatprep.subr.mxu0 0.0
    %3627 = vmatpush1.msra.mxu0 0.0
    %3628 = vmatprep.subr.mxu0 0.0
    %3629 = vmatpush1.msra.mxu0 0.0
    %3630 = vmatprep.subr.mxu0 0.0
    %3631 = vmatpush1.msra.mxu0 0.0
    %3632 = vmatprep.subr.mxu0 0.0
    %3633 = vmatpush1.msra.mxu0 0.0
    %3634 = vmatprep.subr.mxu0 0.0
    %3635 = vmatpush1.msra.mxu0 0.0
    %3636 = vmatprep.subr.mxu0 0.0
    %3637 = vmatpush1.msra.mxu0 0.0
    %3638 = vmatprep.subr.mxu0 0.0
    %3639 = vmatpush1.msra.mxu0 0.0
    %3640 = vmatprep.subr.mxu0 0.0
    %3641 = vmatpush1.msra.mxu0 0.0
    %3642 = vmatprep.subr.mxu0 0.0
    %3643 = vmatpush1.msra.mxu0 0.0
    %3644 = vmatprep.subr.mxu0 0.0
    %3645 = vmatpush1.msra.mxu0 0.0
    %3646 = vmatprep.subr.mxu0 0.0
    %3647 = vmatpush1.msra.mxu0 0.0
    %3648 = vmatprep.subr.mxu0 0.0
    %3649 = vmatpush1.msra.mxu0 0.0
    %3650 = vmatprep.subr.mxu0 0.0
    %3651 = vmatpush1.msra.mxu0 0.0
    %3652 = vmatprep.subr.mxu0 0.0
    %3653 = vmatpush1.msra.mxu0 0.0
    %3654 = vmatprep.subr.mxu0 0.0
    %3655 = vmatpush1.msra.mxu0 0.0
    %3656 = vmatprep.subr.mxu0 0.0
    %3657 = vmatpush1.msra.mxu0 0.0
    %3658 = vmatprep.subr.mxu0 0.0
    %3659 = vmatpush1.msra.mxu0 0.0
    %3660 = vmatprep.subr.mxu0 0.0
    %3661 = vmatpush1.msra.mxu0 0.0
    %3662 = vmatprep.subr.mxu0 0.0
    %3663 = vmatpush1.msra.mxu0 0.0
    %3664 = vmatprep.subr.mxu0 0.0
    %3665 = vmatpush1.msra.mxu0 0.0
    %3666 = vmatprep.subr.mxu0 0.0
    %3667 = vmatpush1.msra.mxu0 0.0
    %3668 = vmatprep.subr.mxu0 0.0
    %3669 = vmatpush1.msra.mxu0 0.0
    %3670 = vmatprep.subr.mxu0 0.0
    %3671 = vmatpush1.msra.mxu0 0.0
    %3672 = vmatprep.subr.mxu0 0.0
    %3673 = vmatpush1.msra.mxu0 0.0
    %3674 = vmatprep.mubr.f32.mxu0 0.0
    %3675 = vmatmul.mubr.f32.gmra.mrb[0].mxu0 %v3468
    %v3676 = vpop.f32.mrb[0].mxu0
    %v3677 = vadd.f32 %v3374, %v3676
    %v3678 = vpop.f32.mrb[0].mxu0
    %3679 = vdwg.mxu0
    %v3681 = vrot.slane %v3537, 6
    %v3683 = vadd.f32 %v3030, %v3681
    %v3684 = vxor.u32 %v3683, 2147483648
    %v3685 = vmul.f32 %v3684, 1.442695
    %v3686 = vpow.pop %v3685
    %v3687 = vadd.f32 %v3686, 1.0
    %v3688 = vrcp.pop %v3687
    %v3689 = vmul.f32 1.0, %v3688
    %v3691 = vrot.slane %v3607, 6
    %v3693 = vadd.f32 %v3118, %v3691
    %v3694 = vxor.u32 %v3693, 2147483648
    %v3695 = vmul.f32 %v3694, 1.442695
    %v3696 = vpow.pop %v3695
    %v3697 = vadd.f32 %v3696, 1.0
    %v3698 = vrcp.pop %v3697
    %v3699 = vmul.f32 1.0, %v3698
    %v3701 = vrot.slane %v3677, 6
    %v3703 = vmul.f32 %v3689, %v3701
    %v3704 = vadd.f32 %v3206, %v3703
    %v3705 = vtanh.pop %v3704
    %v3706 = vsub.f32 1.0, %v3699
    %v3707 = vmul.f32 %v3706, %v3705
    %v3708 = vrot.slane %v3466, 6
    %v3710 = vmul.f32 %v3699, %v3708
    %v3711 = vadd.f32 %v3707, %v3710
    %v3713 = vrot.slane %v3711, 2
    %v3714 = vsel %vm713, %v3713, 0
    %3716 = vmatprep.subr.mxu0 0.0
    %3717 = vmatpush1.msra.mxu0 %v3214
    %3718 = vmatprep.subr.mxu0 0.0
    %3719 = vmatpush1.msra.mxu0 %v3215
    %3720 = vmatprep.subr.mxu0 0.0
    %3721 = vmatpush1.msra.mxu0 %v3216
    %3722 = vmatprep.subr.mxu0 0.0
    %3723 = vmatpush1.msra.mxu0 %v3217
    %3724 = vmatprep.subr.mxu0 0.0
    %3725 = vmatpush1.msra.mxu0 0.0
    %3726 = vmatprep.subr.mxu0 0.0
    %3727 = vmatpush1.msra.mxu0 0.0
    %3728 = vmatprep.subr.mxu0 0.0
    %3729 = vmatpush1.msra.mxu0 0.0
    %3730 = vmatprep.subr.mxu0 0.0
    %3731 = vmatpush1.msra.mxu0 0.0
    %3732 = vmatprep.subr.mxu0 0.0
    %3733 = vmatpush1.msra.mxu0 0.0
    %3734 = vmatprep.subr.mxu0 0.0
    %3735 = vmatpush1.msra.mxu0 0.0
    %3736 = vmatprep.subr.mxu0 0.0
    %3737 = vmatpush1.msra.mxu0 0.0
    %3738 = vmatprep.subr.mxu0 0.0
    %3739 = vmatpush1.msra.mxu0 0.0
    %3740 = vmatprep.subr.mxu0 0.0
    %3741 = vmatpush1.msra.mxu0 0.0
    %3742 = vmatprep.subr.mxu0 0.0
    %3743 = vmatpush1.msra.mxu0 0.0
    %3744 = vmatprep.subr.mxu0 0.0
    %3745 = vmatpush1.msra.mxu0 0.0
    %3746 = vmatprep.subr.mxu0 0.0
    %3747 = vmatpush1.msra.mxu0 0.0
    %3748 = vmatprep.subr.mxu0 0.0
    %3749 = vmatpush1.msra.mxu0 0.0
    %3750 = vmatprep.subr.mxu0 0.0
    %3751 = vmatpush1.msra.mxu0 0.0
    %3752 = vmatprep.subr.mxu0 0.0
    %3753 = vmatpush1.msra.mxu0 0.0
    %3754 = vmatprep.subr.mxu0 0.0
    %3755 = vmatpush1.msra.mxu0 0.0
    %3756 = vmatprep.subr.mxu0 0.0
    %3757 = vmatpush1.msra.mxu0 0.0
    %3758 = vmatprep.subr.mxu0 0.0
    %3759 = vmatpush1.msra.mxu0 0.0
    %3760 = vmatprep.subr.mxu0 0.0
    %3761 = vmatpush1.msra.mxu0 0.0
    %3762 = vmatprep.subr.mxu0 0.0
    %3763 = vmatpush1.msra.mxu0 0.0
    %3764 = vmatprep.subr.mxu0 0.0
    %3765 = vmatpush1.msra.mxu0 0.0
    %3766 = vmatprep.subr.mxu0 0.0
    %3767 = vmatpush1.msra.mxu0 0.0
    %3768 = vmatprep.subr.mxu0 0.0
    %3769 = vmatpush1.msra.mxu0 0.0
    %3770 = vmatprep.subr.mxu0 0.0
    %3771 = vmatpush1.msra.mxu0 0.0
    %3772 = vmatprep.subr.mxu0 0.0
    %3773 = vmatpush1.msra.mxu0 0.0
    %3774 = vmatprep.subr.mxu0 0.0
    %3775 = vmatpush1.msra.mxu0 0.0
    %3776 = vmatprep.subr.mxu0 0.0
    %3777 = vmatpush1.msra.mxu0 0.0
    %3778 = vmatprep.subr.mxu0 0.0
    %3779 = vmatpush1.msra.mxu0 0.0
    %3780 = vmatprep.mubr.f32.mxu0 0.0
    %3781 = vmatmul.mubr.f32.gmra.mrb[0].mxu0 %v3714
    %v3782 = vpop.f32.mrb[0].mxu0
    %v3783 = vadd.f32 0.0, %v3782
    %v3784 = vpop.f32.mrb[0].mxu0
    %3785 = vdwg.mxu0
    %3786 = vmatprep.subr.mxu0 0.0
    %3787 = vmatpush1.msra.mxu0 %v3219
    %3788 = vmatprep.subr.mxu0 0.0
    %3789 = vmatpush1.msra.mxu0 %v3220
    %3790 = vmatprep.subr.mxu0 0.0
    %3791 = vmatpush1.msra.mxu0 %v3221
    %3792 = vmatprep.subr.mxu0 0.0
    %3793 = vmatpush1.msra.mxu0 %v3222
    %3794 = vmatprep.subr.mxu0 0.0
    %3795 = vmatpush1.msra.mxu0 0.0
    %3796 = vmatprep.subr.mxu0 0.0
    %3797 = vmatpush1.msra.mxu0 0.0
    %3798 = vmatprep.subr.mxu0 0.0
    %3799 = vmatpush1.msra.mxu0 0.0
    %3800 = vmatprep.subr.mxu0 0.0
    %3801 = vmatpush1.msra.mxu0 0.0
    %3802 = vmatprep.subr.mxu0 0.0
    %3803 = vmatpush1.msra.mxu0 0.0
    %3804 = vmatprep.subr.mxu0 0.0
    %3805 = vmatpush1.msra.mxu0 0.0
    %3806 = vmatprep.subr.mxu0 0.0
    %3807 = vmatpush1.msra.mxu0 0.0
    %3808 = vmatprep.subr.mxu0 0.0
    %3809 = vmatpush1.msra.mxu0 0.0
    %3810 = vmatprep.subr.mxu0 0.0
    %3811 = vmatpush1.msra.mxu0 0.0
    %3812 = vmatprep.subr.mxu0 0.0
    %3813 = vmatpush1.msra.mxu0 0.0
    %3814 = vmatprep.subr.mxu0 0.0
    %3815 = vmatpush1.msra.mxu0 0.0
    %3816 = vmatprep.subr.mxu0 0.0
    %3817 = vmatpush1.msra.mxu0 0.0
    %3818 = vmatprep.subr.mxu0 0.0
    %3819 = vmatpush1.msra.mxu0 0.0
    %3820 = vmatprep.subr.mxu0 0.0
    %3821 = vmatpush1.msra.mxu0 0.0
    %3822 = vmatprep.subr.mxu0 0.0
    %3823 = vmatpush1.msra.mxu0 0.0
    %3824 = vmatprep.subr.mxu0 0.0
    %3825 = vmatpush1.msra.mxu0 0.0
    %3826 = vmatprep.subr.mxu0 0.0
    %3827 = vmatpush1.msra.mxu0 0.0
    %3828 = vmatprep.subr.mxu0 0.0
    %3829 = vmatpush1.msra.mxu0 0.0
    %3830 = vmatprep.subr.mxu0 0.0
    %3831 = vmatpush1.msra.mxu0 0.0
    %3832 = vmatprep.subr.mxu0 0.0
    %3833 = vmatpush1.msra.mxu0 0.0
    %3834 = vmatprep.subr.mxu0 0.0
    %3835 = vmatpush1.msra.mxu0 0.0
    %3836 = vmatprep.subr.mxu0 0.0
    %3837 = vmatpush1.msra.mxu0 0.0
    %3838 = vmatprep.subr.mxu0 0.0
    %3839 = vmatpush1.msra.mxu0 0.0
    %3840 = vmatprep.subr.mxu0 0.0
    %3841 = vmatpush1.msra.mxu0 0.0
    %3842 = vmatprep.subr.mxu0 0.0
    %3843 = vmatpush1.msra.mxu0 0.0
    %3844 = vmatprep.subr.mxu0 0.0
    %3845 = vmatpush1.msra.mxu0 0.0
    %3846 = vmatprep.subr.mxu0 0.0
    %3847 = vmatpush1.msra.mxu0 0.0
    %3848 = vmatprep.subr.mxu0 0.0
    %3849 = vmatpush1.msra.mxu0 0.0
    %3850 = vmatprep.mubr.f32.mxu0 0.0
    %3851 = vmatmul.mubr.f32.gmra.mrb[0].mxu0 %v3714
    %v3852 = vpop.f32.mrb[0].mxu0
    %v3853 = vadd.f32 0.0, %v3852
    %v3854 = vpop.f32.mrb[0].mxu0
    %3855 = vdwg.mxu0
    %3856 = vmatprep.subr.mxu0 0.0
    %3857 = vmatpush1.msra.mxu0 %v3224
    %3858 = vmatprep.subr.mxu0 0.0
    %3859 = vmatpush1.msra.mxu0 %v3225
    %3860 = vmatprep.subr.mxu0 0.0
    %3861 = vmatpush1.msra.mxu0 %v3226
    %3862 = vmatprep.subr.mxu0 0.0
    %3863 = vmatpush1.msra.mxu0 %v3227
    %3864 = vmatprep.subr.mxu0 0.0
    %3865 = vmatpush1.msra.mxu0 0.0
    %3866 = vmatprep.subr.mxu0 0.0
    %3867 = vmatpush1.msra.mxu0 0.0
    %3868 = vmatprep.subr.mxu0 0.0
    %3869 = vmatpush1.msra.mxu0 0.0
    %3870 = vmatprep.subr.mxu0 0.0
    %3871 = vmatpush1.msra.mxu0 0.0
    %3872 = vmatprep.subr.mxu0 0.0
    %3873 = vmatpush1.msra.mxu0 0.0
    %3874 = vmatprep.subr.mxu0 0.0
    %3875 = vmatpush1.msra.mxu0 0.0
    %3876 = vmatprep.subr.mxu0 0.0
    %3877 = vmatpush1.msra.mxu0 0.0
    %3878 = vmatprep.subr.mxu0 0.0
    %3879 = vmatpush1.msra.mxu0 0.0
    %3880 = vmatprep.subr.mxu0 0.0
    %3881 = vmatpush1.msra.mxu0 0.0
    %3882 = vmatprep.subr.mxu0 0.0
    %3883 = vmatpush1.msra.mxu0 0.0
    %3884 = vmatprep.subr.mxu0 0.0
    %3885 = vmatpush1.msra.mxu0 0.0
    %3886 = vmatprep.subr.mxu0 0.0
    %3887 = vmatpush1.msra.mxu0 0.0
    %3888 = vmatprep.subr.mxu0 0.0
    %3889 = vmatpush1.msra.mxu0 0.0
    %3890 = vmatprep.subr.mxu0 0.0
    %3891 = vmatpush1.msra.mxu0 0.0
    %3892 = vmatprep.subr.mxu0 0.0
    %3893 = vmatpush1.msra.mxu0 0.0
    %3894 = vmatprep.subr.mxu0 0.0
    %3895 = vmatpush1.msra.mxu0 0.0
    %3896 = vmatprep.subr.mxu0 0.0
    %3897 = vmatpush1.msra.mxu0 0.0
    %3898 = vmatprep.subr.mxu0 0.0
    %3899 = vmatpush1.msra.mxu0 0.0
    %3900 = vmatprep.subr.mxu0 0.0
    %3901 = vmatpush1.msra.mxu0 0.0
    %3902 = vmatprep.subr.mxu0 0.0
    %3903 = vmatpush1.msra.mxu0 0.0
    %3904 = vmatprep.subr.mxu0 0.0
    %3905 = vmatpush1.msra.mxu0 0.0
    %3906 = vmatprep.subr.mxu0 0.0
    %3907 = vmatpush1.msra.mxu0 0.0
    %3908 = vmatprep.subr.mxu0 0.0
    %3909 = vmatpush1.msra.mxu0 0.0
    %3910 = vmatprep.subr.mxu0 0.0
    %3911 = vmatpush1.msra.mxu0 0.0
    %3912 = vmatprep.subr.mxu0 0.0
    %3913 = vmatpush1.msra.mxu0 0.0
    %3914 = vmatprep.subr.mxu0 0.0
    %3915 = vmatpush1.msra.mxu0 0.0
    %3916 = vmatprep.subr.mxu0 0.0
    %3917 = vmatpush1.msra.mxu0 0.0
    %3918 = vmatprep.subr.mxu0 0.0
    %3919 = vmatpush1.msra.mxu0 0.0
    %3920 = vmatprep.mubr.f32.mxu0 0.0
    %3921 = vmatmul.mubr.f32.gmra.mrb[0].mxu0 %v3714
    %v3922 = vpop.f32.mrb[0].mxu0
    %v3923 = vadd.f32 %v3374, %v3922
    %v3924 = vpop.f32.mrb[0].mxu0
    %3925 = vdwg.mxu0
    %v3927 = vrot.slane %v3783, 4
    %v3929 = vadd.f32 %v3030, %v3927
    %v3930 = vxor.u32 %v3929, 2147483648
    %v3931 = vmul.f32 %v3930, 1.442695
    %v3932 = vpow.pop %v3931
    %v3933 = vadd.f32 %v3932, 1.0
    %v3934 = vrcp.pop %v3933
    %v3935 = vmul.f32 1.0, %v3934
    %v3937 = vrot.slane %v3853, 4
    %v3939 = vadd.f32 %v3118, %v3937
    %v3940 = vxor.u32 %v3939, 2147483648
    %v3941 = vmul.f32 %v3940, 1.442695
    %v3942 = vpow.pop %v3941
    %v3943 = vadd.f32 %v3942, 1.0
    %v3944 = vrcp.pop %v3943
    %v3945 = vmul.f32 1.0, %v3944
    %v3947 = vrot.slane %v3923, 4
    %v3949 = vmul.f32 %v3935, %v3947
    %v3950 = vadd.f32 %v3206, %v3949
    %v3951 = vtanh.pop %v3950
    %v3952 = vsub.f32 1.0, %v3945
    %v3953 = vmul.f32 %v3952, %v3951
    %v3954 = vrot.slane %v3711, 6
    %v3956 = vmul.f32 %v3945, %v3954
    %v3957 = vadd.f32 %v3953, %v3956
    %v3959 = vrot.slane %v3957, 4
    %v3960 = vsel %vm713, %v3959, 0
    %3962 = vmatprep.subr.mxu0 0.0
    %3963 = vmatpush1.msra.mxu0 %v3214
    %3964 = vmatprep.subr.mxu0 0.0
    %3965 = vmatpush1.msra.mxu0 %v3215
    %3966 = vmatprep.subr.mxu0 0.0
    %3967 = vmatpush1.msra.mxu0 %v3216
    %3968 = vmatprep.subr.mxu0 0.0
    %3969 = vmatpush1.msra.mxu0 %v3217
    %3970 = vmatprep.subr.mxu0 0.0
    %3971 = vmatpush1.msra.mxu0 0.0
    %3972 = vmatprep.subr.mxu0 0.0
    %3973 = vmatpush1.msra.mxu0 0.0
    %3974 = vmatprep.subr.mxu0 0.0
    %3975 = vmatpush1.msra.mxu0 0.0
    %3976 = vmatprep.subr.mxu0 0.0
    %3977 = vmatpush1.msra.mxu0 0.0
    %3978 = vmatprep.subr.mxu0 0.0
    %3979 = vmatpush1.msra.mxu0 0.0
    %3980 = vmatprep.subr.mxu0 0.0
    %3981 = vmatpush1.msra.mxu0 0.0
    %3982 = vmatprep.subr.mxu0 0.0
    %3983 = vmatpush1.msra.mxu0 0.0
    %3984 = vmatprep.subr.mxu0 0.0
    %3985 = vmatpush1.msra.mxu0 0.0
    %3986 = vmatprep.subr.mxu0 0.0
    %3987 = vmatpush1.msra.mxu0 0.0
    %3988 = vmatprep.subr.mxu0 0.0
    %3989 = vmatpush1.msra.mxu0 0.0
    %3990 = vmatprep.subr.mxu0 0.0
    %3991 = vmatpush1.msra.mxu0 0.0
    %3992 = vmatprep.subr.mxu0 0.0
    %3993 = vmatpush1.msra.mxu0 0.0
    %3994 = vmatprep.subr.mxu0 0.0
    %3995 = vmatpush1.msra.mxu0 0.0
    %3996 = vmatprep.subr.mxu0 0.0
    %3997 = vmatpush1.msra.mxu0 0.0
    %3998 = vmatprep.subr.mxu0 0.0
    %3999 = vmatpush1.msra.mxu0 0.0
    %4000 = vmatprep.subr.mxu0 0.0
    %4001 = vmatpush1.msra.mxu0 0.0
    %4002 = vmatprep.subr.mxu0 0.0
    %4003 = vmatpush1.msra.mxu0 0.0
    %4004 = vmatprep.subr.mxu0 0.0
    %4005 = vmatpush1.msra.mxu0 0.0
    %4006 = vmatprep.subr.mxu0 0.0
    %4007 = vmatpush1.msra.mxu0 0.0
    %4008 = vmatprep.subr.mxu0 0.0
    %4009 = vmatpush1.msra.mxu0 0.0
    %4010 = vmatprep.subr.mxu0 0.0
    %4011 = vmatpush1.msra.mxu0 0.0
    %4012 = vmatprep.subr.mxu0 0.0
    %4013 = vmatpush1.msra.mxu0 0.0
    %4014 = vmatprep.subr.mxu0 0.0
    %4015 = vmatpush1.msra.mxu0 0.0
    %4016 = vmatprep.subr.mxu0 0.0
    %4017 = vmatpush1.msra.mxu0 0.0
    %4018 = vmatprep.subr.mxu0 0.0
    %4019 = vmatpush1.msra.mxu0 0.0
    %4020 = vmatprep.subr.mxu0 0.0
    %4021 = vmatpush1.msra.mxu0 0.0
    %4022 = vmatprep.subr.mxu0 0.0
    %4023 = vmatpush1.msra.mxu0 0.0
    %4024 = vmatprep.subr.mxu0 0.0
    %4025 = vmatpush1.msra.mxu0 0.0
    %4026 = vmatprep.mubr.f32.mxu0 0.0
    %4027 = vmatmul.mubr.f32.gmra.mrb[0].mxu0 %v3960
    %v4028 = vpop.f32.mrb[0].mxu0
    %v4029 = vadd.f32 0.0, %v4028
    %v4030 = vpop.f32.mrb[0].mxu0
    %4031 = vdwg.mxu0
    %4032 = vmatprep.subr.mxu0 0.0
    %4033 = vmatpush1.msra.mxu0 %v3219
    %4034 = vmatprep.subr.mxu0 0.0
    %4035 = vmatpush1.msra.mxu0 %v3220
    %4036 = vmatprep.subr.mxu0 0.0
    %4037 = vmatpush1.msra.mxu0 %v3221
    %4038 = vmatprep.subr.mxu0 0.0
    %4039 = vmatpush1.msra.mxu0 %v3222
    %4040 = vmatprep.subr.mxu0 0.0
    %4041 = vmatpush1.msra.mxu0 0.0
    %4042 = vmatprep.subr.mxu0 0.0
    %4043 = vmatpush1.msra.mxu0 0.0
    %4044 = vmatprep.subr.mxu0 0.0
    %4045 = vmatpush1.msra.mxu0 0.0
    %4046 = vmatprep.subr.mxu0 0.0
    %4047 = vmatpush1.msra.mxu0 0.0
    %4048 = vmatprep.subr.mxu0 0.0
    %4049 = vmatpush1.msra.mxu0 0.0
    %4050 = vmatprep.subr.mxu0 0.0
    %4051 = vmatpush1.msra.mxu0 0.0
    %4052 = vmatprep.subr.mxu0 0.0
    %4053 = vmatpush1.msra.mxu0 0.0
    %4054 = vmatprep.subr.mxu0 0.0
    %4055 = vmatpush1.msra.mxu0 0.0
    %4056 = vmatprep.subr.mxu0 0.0
    %4057 = vmatpush1.msra.mxu0 0.0
    %4058 = vmatprep.subr.mxu0 0.0
    %4059 = vmatpush1.msra.mxu0 0.0
    %4060 = vmatprep.subr.mxu0 0.0
    %4061 = vmatpush1.msra.mxu0 0.0
    %4062 = vmatprep.subr.mxu0 0.0
    %4063 = vmatpush1.msra.mxu0 0.0
    %4064 = vmatprep.subr.mxu0 0.0
    %4065 = vmatpush1.msra.mxu0 0.0
    %4066 = vmatprep.subr.mxu0 0.0
    %4067 = vmatpush1.msra.mxu0 0.0
    %4068 = vmatprep.subr.mxu0 0.0
    %4069 = vmatpush1.msra.mxu0 0.0
    %4070 = vmatprep.subr.mxu0 0.0
    %4071 = vmatpush1.msra.mxu0 0.0
    %4072 = vmatprep.subr.mxu0 0.0
    %4073 = vmatpush1.msra.mxu0 0.0
    %4074 = vmatprep.subr.mxu0 0.0
    %4075 = vmatpush1.msra.mxu0 0.0
    %4076 = vmatprep.subr.mxu0 0.0
    %4077 = vmatpush1.msra.mxu0 0.0
    %4078 = vmatprep.subr.mxu0 0.0
    %4079 = vmatpush1.msra.mxu0 0.0
    %4080 = vmatprep.subr.mxu0 0.0
    %4081 = vmatpush1.msra.mxu0 0.0
    %4082 = vmatprep.subr.mxu0 0.0
    %4083 = vmatpush1.msra.mxu0 0.0
    %4084 = vmatprep.subr.mxu0 0.0
    %4085 = vmatpush1.msra.mxu0 0.0
    %4086 = vmatprep.subr.mxu0 0.0
    %4087 = vmatpush1.msra.mxu0 0.0
    %4088 = vmatprep.subr.mxu0 0.0
    %4089 = vmatpush1.msra.mxu0 0.0
    %4090 = vmatprep.subr.mxu0 0.0
    %4091 = vmatpush1.msra.mxu0 0.0
    %4092 = vmatprep.subr.mxu0 0.0
    %4093 = vmatpush1.msra.mxu0 0.0
    %4094 = vmatprep.subr.mxu0 0.0
    %4095 = vmatpush1.msra.mxu0 0.0
    %4096 = vmatprep.mubr.f32.mxu0 0.0
    %4097 = vmatmul.mubr.f32.gmra.mrb[0].mxu0 %v3960
    %v4098 = vpop.f32.mrb[0].mxu0
    %v4099 = vadd.f32 0.0, %v4098
    %v4100 = vpop.f32.mrb[0].mxu0
    %4101 = vdwg.mxu0
    %4102 = vmatprep.subr.mxu0 0.0
    %4103 = vmatpush1.msra.mxu0 %v3224
    %4104 = vmatprep.subr.mxu0 0.0
    %4105 = vmatpush1.msra.mxu0 %v3225
    %4106 = vmatprep.subr.mxu0 0.0
    %4107 = vmatpush1.msra.mxu0 %v3226
    %4108 = vmatprep.subr.mxu0 0.0
    %4109 = vmatpush1.msra.mxu0 %v3227
    %4110 = vmatprep.subr.mxu0 0.0
    %4111 = vmatpush1.msra.mxu0 0.0
    %4112 = vmatprep.subr.mxu0 0.0
    %4113 = vmatpush1.msra.mxu0 0.0
    %4114 = vmatprep.subr.mxu0 0.0
    %4115 = vmatpush1.msra.mxu0 0.0
    %4116 = vmatprep.subr.mxu0 0.0
    %4117 = vmatpush1.msra.mxu0 0.0
    %4118 = vmatprep.subr.mxu0 0.0
    %4119 = vmatpush1.msra.mxu0 0.0
    %4120 = vmatprep.subr.mxu0 0.0
    %4121 = vmatpush1.msra.mxu0 0.0
    %4122 = vmatprep.subr.mxu0 0.0
    %4123 = vmatpush1.msra.mxu0 0.0
    %4124 = vmatprep.subr.mxu0 0.0
    %4125 = vmatpush1.msra.mxu0 0.0
    %4126 = vmatprep.subr.mxu0 0.0
    %4127 = vmatpush1.msra.mxu0 0.0
    %4128 = vmatprep.subr.mxu0 0.0
    %4129 = vmatpush1.msra.mxu0 0.0
    %4130 = vmatprep.subr.mxu0 0.0
    %4131 = vmatpush1.msra.mxu0 0.0
    %4132 = vmatprep.subr.mxu0 0.0
    %4133 = vmatpush1.msra.mxu0 0.0
    %4134 = vmatprep.subr.mxu0 0.0
    %4135 = vmatpush1.msra.mxu0 0.0
    %4136 = vmatprep.subr.mxu0 0.0
    %4137 = vmatpush1.msra.mxu0 0.0
    %4138 = vmatprep.subr.mxu0 0.0
    %4139 = vmatpush1.msra.mxu0 0.0
    %4140 = vmatprep.subr.mxu0 0.0
    %4141 = vmatpush1.msra.mxu0 0.0
    %4142 = vmatprep.subr.mxu0 0.0
    %4143 = vmatpush1.msra.mxu0 0.0
    %4144 = vmatprep.subr.mxu0 0.0
    %4145 = vmatpush1.msra.mxu0 0.0
    %4146 = vmatprep.subr.mxu0 0.0
    %4147 = vmatpush1.msra.mxu0 0.0
    %4148 = vmatprep.subr.mxu0 0.0
    %4149 = vmatpush1.msra.mxu0 0.0
    %4150 = vmatprep.subr.mxu0 0.0
    %4151 = vmatpush1.msra.mxu0 0.0
    %4152 = vmatprep.subr.mxu0 0.0
    %4153 = vmatpush1.msra.mxu0 0.0
    %4154 = vmatprep.subr.mxu0 0.0
    %4155 = vmatpush1.msra.mxu0 0.0
    %4156 = vmatprep.subr.mxu0 0.0
    %4157 = vmatpush1.msra.mxu0 0.0
    %4158 = vmatprep.subr.mxu0 0.0
    %4159 = vmatpush1.msra.mxu0 0.0
    %4160 = vmatprep.subr.mxu0 0.0
    %4161 = vmatpush1.msra.mxu0 0.0
    %4162 = vmatprep.subr.mxu0 0.0
    %4163 = vmatpush1.msra.mxu0 0.0
    %4164 = vmatprep.subr.mxu0 0.0
    %4165 = vmatpush1.msra.mxu0 0.0
    %4166 = vmatprep.mubr.f32.mxu0 0.0
    %4167 = vmatmul.mubr.f32.gmra.mrb[0].mxu0 %v3960
    %v4168 = vpop.f32.mrb[0].mxu0
    %v4169 = vadd.f32 %v3374, %v4168
    %v4170 = vpop.f32.mrb[0].mxu0
    %4171 = vdwg.mxu0
    %v4173 = vrot.slane %v4029, 2
    %v4175 = vadd.f32 %v3030, %v4173
    %v4176 = vxor.u32 %v4175, 2147483648
    %v4177 = vmul.f32 %v4176, 1.442695
    %v4178 = vpow.pop %v4177
    %v4179 = vadd.f32 %v4178, 1.0
    %v4180 = vrcp.pop %v4179
    %v4181 = vmul.f32 1.0, %v4180
    %v4183 = vrot.slane %v4099, 2
    %v4185 = vadd.f32 %v3118, %v4183
    %v4186 = vxor.u32 %v4185, 2147483648
    %v4187 = vmul.f32 %v4186, 1.442695
    %v4188 = vpow.pop %v4187
    %v4189 = vadd.f32 %v4188, 1.0
    %v4190 = vrcp.pop %v4189
    %v4191 = vmul.f32 1.0, %v4190
    %v4193 = vrot.slane %v4169, 2
    %v4195 = vmul.f32 %v4181, %v4193
    %v4196 = vadd.f32 %v3206, %v4195
    %v4197 = vtanh.pop %v4196
    %v4198 = vsub.f32 1.0, %v4191
    %v4199 = vmul.f32 %v4198, %v4197
    %v4200 = vrot.slane %v3957, 6
    %v4202 = vmul.f32 %v4191, %v4200
    %v4203 = vadd.f32 %v4199, %v4202
    %v4205 = vrot.slane %v4203, 6
    %v4206 = vsel %vm713, %v4205, 0
    %4208 = vmatprep.subr.mxu0 0.0
    %4209 = vmatpush1.msra.mxu0 %v3214
    %4210 = vmatprep.subr.mxu0 0.0
    %4211 = vmatpush1.msra.mxu0 %v3215
    %4212 = vmatprep.subr.mxu0 0.0
    %4213 = vmatpush1.msra.mxu0 %v3216
    %4214 = vmatprep.subr.mxu0 0.0
    %4215 = vmatpush1.msra.mxu0 %v3217
    %4216 = vmatprep.subr.mxu0 0.0
    %4217 = vmatpush1.msra.mxu0 0.0
    %4218 = vmatprep.subr.mxu0 0.0
    %4219 = vmatpush1.msra.mxu0 0.0
    %4220 = vmatprep.subr.mxu0 0.0
    %4221 = vmatpush1.msra.mxu0 0.0
    %4222 = vmatprep.subr.mxu0 0.0
    %4223 = vmatpush1.msra.mxu0 0.0
    %4224 = vmatprep.subr.mxu0 0.0
    %4225 = vmatpush1.msra.mxu0 0.0
    %4226 = vmatprep.subr.mxu0 0.0
    %4227 = vmatpush1.msra.mxu0 0.0
    %4228 = vmatprep.subr.mxu0 0.0
    %4229 = vmatpush1.msra.mxu0 0.0
    %4230 = vmatprep.subr.mxu0 0.0
    %4231 = vmatpush1.msra.mxu0 0.0
    %4232 = vmatprep.subr.mxu0 0.0
    %4233 = vmatpush1.msra.mxu0 0.0
    %4234 = vmatprep.subr.mxu0 0.0
    %4235 = vmatpush1.msra.mxu0 0.0
    %4236 = vmatprep.subr.mxu0 0.0
    %4237 = vmatpush1.msra.mxu0 0.0
    %4238 = vmatprep.subr.mxu0 0.0
    %4239 = vmatpush1.msra.mxu0 0.0
    %4240 = vmatprep.subr.mxu0 0.0
    %4241 = vmatpush1.msra.mxu0 0.0
    %4242 = vmatprep.subr.mxu0 0.0
    %4243 = vmatpush1.msra.mxu0 0.0
    %4244 = vmatprep.subr.mxu0 0.0
    %4245 = vmatpush1.msra.mxu0 0.0
    %4246 = vmatprep.subr.mxu0 0.0
    %4247 = vmatpush1.msra.mxu0 0.0
    %4248 = vmatprep.subr.mxu0 0.0
    %4249 = vmatpush1.msra.mxu0 0.0
    %4250 = vmatprep.subr.mxu0 0.0
    %4251 = vmatpush1.msra.mxu0 0.0
    %4252 = vmatprep.subr.mxu0 0.0
    %4253 = vmatpush1.msra.mxu0 0.0
    %4254 = vmatprep.subr.mxu0 0.0
    %4255 = vmatpush1.msra.mxu0 0.0
    %4256 = vmatprep.subr.mxu0 0.0
    %4257 = vmatpush1.msra.mxu0 0.0
    %4258 = vmatprep.subr.mxu0 0.0
    %4259 = vmatpush1.msra.mxu0 0.0
    %4260 = vmatprep.subr.mxu0 0.0
    %4261 = vmatpush1.msra.mxu0 0.0
    %4262 = vmatprep.subr.mxu0 0.0
    %4263 = vmatpush1.msra.mxu0 0.0
    %4264 = vmatprep.subr.mxu0 0.0
    %4265 = vmatpush1.msra.mxu0 0.0
    %4266 = vmatprep.subr.mxu0 0.0
    %4267 = vmatpush1.msra.mxu0 0.0
    %4268 = vmatprep.subr.mxu0 0.0
    %4269 = vmatpush1.msra.mxu0 0.0
    %4270 = vmatprep.subr.mxu0 0.0
    %4271 = vmatpush1.msra.mxu0 0.0
    %4272 = vmatprep.mubr.f32.mxu0 0.0
    %4273 = vmatmul.mubr.f32.gmra.mrb[0].mxu0 %v4206
    %v4274 = vpop.f32.mrb[0].mxu0
    %v4275 = vadd.f32 0.0, %v4274
    %v4276 = vpop.f32.mrb[0].mxu0
    %4277 = vdwg.mxu0
    %4278 = vmatprep.subr.mxu0 0.0
    %4279 = vmatpush1.msra.mxu0 %v3219
    %4280 = vmatprep.subr.mxu0 0.0
    %4281 = vmatpush1.msra.mxu0 %v3220
    %4282 = vmatprep.subr.mxu0 0.0
    %4283 = vmatpush1.msra.mxu0 %v3221
    %4284 = vmatprep.subr.mxu0 0.0
    %4285 = vmatpush1.msra.mxu0 %v3222
    %4286 = vmatprep.subr.mxu0 0.0
    %4287 = vmatpush1.msra.mxu0 0.0
    %4288 = vmatprep.subr.mxu0 0.0
    %4289 = vmatpush1.msra.mxu0 0.0
    %4290 = vmatprep.subr.mxu0 0.0
    %4291 = vmatpush1.msra.mxu0 0.0
    %4292 = vmatprep.subr.mxu0 0.0
    %4293 = vmatpush1.msra.mxu0 0.0
    %4294 = vmatprep.subr.mxu0 0.0
    %4295 = vmatpush1.msra.mxu0 0.0
    %4296 = vmatprep.subr.mxu0 0.0
    %4297 = vmatpush1.msra.mxu0 0.0
    %4298 = vmatprep.subr.mxu0 0.0
    %4299 = vmatpush1.msra.mxu0 0.0
    %4300 = vmatprep.subr.mxu0 0.0
    %4301 = vmatpush1.msra.mxu0 0.0
    %4302 = vmatprep.subr.mxu0 0.0
    %4303 = vmatpush1.msra.mxu0 0.0
    %4304 = vmatprep.subr.mxu0 0.0
    %4305 = vmatpush1.msra.mxu0 0.0
    %4306 = vmatprep.subr.mxu0 0.0
    %4307 = vmatpush1.msra.mxu0 0.0
    %4308 = vmatprep.subr.mxu0 0.0
    %4309 = vmatpush1.msra.mxu0 0.0
    %4310 = vmatprep.subr.mxu0 0.0
    %4311 = vmatpush1.msra.mxu0 0.0
    %4312 = vmatprep.subr.mxu0 0.0
    %4313 = vmatpush1.msra.mxu0 0.0
    %4314 = vmatprep.subr.mxu0 0.0
    %4315 = vmatpush1.msra.mxu0 0.0
    %4316 = vmatprep.subr.mxu0 0.0
    %4317 = vmatpush1.msra.mxu0 0.0
    %4318 = vmatprep.subr.mxu0 0.0
    %4319 = vmatpush1.msra.mxu0 0.0
    %4320 = vmatprep.subr.mxu0 0.0
    %4321 = vmatpush1.msra.mxu0 0.0
    %4322 = vmatprep.subr.mxu0 0.0
    %4323 = vmatpush1.msra.mxu0 0.0
    %4324 = vmatprep.subr.mxu0 0.0
    %4325 = vmatpush1.msra.mxu0 0.0
    %4326 = vmatprep.subr.mxu0 0.0
    %4327 = vmatpush1.msra.mxu0 0.0
    %4328 = vmatprep.subr.mxu0 0.0
    %4329 = vmatpush1.msra.mxu0 0.0
    %4330 = vmatprep.subr.mxu0 0.0
    %4331 = vmatpush1.msra.mxu0 0.0
    %4332 = vmatprep.subr.mxu0 0.0
    %4333 = vmatpush1.msra.mxu0 0.0
    %4334 = vmatprep.subr.mxu0 0.0
    %4335 = vmatpush1.msra.mxu0 0.0
    %4336 = vmatprep.subr.mxu0 0.0
    %4337 = vmatpush1.msra.mxu0 0.0
    %4338 = vmatprep.subr.mxu0 0.0
    %4339 = vmatpush1.msra.mxu0 0.0
    %4340 = vmatprep.subr.mxu0 0.0
    %4341 = vmatpush1.msra.mxu0 0.0
    %4342 = vmatprep.mubr.f32.mxu0 0.0
    %4343 = vmatmul.mubr.f32.gmra.mrb[0].mxu0 %v4206
    %v4344 = vpop.f32.mrb[0].mxu0
    %v4345 = vadd.f32 0.0, %v4344
    %v4346 = vpop.f32.mrb[0].mxu0
    %4347 = vdwg.mxu0
    %4348 = vmatprep.subr.mxu0 0.0
    %4349 = vmatpush1.msra.mxu0 %v3224
    %4350 = vmatprep.subr.mxu0 0.0
    %4351 = vmatpush1.msra.mxu0 %v3225
    %4352 = vmatprep.subr.mxu0 0.0
    %4353 = vmatpush1.msra.mxu0 %v3226
    %4354 = vmatprep.subr.mxu0 0.0
    %4355 = vmatpush1.msra.mxu0 %v3227
    %4356 = vmatprep.subr.mxu0 0.0
    %4357 = vmatpush1.msra.mxu0 0.0
    %4358 = vmatprep.subr.mxu0 0.0
    %4359 = vmatpush1.msra.mxu0 0.0
    %4360 = vmatprep.subr.mxu0 0.0
    %4361 = vmatpush1.msra.mxu0 0.0
    %4362 = vmatprep.subr.mxu0 0.0
    %4363 = vmatpush1.msra.mxu0 0.0
    %4364 = vmatprep.subr.mxu0 0.0
    %4365 = vmatpush1.msra.mxu0 0.0
    %4366 = vmatprep.subr.mxu0 0.0
    %4367 = vmatpush1.msra.mxu0 0.0
    %4368 = vmatprep.subr.mxu0 0.0
    %4369 = vmatpush1.msra.mxu0 0.0
    %4370 = vmatprep.subr.mxu0 0.0
    %4371 = vmatpush1.msra.mxu0 0.0
    %4372 = vmatprep.subr.mxu0 0.0
    %4373 = vmatpush1.msra.mxu0 0.0
    %4374 = vmatprep.subr.mxu0 0.0
    %4375 = vmatpush1.msra.mxu0 0.0
    %4376 = vmatprep.subr.mxu0 0.0
    %4377 = vmatpush1.msra.mxu0 0.0
    %4378 = vmatprep.subr.mxu0 0.0
    %4379 = vmatpush1.msra.mxu0 0.0
    %4380 = vmatprep.subr.mxu0 0.0
    %4381 = vmatpush1.msra.mxu0 0.0
    %4382 = vmatprep.subr.mxu0 0.0
    %4383 = vmatpush1.msra.mxu0 0.0
    %4384 = vmatprep.subr.mxu0 0.0
    %4385 = vmatpush1.msra.mxu0 0.0
    %4386 = vmatprep.subr.mxu0 0.0
    %4387 = vmatpush1.msra.mxu0 0.0
    %4388 = vmatprep.subr.mxu0 0.0
    %4389 = vmatpush1.msra.mxu0 0.0
    %4390 = vmatprep.subr.mxu0 0.0
    %4391 = vmatpush1.msra.mxu0 0.0
    %4392 = vmatprep.subr.mxu0 0.0
    %4393 = vmatpush1.msra.mxu0 0.0
    %4394 = vmatprep.subr.mxu0 0.0
    %4395 = vmatpush1.msra.mxu0 0.0
    %4396 = vmatprep.subr.mxu0 0.0
    %4397 = vmatpush1.msra.mxu0 0.0
    %4398 = vmatprep.subr.mxu0 0.0
    %4399 = vmatpush1.msra.mxu0 0.0
    %4400 = vmatprep.subr.mxu0 0.0
    %4401 = vmatpush1.msra.mxu0 0.0
    %4402 = vmatprep.subr.mxu0 0.0
    %4403 = vmatpush1.msra.mxu0 0.0
    %4404 = vmatprep.subr.mxu0 0.0
    %4405 = vmatpush1.msra.mxu0 0.0
    %4406 = vmatprep.subr.mxu0 0.0
    %4407 = vmatpush1.msra.mxu0 0.0
    %4408 = vmatprep.subr.mxu0 0.0
    %4409 = vmatpush1.msra.mxu0 0.0
    %4410 = vmatprep.subr.mxu0 0.0
    %4411 = vmatpush1.msra.mxu0 0.0
    %4412 = vmatprep.mubr.f32.mxu0 0.0
    %4413 = vmatmul.mubr.f32.gmra.mrb[0].mxu0 %v4206
    %v4414 = vpop.f32.mrb[0].mxu0
    %v4415 = vadd.f32 %v3374, %v4414
    %v4416 = vpop.f32.mrb[0].mxu0
    %4417 = vdwg.mxu0
    %v4418 = vadd.f32 %v3035, %v4275
    %v4419 = vxor.u32 %v4418, 2147483648
    %v4420 = vmul.f32 %v4419, 1.442695
    %v4421 = vpow.pop %v4420
    %v4422 = vadd.f32 %v4421, 1.0
    %v4423 = vrcp.pop %v4422
    %v4424 = vmul.f32 1.0, %v4423
    %v4425 = vadd.f32 %v3123, %v4345
    %v4426 = vxor.u32 %v4425, 2147483648
    %v4427 = vmul.f32 %v4426, 1.442695
    %v4428 = vpow.pop %v4427
    %v4429 = vadd.f32 %v4428, 1.0
    %v4430 = vrcp.pop %v4429
    %v4431 = vmul.f32 1.0, %v4430
    %v4432 = vmul.f32 %v4424, %v4415
    %v4433 = vadd.f32 %v3211, %v4432
    %v4434 = vtanh.pop %v4433
    %v4435 = vsub.f32 1.0, %v4431
    %v4436 = vmul.f32 %v4435, %v4434
    %v4438 = vmul.f32 %v4431, %v4205
    %v4439 = vadd.f32 %v4436, %v4438
    %v4441 = vsel %vm713, %v4439, 0
    %4443 = vmatprep.subr.mxu0 0.0
    %4444 = vmatpush1.msra.mxu0 %v3214
    %4445 = vmatprep.subr.mxu0 0.0
    %4446 = vmatpush1.msra.mxu0 %v3215
    %4447 = vmatprep.subr.mxu0 0.0
    %4448 = vmatpush1.msra.mxu0 %v3216
    %4449 = vmatprep.subr.mxu0 0.0
    %4450 = vmatpush1.msra.mxu0 %v3217
    %4451 = vmatprep.subr.mxu0 0.0
    %4452 = vmatpush1.msra.mxu0 0.0
    %4453 = vmatprep.subr.mxu0 0.0
    %4454 = vmatpush1.msra.mxu0 0.0
    %4455 = vmatprep.subr.mxu0 0.0
    %4456 = vmatpush1.msra.mxu0 0.0
    %4457 = vmatprep.subr.mxu0 0.0
    %4458 = vmatpush1.msra.mxu0 0.0
    %4459 = vmatprep.subr.mxu0 0.0
    %4460 = vmatpush1.msra.mxu0 0.0
    %4461 = vmatprep.subr.mxu0 0.0
    %4462 = vmatpush1.msra.mxu0 0.0
    %4463 = vmatprep.subr.mxu0 0.0
    %4464 = vmatpush1.msra.mxu0 0.0
    %4465 = vmatprep.subr.mxu0 0.0
    %4466 = vmatpush1.msra.mxu0 0.0
    %4467 = vmatprep.subr.mxu0 0.0
    %4468 = vmatpush1.msra.mxu0 0.0
    %4469 = vmatprep.subr.mxu0 0.0
    %4470 = vmatpush1.msra.mxu0 0.0
    %4471 = vmatprep.subr.mxu0 0.0
    %4472 = vmatpush1.msra.mxu0 0.0
    %4473 = vmatprep.subr.mxu0 0.0
    %4474 = vmatpush1.msra.mxu0 0.0
    %4475 = vmatprep.subr.mxu0 0.0
    %4476 = vmatpush1.msra.mxu0 0.0
    %4477 = vmatprep.subr.mxu0 0.0
    %4478 = vmatpush1.msra.mxu0 0.0
    %4479 = vmatprep.subr.mxu0 0.0
    %4480 = vmatpush1.msra.mxu0 0.0
    %4481 = vmatprep.subr.mxu0 0.0
    %4482 = vmatpush1.msra.mxu0 0.0
    %4483 = vmatprep.subr.mxu0 0.0
    %4484 = vmatpush1.msra.mxu0 0.0
    %4485 = vmatprep.subr.mxu0 0.0
    %4486 = vmatpush1.msra.mxu0 0.0
    %4487 = vmatprep.subr.mxu0 0.0
    %4488 = vmatpush1.msra.mxu0 0.0
    %4489 = vmatprep.subr.mxu0 0.0
    %4490 = vmatpush1.msra.mxu0 0.0
    %4491 = vmatprep.subr.mxu0 0.0
    %4492 = vmatpush1.msra.mxu0 0.0
    %4493 = vmatprep.subr.mxu0 0.0
    %4494 = vmatpush1.msra.mxu0 0.0
    %4495 = vmatprep.subr.mxu0 0.0
    %4496 = vmatpush1.msra.mxu0 0.0
    %4497 = vmatprep.subr.mxu0 0.0
    %4498 = vmatpush1.msra.mxu0 0.0
    %4499 = vmatprep.subr.mxu0 0.0
    %4500 = vmatpush1.msra.mxu0 0.0
    %4501 = vmatprep.subr.mxu0 0.0
    %4502 = vmatpush1.msra.mxu0 0.0
    %4503 = vmatprep.subr.mxu0 0.0
    %4504 = vmatpush1.msra.mxu0 0.0
    %4505 = vmatprep.subr.mxu0 0.0
    %4506 = vmatpush1.msra.mxu0 0.0
    %4507 = vmatprep.mubr.f32.mxu0 0.0
    %4508 = vmatmul.mubr.f32.gmra.mrb[0].mxu0 %v4441
    %v4509 = vpop.f32.mrb[0].mxu0
    %v4510 = vadd.f32 0.0, %v4509
    %v4511 = vpop.f32.mrb[0].mxu0
    %4512 = vdwg.mxu0
    %4513 = vmatprep.subr.mxu0 0.0
    %4514 = vmatpush1.msra.mxu0 %v3219
    %4515 = vmatprep.subr.mxu0 0.0
    %4516 = vmatpush1.msra.mxu0 %v3220
    %4517 = vmatprep.subr.mxu0 0.0
    %4518 = vmatpush1.msra.mxu0 %v3221
    %4519 = vmatprep.subr.mxu0 0.0
    %4520 = vmatpush1.msra.mxu0 %v3222
    %4521 = vmatprep.subr.mxu0 0.0
    %4522 = vmatpush1.msra.mxu0 0.0
    %4523 = vmatprep.subr.mxu0 0.0
    %4524 = vmatpush1.msra.mxu0 0.0
    %4525 = vmatprep.subr.mxu0 0.0
    %4526 = vmatpush1.msra.mxu0 0.0
    %4527 = vmatprep.subr.mxu0 0.0
    %4528 = vmatpush1.msra.mxu0 0.0
    %4529 = vmatprep.subr.mxu0 0.0
    %4530 = vmatpush1.msra.mxu0 0.0
    %4531 = vmatprep.subr.mxu0 0.0
    %4532 = vmatpush1.msra.mxu0 0.0
    %4533 = vmatprep.subr.mxu0 0.0
    %4534 = vmatpush1.msra.mxu0 0.0
    %4535 = vmatprep.subr.mxu0 0.0
    %4536 = vmatpush1.msra.mxu0 0.0
    %4537 = vmatprep.subr.mxu0 0.0
    %4538 = vmatpush1.msra.mxu0 0.0
    %4539 = vmatprep.subr.mxu0 0.0
    %4540 = vmatpush1.msra.mxu0 0.0
    %4541 = vmatprep.subr.mxu0 0.0
    %4542 = vmatpush1.msra.mxu0 0.0
    %4543 = vmatprep.subr.mxu0 0.0
    %4544 = vmatpush1.msra.mxu0 0.0
    %4545 = vmatprep.subr.mxu0 0.0
    %4546 = vmatpush1.msra.mxu0 0.0
    %4547 = vmatprep.subr.mxu0 0.0
    %4548 = vmatpush1.msra.mxu0 0.0
    %4549 = vmatprep.subr.mxu0 0.0
    %4550 = vmatpush1.msra.mxu0 0.0
    %4551 = vmatprep.subr.mxu0 0.0
    %4552 = vmatpush1.msra.mxu0 0.0
    %4553 = vmatprep.subr.mxu0 0.0
    %4554 = vmatpush1.msra.mxu0 0.0
    %4555 = vmatprep.subr.mxu0 0.0
    %4556 = vmatpush1.msra.mxu0 0.0
    %4557 = vmatprep.subr.mxu0 0.0
    %4558 = vmatpush1.msra.mxu0 0.0
    %4559 = vmatprep.subr.mxu0 0.0
    %4560 = vmatpush1.msra.mxu0 0.0
    %4561 = vmatprep.subr.mxu0 0.0
    %4562 = vmatpush1.msra.mxu0 0.0
    %4563 = vmatprep.subr.mxu0 0.0
    %4564 = vmatpush1.msra.mxu0 0.0
    %4565 = vmatprep.subr.mxu0 0.0
    %4566 = vmatpush1.msra.mxu0 0.0
    %4567 = vmatprep.subr.mxu0 0.0
    %4568 = vmatpush1.msra.mxu0 0.0
    %4569 = vmatprep.subr.mxu0 0.0
    %4570 = vmatpush1.msra.mxu0 0.0
    %4571 = vmatprep.subr.mxu0 0.0
    %4572 = vmatpush1.msra.mxu0 0.0
    %4573 = vmatprep.subr.mxu0 0.0
    %4574 = vmatpush1.msra.mxu0 0.0
    %4575 = vmatprep.subr.mxu0 0.0
    %4576 = vmatpush1.msra.mxu0 0.0
    %4577 = vmatprep.mubr.f32.mxu0 0.0
    %4578 = vmatmul.mubr.f32.gmra.mrb[0].mxu0 %v4441
    %v4579 = vpop.f32.mrb[0].mxu0
    %v4580 = vadd.f32 0.0, %v4579
    %v4581 = vpop.f32.mrb[0].mxu0
    %4582 = vdwg.mxu0
    %4583 = vmatprep.subr.mxu0 0.0
    %4584 = vmatpush1.msra.mxu0 %v3224
    %4585 = vmatprep.subr.mxu0 0.0
    %4586 = vmatpush1.msra.mxu0 %v3225
    %4587 = vmatprep.subr.mxu0 0.0
    %4588 = vmatpush1.msra.mxu0 %v3226
    %4589 = vmatprep.subr.mxu0 0.0
    %4590 = vmatpush1.msra.mxu0 %v3227
    %4591 = vmatprep.subr.mxu0 0.0
    %4592 = vmatpush1.msra.mxu0 0.0
    %4593 = vmatprep.subr.mxu0 0.0
    %4594 = vmatpush1.msra.mxu0 0.0
    %4595 = vmatprep.subr.mxu0 0.0
    %4596 = vmatpush1.msra.mxu0 0.0
    %4597 = vmatprep.subr.mxu0 0.0
    %4598 = vmatpush1.msra.mxu0 0.0
    %4599 = vmatprep.subr.mxu0 0.0
    %4600 = vmatpush1.msra.mxu0 0.0
    %4601 = vmatprep.subr.mxu0 0.0
    %4602 = vmatpush1.msra.mxu0 0.0
    %4603 = vmatprep.subr.mxu0 0.0
    %4604 = vmatpush1.msra.mxu0 0.0
    %4605 = vmatprep.subr.mxu0 0.0
    %4606 = vmatpush1.msra.mxu0 0.0
    %4607 = vmatprep.subr.mxu0 0.0
    %4608 = vmatpush1.msra.mxu0 0.0
    %4609 = vmatprep.subr.mxu0 0.0
    %4610 = vmatpush1.msra.mxu0 0.0
    %4611 = vmatprep.subr.mxu0 0.0
    %4612 = vmatpush1.msra.mxu0 0.0
    %4613 = vmatprep.subr.mxu0 0.0
    %4614 = vmatpush1.msra.mxu0 0.0
    %4615 = vmatprep.subr.mxu0 0.0
    %4616 = vmatpush1.msra.mxu0 0.0
    %4617 = vmatprep.subr.mxu0 0.0
    %4618 = vmatpush1.msra.mxu0 0.0
    %4619 = vmatprep.subr.mxu0 0.0
    %4620 = vmatpush1.msra.mxu0 0.0
    %4621 = vmatprep.subr.mxu0 0.0
    %4622 = vmatpush1.msra.mxu0 0.0
    %4623 = vmatprep.subr.mxu0 0.0
    %4624 = vmatpush1.msra.mxu0 0.0
    %4625 = vmatprep.subr.mxu0 0.0
    %4626 = vmatpush1.msra.mxu0 0.0
    %4627 = vmatprep.subr.mxu0 0.0
    %4628 = vmatpush1.msra.mxu0 0.0
    %4629 = vmatprep.subr.mxu0 0.0
    %4630 = vmatpush1.msra.mxu0 0.0
    %4631 = vmatprep.subr.mxu0 0.0
    %4632 = vmatpush1.msra.mxu0 0.0
    %4633 = vmatprep.subr.mxu0 0.0
    %4634 = vmatpush1.msra.mxu0 0.0
    %4635 = vmatprep.subr.mxu0 0.0
    %4636 = vmatpush1.msra.mxu0 0.0
    %4637 = vmatprep.subr.mxu0 0.0
    %4638 = vmatpush1.msra.mxu0 0.0
    %4639 = vmatprep.subr.mxu0 0.0
    %4640 = vmatpush1.msra.mxu0 0.0
    %4641 = vmatprep.subr.mxu0 0.0
    %4642 = vmatpush1.msra.mxu0 0.0
    %4643 = vmatprep.subr.mxu0 0.0
    %4644 = vmatpush1.msra.mxu0 0.0
    %4645 = vmatprep.subr.mxu0 0.0
    %4646 = vmatpush1.msra.mxu0 0.0
    %4647 = vmatprep.mubr.f32.mxu0 0.0
    %4648 = vmatmul.mubr.f32.gmra.mrb[0].mxu0 %v4441
    %v4649 = vpop.f32.mrb[0].mxu0
    %v4650 = vadd.f32 %v3374, %v4649
    %v4651 = vpop.f32.mrb[0].mxu0
    %4652 = vdwg.mxu0
    %v4654 = vrot.slane %v4510, 6
    %v4656 = vadd.f32 %v3035, %v4654
    %v4657 = vxor.u32 %v4656, 2147483648
    %v4658 = vmul.f32 %v4657, 1.442695
    %v4659 = vpow.pop %v4658
    %v4660 = vadd.f32 %v4659, 1.0
    %v4661 = vrcp.pop %v4660
    %v4662 = vmul.f32 1.0, %v4661
    %v4664 = vrot.slane %v4580, 6
    %v4666 = vadd.f32 %v3123, %v4664
    %v4667 = vxor.u32 %v4666, 2147483648
    %v4668 = vmul.f32 %v4667, 1.442695
    %v4669 = vpow.pop %v4668
    %v4670 = vadd.f32 %v4669, 1.0
    %v4671 = vrcp.pop %v4670
    %v4672 = vmul.f32 1.0, %v4671
    %v4674 = vrot.slane %v4650, 6
    %v4676 = vmul.f32 %v4662, %v4674
    %v4677 = vadd.f32 %v3211, %v4676
    %v4678 = vtanh.pop %v4677
    %v4679 = vsub.f32 1.0, %v4672
    %v4680 = vmul.f32 %v4679, %v4678
    %v4681 = vrot.slane %v4439, 6
    %v4683 = vmul.f32 %v4672, %v4681
    %v4684 = vadd.f32 %v4680, %v4683
    %v4686 = vrot.slane %v4684, 2
    %v4687 = vsel %vm713, %v4686, 0
    %4689 = vmatprep.subr.mxu0 0.0
    %4690 = vmatpush1.msra.mxu0 %v3214
    %4691 = vmatprep.subr.mxu0 0.0
    %4692 = vmatpush1.msra.mxu0 %v3215
    %4693 = vmatprep.subr.mxu0 0.0
    %4694 = vmatpush1.msra.mxu0 %v3216
    %4695 = vmatprep.subr.mxu0 0.0
    %4696 = vmatpush1.msra.mxu0 %v3217
    %4697 = vmatprep.subr.mxu0 0.0
    %4698 = vmatpush1.msra.mxu0 0.0
    %4699 = vmatprep.subr.mxu0 0.0
    %4700 = vmatpush1.msra.mxu0 0.0
    %4701 = vmatprep.subr.mxu0 0.0
    %4702 = vmatpush1.msra.mxu0 0.0
    %4703 = vmatprep.subr.mxu0 0.0
    %4704 = vmatpush1.msra.mxu0 0.0
    %4705 = vmatprep.subr.mxu0 0.0
    %4706 = vmatpush1.msra.mxu0 0.0
    %4707 = vmatprep.subr.mxu0 0.0
    %4708 = vmatpush1.msra.mxu0 0.0
    %4709 = vmatprep.subr.mxu0 0.0
    %4710 = vmatpush1.msra.mxu0 0.0
    %4711 = vmatprep.subr.mxu0 0.0
    %4712 = vmatpush1.msra.mxu0 0.0
    %4713 = vmatprep.subr.mxu0 0.0
    %4714 = vmatpush1.msra.mxu0 0.0
    %4715 = vmatprep.subr.mxu0 0.0
    %4716 = vmatpush1.msra.mxu0 0.0
    %4717 = vmatprep.subr.mxu0 0.0
    %4718 = vmatpush1.msra.mxu0 0.0
    %4719 = vmatprep.subr.mxu0 0.0
    %4720 = vmatpush1.msra.mxu0 0.0
    %4721 = vmatprep.subr.mxu0 0.0
    %4722 = vmatpush1.msra.mxu0 0.0
    %4723 = vmatprep.subr.mxu0 0.0
    %4724 = vmatpush1.msra.mxu0 0.0
    %4725 = vmatprep.subr.mxu0 0.0
    %4726 = vmatpush1.msra.mxu0 0.0
    %4727 = vmatprep.subr.mxu0 0.0
    %4728 = vmatpush1.msra.mxu0 0.0
    %4729 = vmatprep.subr.mxu0 0.0
    %4730 = vmatpush1.msra.mxu0 0.0
    %4731 = vmatprep.subr.mxu0 0.0
    %4732 = vmatpush1.msra.mxu0 0.0
    %4733 = vmatprep.subr.mxu0 0.0
    %4734 = vmatpush1.msra.mxu0 0.0
    %4735 = vmatprep.subr.mxu0 0.0
    %4736 = vmatpush1.msra.mxu0 0.0
    %4737 = vmatprep.subr.mxu0 0.0
    %4738 = vmatpush1.msra.mxu0 0.0
    %4739 = vmatprep.subr.mxu0 0.0
    %4740 = vmatpush1.msra.mxu0 0.0
    %4741 = vmatprep.subr.mxu0 0.0
    %4742 = vmatpush1.msra.mxu0 0.0
    %4743 = vmatprep.subr.mxu0 0.0
    %4744 = vmatpush1.msra.mxu0 0.0
    %4745 = vmatprep.subr.mxu0 0.0
    %4746 = vmatpush1.msra.mxu0 0.0
    %4747 = vmatprep.subr.mxu0 0.0
    %4748 = vmatpush1.msra.mxu0 0.0
    %4749 = vmatprep.subr.mxu0 0.0
    %4750 = vmatpush1.msra.mxu0 0.0
    %4751 = vmatprep.subr.mxu0 0.0
    %4752 = vmatpush1.msra.mxu0 0.0
    %4753 = vmatprep.mubr.f32.mxu0 0.0
    %4754 = vmatmul.mubr.f32.gmra.mrb[0].mxu0 %v4687
    %v4755 = vpop.f32.mrb[0].mxu0
    %v4756 = vadd.f32 0.0, %v4755
    %v4757 = vpop.f32.mrb[0].mxu0
    %4758 = vdwg.mxu0
    %4759 = vmatprep.subr.mxu0 0.0
    %4760 = vmatpush1.msra.mxu0 %v3219
    %4761 = vmatprep.subr.mxu0 0.0
    %4762 = vmatpush1.msra.mxu0 %v3220
    %4763 = vmatprep.subr.mxu0 0.0
    %4764 = vmatpush1.msra.mxu0 %v3221
    %4765 = vmatprep.subr.mxu0 0.0
    %4766 = vmatpush1.msra.mxu0 %v3222
    %4767 = vmatprep.subr.mxu0 0.0
    %4768 = vmatpush1.msra.mxu0 0.0
    %4769 = vmatprep.subr.mxu0 0.0
    %4770 = vmatpush1.msra.mxu0 0.0
    %4771 = vmatprep.subr.mxu0 0.0
    %4772 = vmatpush1.msra.mxu0 0.0
    %4773 = vmatprep.subr.mxu0 0.0
    %4774 = vmatpush1.msra.mxu0 0.0
    %4775 = vmatprep.subr.mxu0 0.0
    %4776 = vmatpush1.msra.mxu0 0.0
    %4777 = vmatprep.subr.mxu0 0.0
    %4778 = vmatpush1.msra.mxu0 0.0
    %4779 = vmatprep.subr.mxu0 0.0
    %4780 = vmatpush1.msra.mxu0 0.0
    %4781 = vmatprep.subr.mxu0 0.0
    %4782 = vmatpush1.msra.mxu0 0.0
    %4783 = vmatprep.subr.mxu0 0.0
    %4784 = vmatpush1.msra.mxu0 0.0
    %4785 = vmatprep.subr.mxu0 0.0
    %4786 = vmatpush1.msra.mxu0 0.0
    %4787 = vmatprep.subr.mxu0 0.0
    %4788 = vmatpush1.msra.mxu0 0.0
    %4789 = vmatprep.subr.mxu0 0.0
    %4790 = vmatpush1.msra.mxu0 0.0
    %4791 = vmatprep.subr.mxu0 0.0
    %4792 = vmatpush1.msra.mxu0 0.0
    %4793 = vmatprep.subr.mxu0 0.0
    %4794 = vmatpush1.msra.mxu0 0.0
    %4795 = vmatprep.subr.mxu0 0.0
    %4796 = vmatpush1.msra.mxu0 0.0
    %4797 = vmatprep.subr.mxu0 0.0
    %4798 = vmatpush1.msra.mxu0 0.0
    %4799 = vmatprep.subr.mxu0 0.0
    %4800 = vmatpush1.msra.mxu0 0.0
    %4801 = vmatprep.subr.mxu0 0.0
    %4802 = vmatpush1.msra.mxu0 0.0
    %4803 = vmatprep.subr.mxu0 0.0
    %4804 = vmatpush1.msra.mxu0 0.0
    %4805 = vmatprep.subr.mxu0 0.0
    %4806 = vmatpush1.msra.mxu0 0.0
    %4807 = vmatprep.subr.mxu0 0.0
    %4808 = vmatpush1.msra.mxu0 0.0
    %4809 = vmatprep.subr.mxu0 0.0
    %4810 = vmatpush1.msra.mxu0 0.0
    %4811 = vmatprep.subr.mxu0 0.0
    %4812 = vmatpush1.msra.mxu0 0.0
    %4813 = vmatprep.subr.mxu0 0.0
    %4814 = vmatpush1.msra.mxu0 0.0
    %4815 = vmatprep.subr.mxu0 0.0
    %4816 = vmatpush1.msra.mxu0 0.0
    %4817 = vmatprep.subr.mxu0 0.0
    %4818 = vmatpush1.msra.mxu0 0.0
    %4819 = vmatprep.subr.mxu0 0.0
    %4820 = vmatpush1.msra.mxu0 0.0
    %4821 = vmatprep.subr.mxu0 0.0
    %4822 = vmatpush1.msra.mxu0 0.0
    %4823 = vmatprep.mubr.f32.mxu0 0.0
    %4824 = vmatmul.mubr.f32.gmra.mrb[0].mxu0 %v4687
    %v4825 = vpop.f32.mrb[0].mxu0
    %v4826 = vadd.f32 0.0, %v4825
    %v4827 = vpop.f32.mrb[0].mxu0
    %4828 = vdwg.mxu0
    %4829 = vmatprep.subr.mxu0 0.0
    %4830 = vmatpush1.msra.mxu0 %v3224
    %4831 = vmatprep.subr.mxu0 0.0
    %4832 = vmatpush1.msra.mxu0 %v3225
    %4833 = vmatprep.subr.mxu0 0.0
    %4834 = vmatpush1.msra.mxu0 %v3226
    %4835 = vmatprep.subr.mxu0 0.0
    %4836 = vmatpush1.msra.mxu0 %v3227
    %4837 = vmatprep.subr.mxu0 0.0
    %4838 = vmatpush1.msra.mxu0 0.0
    %4839 = vmatprep.subr.mxu0 0.0
    %4840 = vmatpush1.msra.mxu0 0.0
    %4841 = vmatprep.subr.mxu0 0.0
    %4842 = vmatpush1.msra.mxu0 0.0
    %4843 = vmatprep.subr.mxu0 0.0
    %4844 = vmatpush1.msra.mxu0 0.0
    %4845 = vmatprep.subr.mxu0 0.0
    %4846 = vmatpush1.msra.mxu0 0.0
    %4847 = vmatprep.subr.mxu0 0.0
    %4848 = vmatpush1.msra.mxu0 0.0
    %4849 = vmatprep.subr.mxu0 0.0
    %4850 = vmatpush1.msra.mxu0 0.0
    %4851 = vmatprep.subr.mxu0 0.0
    %4852 = vmatpush1.msra.mxu0 0.0
    %4853 = vmatprep.subr.mxu0 0.0
    %4854 = vmatpush1.msra.mxu0 0.0
    %4855 = vmatprep.subr.mxu0 0.0
    %4856 = vmatpush1.msra.mxu0 0.0
    %4857 = vmatprep.subr.mxu0 0.0
    %4858 = vmatpush1.msra.mxu0 0.0
    %4859 = vmatprep.subr.mxu0 0.0
    %4860 = vmatpush1.msra.mxu0 0.0
    %4861 = vmatprep.subr.mxu0 0.0
    %4862 = vmatpush1.msra.mxu0 0.0
    %4863 = vmatprep.subr.mxu0 0.0
    %4864 = vmatpush1.msra.mxu0 0.0
    %4865 = vmatprep.subr.mxu0 0.0
    %4866 = vmatpush1.msra.mxu0 0.0
    %4867 = vmatprep.subr.mxu0 0.0
    %4868 = vmatpush1.msra.mxu0 0.0
    %4869 = vmatprep.subr.mxu0 0.0
    %4870 = vmatpush1.msra.mxu0 0.0
    %4871 = vmatprep.subr.mxu0 0.0
    %4872 = vmatpush1.msra.mxu0 0.0
    %4873 = vmatprep.subr.mxu0 0.0
    %4874 = vmatpush1.msra.mxu0 0.0
    %4875 = vmatprep.subr.mxu0 0.0
    %4876 = vmatpush1.msra.mxu0 0.0
    %4877 = vmatprep.subr.mxu0 0.0
    %4878 = vmatpush1.msra.mxu0 0.0
    %4879 = vmatprep.subr.mxu0 0.0
    %4880 = vmatpush1.msra.mxu0 0.0
    %4881 = vmatprep.subr.mxu0 0.0
    %4882 = vmatpush1.msra.mxu0 0.0
    %4883 = vmatprep.subr.mxu0 0.0
    %4884 = vmatpush1.msra.mxu0 0.0
    %4885 = vmatprep.subr.mxu0 0.0
    %4886 = vmatpush1.msra.mxu0 0.0
    %4887 = vmatprep.subr.mxu0 0.0
    %4888 = vmatpush1.msra.mxu0 0.0
    %4889 = vmatprep.subr.mxu0 0.0
    %4890 = vmatpush1.msra.mxu0 0.0
    %4891 = vmatprep.subr.mxu0 0.0
    %4892 = vmatpush1.msra.mxu0 0.0
    %4893 = vmatprep.mubr.f32.mxu0 0.0
    %4894 = vmatmul.mubr.f32.gmra.mrb[0].mxu0 %v4687
    %v4895 = vpop.f32.mrb[0].mxu0
    %v4896 = vadd.f32 %v3374, %v4895
    %v4897 = vpop.f32.mrb[0].mxu0
    %4898 = vdwg.mxu0
    %v4900 = vrot.slane %v4756, 4
    %v4902 = vadd.f32 %v3035, %v4900
    %v4903 = vxor.u32 %v4902, 2147483648
    %v4904 = vmul.f32 %v4903, 1.442695
    %v4905 = vpow.pop %v4904
    %v4906 = vadd.f32 %v4905, 1.0
    %v4907 = vrcp.pop %v4906
    %v4908 = vmul.f32 1.0, %v4907
    %v4910 = vrot.slane %v4826, 4
    %v4912 = vadd.f32 %v3123, %v4910
    %v4913 = vxor.u32 %v4912, 2147483648
    %v4914 = vmul.f32 %v4913, 1.442695
    %v4915 = vpow.pop %v4914
    %v4916 = vadd.f32 %v4915, 1.0
    %v4917 = vrcp.pop %v4916
    %v4918 = vmul.f32 1.0, %v4917
    %v4920 = vrot.slane %v4896, 4
    %v4922 = vmul.f32 %v4908, %v4920
    %v4923 = vadd.f32 %v3211, %v4922
    %v4924 = vtanh.pop %v4923
    %v4925 = vsub.f32 1.0, %v4918
    %v4926 = vmul.f32 %v4925, %v4924
    %v4927 = vrot.slane %v4684, 6
    %v4929 = vmul.f32 %v4918, %v4927
    %v4930 = vadd.f32 %v4926, %v4929
    %v4932 = vrot.slane %v4930, 4
    %v4933 = vsel %vm713, %v4932, 0
    %4935 = vmatprep.subr.mxu0 0.0
    %4936 = vmatpush1.msra.mxu0 %v3214
    %4937 = vmatprep.subr.mxu0 0.0
    %4938 = vmatpush1.msra.mxu0 %v3215
    %4939 = vmatprep.subr.mxu0 0.0
    %4940 = vmatpush1.msra.mxu0 %v3216
    %4941 = vmatprep.subr.mxu0 0.0
    %4942 = vmatpush1.msra.mxu0 %v3217
    %4943 = vmatprep.subr.mxu0 0.0
    %4944 = vmatpush1.msra.mxu0 0.0
    %4945 = vmatprep.subr.mxu0 0.0
    %4946 = vmatpush1.msra.mxu0 0.0
    %4947 = vmatprep.subr.mxu0 0.0
    %4948 = vmatpush1.msra.mxu0 0.0
    %4949 = vmatprep.subr.mxu0 0.0
    %4950 = vmatpush1.msra.mxu0 0.0
    %4951 = vmatprep.subr.mxu0 0.0
    %4952 = vmatpush1.msra.mxu0 0.0
    %4953 = vmatprep.subr.mxu0 0.0
    %4954 = vmatpush1.msra.mxu0 0.0
    %4955 = vmatprep.subr.mxu0 0.0
    %4956 = vmatpush1.msra.mxu0 0.0
    %4957 = vmatprep.subr.mxu0 0.0
    %4958 = vmatpush1.msra.mxu0 0.0
    %4959 = vmatprep.subr.mxu0 0.0
    %4960 = vmatpush1.msra.mxu0 0.0
    %4961 = vmatprep.subr.mxu0 0.0
    %4962 = vmatpush1.msra.mxu0 0.0
    %4963 = vmatprep.subr.mxu0 0.0
    %4964 = vmatpush1.msra.mxu0 0.0
    %4965 = vmatprep.subr.mxu0 0.0
    %4966 = vmatpush1.msra.mxu0 0.0
    %4967 = vmatprep.subr.mxu0 0.0
    %4968 = vmatpush1.msra.mxu0 0.0
    %4969 = vmatprep.subr.mxu0 0.0
    %4970 = vmatpush1.msra.mxu0 0.0
    %4971 = vmatprep.subr.mxu0 0.0
    %4972 = vmatpush1.msra.mxu0 0.0
    %4973 = vmatprep.subr.mxu0 0.0
    %4974 = vmatpush1.msra.mxu0 0.0
    %4975 = vmatprep.subr.mxu0 0.0
    %4976 = vmatpush1.msra.mxu0 0.0
    %4977 = vmatprep.subr.mxu0 0.0
    %4978 = vmatpush1.msra.mxu0 0.0
    %4979 = vmatprep.subr.mxu0 0.0
    %4980 = vmatpush1.msra.mxu0 0.0
    %4981 = vmatprep.subr.mxu0 0.0
    %4982 = vmatpush1.msra.mxu0 0.0
    %4983 = vmatprep.subr.mxu0 0.0
    %4984 = vmatpush1.msra.mxu0 0.0
    %4985 = vmatprep.subr.mxu0 0.0
    %4986 = vmatpush1.msra.mxu0 0.0
    %4987 = vmatprep.subr.mxu0 0.0
    %4988 = vmatpush1.msra.mxu0 0.0
    %4989 = vmatprep.subr.mxu0 0.0
    %4990 = vmatpush1.msra.mxu0 0.0
    %4991 = vmatprep.subr.mxu0 0.0
    %4992 = vmatpush1.msra.mxu0 0.0
    %4993 = vmatprep.subr.mxu0 0.0
    %4994 = vmatpush1.msra.mxu0 0.0
    %4995 = vmatprep.subr.mxu0 0.0
    %4996 = vmatpush1.msra.mxu0 0.0
    %4997 = vmatprep.subr.mxu0 0.0
    %4998 = vmatpush1.msra.mxu0 0.0
    %4999 = vmatprep.mubr.f32.mxu0 0.0
    %5000 = vmatmul.mubr.f32.gmra.mrb[0].mxu0 %v4933
    %v5001 = vpop.f32.mrb[0].mxu0
    %v5002 = vadd.f32 0.0, %v5001
    %v5003 = vpop.f32.mrb[0].mxu0
    %5004 = vdwg.mxu0
    %5005 = vmatprep.subr.mxu0 0.0
    %5006 = vmatpush1.msra.mxu0 %v3219
    %5007 = vmatprep.subr.mxu0 0.0
    %5008 = vmatpush1.msra.mxu0 %v3220
    %5009 = vmatprep.subr.mxu0 0.0
    %5010 = vmatpush1.msra.mxu0 %v3221
    %5011 = vmatprep.subr.mxu0 0.0
    %5012 = vmatpush1.msra.mxu0 %v3222
    %5013 = vmatprep.subr.mxu0 0.0
    %5014 = vmatpush1.msra.mxu0 0.0
    %5015 = vmatprep.subr.mxu0 0.0
    %5016 = vmatpush1.msra.mxu0 0.0
    %5017 = vmatprep.subr.mxu0 0.0
    %5018 = vmatpush1.msra.mxu0 0.0
    %5019 = vmatprep.subr.mxu0 0.0
    %5020 = vmatpush1.msra.mxu0 0.0
    %5021 = vmatprep.subr.mxu0 0.0
    %5022 = vmatpush1.msra.mxu0 0.0
    %5023 = vmatprep.subr.mxu0 0.0
    %5024 = vmatpush1.msra.mxu0 0.0
    %5025 = vmatprep.subr.mxu0 0.0
    %5026 = vmatpush1.msra.mxu0 0.0
    %5027 = vmatprep.subr.mxu0 0.0
    %5028 = vmatpush1.msra.mxu0 0.0
    %5029 = vmatprep.subr.mxu0 0.0
    %5030 = vmatpush1.msra.mxu0 0.0
    %5031 = vmatprep.subr.mxu0 0.0
    %5032 = vmatpush1.msra.mxu0 0.0
    %5033 = vmatprep.subr.mxu0 0.0
    %5034 = vmatpush1.msra.mxu0 0.0
    %5035 = vmatprep.subr.mxu0 0.0
    %5036 = vmatpush1.msra.mxu0 0.0
    %5037 = vmatprep.subr.mxu0 0.0
    %5038 = vmatpush1.msra.mxu0 0.0
    %5039 = vmatprep.subr.mxu0 0.0
    %5040 = vmatpush1.msra.mxu0 0.0
    %5041 = vmatprep.subr.mxu0 0.0
    %5042 = vmatpush1.msra.mxu0 0.0
    %5043 = vmatprep.subr.mxu0 0.0
    %5044 = vmatpush1.msra.mxu0 0.0
    %5045 = vmatprep.subr.mxu0 0.0
    %5046 = vmatpush1.msra.mxu0 0.0
    %5047 = vmatprep.subr.mxu0 0.0
    %5048 = vmatpush1.msra.mxu0 0.0
    %5049 = vmatprep.subr.mxu0 0.0
    %5050 = vmatpush1.msra.mxu0 0.0
    %5051 = vmatprep.subr.mxu0 0.0
    %5052 = vmatpush1.msra.mxu0 0.0
    %5053 = vmatprep.subr.mxu0 0.0
    %5054 = vmatpush1.msra.mxu0 0.0
    %5055 = vmatprep.subr.mxu0 0.0
    %5056 = vmatpush1.msra.mxu0 0.0
    %5057 = vmatprep.subr.mxu0 0.0
    %5058 = vmatpush1.msra.mxu0 0.0
    %5059 = vmatprep.subr.mxu0 0.0
    %5060 = vmatpush1.msra.mxu0 0.0
    %5061 = vmatprep.subr.mxu0 0.0
    %5062 = vmatpush1.msra.mxu0 0.0
    %5063 = vmatprep.subr.mxu0 0.0
    %5064 = vmatpush1.msra.mxu0 0.0
    %5065 = vmatprep.subr.mxu0 0.0
    %5066 = vmatpush1.msra.mxu0 0.0
    %5067 = vmatprep.subr.mxu0 0.0
    %5068 = vmatpush1.msra.mxu0 0.0
    %5069 = vmatprep.mubr.f32.mxu0 0.0
    %5070 = vmatmul.mubr.f32.gmra.mrb[0].mxu0 %v4933
    %v5071 = vpop.f32.mrb[0].mxu0
    %v5072 = vadd.f32 0.0, %v5071
    %v5073 = vpop.f32.mrb[0].mxu0
    %5074 = vdwg.mxu0
    %5075 = vmatprep.subr.mxu0 0.0
    %5076 = vmatpush1.msra.mxu0 %v3224
    %5077 = vmatprep.subr.mxu0 0.0
    %5078 = vmatpush1.msra.mxu0 %v3225
    %5079 = vmatprep.subr.mxu0 0.0
    %5080 = vmatpush1.msra.mxu0 %v3226
    %5081 = vmatprep.subr.mxu0 0.0
    %5082 = vmatpush1.msra.mxu0 %v3227
    %5083 = vmatprep.subr.mxu0 0.0
    %5084 = vmatpush1.msra.mxu0 0.0
    %5085 = vmatprep.subr.mxu0 0.0
    %5086 = vmatpush1.msra.mxu0 0.0
    %5087 = vmatprep.subr.mxu0 0.0
    %5088 = vmatpush1.msra.mxu0 0.0
    %5089 = vmatprep.subr.mxu0 0.0
    %5090 = vmatpush1.msra.mxu0 0.0
    %5091 = vmatprep.subr.mxu0 0.0
    %5092 = vmatpush1.msra.mxu0 0.0
    %5093 = vmatprep.subr.mxu0 0.0
    %5094 = vmatpush1.msra.mxu0 0.0
    %5095 = vmatprep.subr.mxu0 0.0
    %5096 = vmatpush1.msra.mxu0 0.0
    %5097 = vmatprep.subr.mxu0 0.0
    %5098 = vmatpush1.msra.mxu0 0.0
    %5099 = vmatprep.subr.mxu0 0.0
    %5100 = vmatpush1.msra.mxu0 0.0
    %5101 = vmatprep.subr.mxu0 0.0
    %5102 = vmatpush1.msra.mxu0 0.0
    %5103 = vmatprep.subr.mxu0 0.0
    %5104 = vmatpush1.msra.mxu0 0.0
    %5105 = vmatprep.subr.mxu0 0.0
    %5106 = vmatpush1.msra.mxu0 0.0
    %5107 = vmatprep.subr.mxu0 0.0
    %5108 = vmatpush1.msra.mxu0 0.0
    %5109 = vmatprep.subr.mxu0 0.0
    %5110 = vmatpush1.msra.mxu0 0.0
    %5111 = vmatprep.subr.mxu0 0.0
    %5112 = vmatpush1.msra.mxu0 0.0
    %5113 = vmatprep.subr.mxu0 0.0
    %5114 = vmatpush1.msra.mxu0 0.0
    %5115 = vmatprep.subr.mxu0 0.0
    %5116 = vmatpush1.msra.mxu0 0.0
    %5117 = vmatprep.subr.mxu0 0.0
    %5118 = vmatpush1.msra.mxu0 0.0
    %5119 = vmatprep.subr.mxu0 0.0
    %5120 = vmatpush1.msra.mxu0 0.0
    %5121 = vmatprep.subr.mxu0 0.0
    %5122 = vmatpush1.msra.mxu0 0.0
    %5123 = vmatprep.subr.mxu0 0.0
    %5124 = vmatpush1.msra.mxu0 0.0
    %5125 = vmatprep.subr.mxu0 0.0
    %5126 = vmatpush1.msra.mxu0 0.0
    %5127 = vmatprep.subr.mxu0 0.0
    %5128 = vmatpush1.msra.mxu0 0.0
    %5129 = vmatprep.subr.mxu0 0.0
    %5130 = vmatpush1.msra.mxu0 0.0
    %5131 = vmatprep.subr.mxu0 0.0
    %5132 = vmatpush1.msra.mxu0 0.0
    %5133 = vmatprep.subr.mxu0 0.0
    %5134 = vmatpush1.msra.mxu0 0.0
    %5135 = vmatprep.subr.mxu0 0.0
    %5136 = vmatpush1.msra.mxu0 0.0
    %5137 = vmatprep.subr.mxu0 0.0
    %5138 = vmatpush1.msra.mxu0 0.0
    %5139 = vmatprep.mubr.f32.mxu0 0.0
    %5140 = vmatmul.mubr.f32.gmra.mrb[0].mxu0 %v4933
    %v5141 = vpop.f32.mrb[0].mxu0
    %v5142 = vadd.f32 %v3374, %v5141
    %v5143 = vpop.f32.mrb[0].mxu0
    %5144 = vdwg.mxu0
    %v5146 = vrot.slane %v5002, 2
    %v5148 = vadd.f32 %v3035, %v5146
    %v5149 = vxor.u32 %v5148, 2147483648
    %v5150 = vmul.f32 %v5149, 1.442695
    %v5151 = vpow.pop %v5150
    %v5152 = vadd.f32 %v5151, 1.0
    %v5153 = vrcp.pop %v5152
    %v5154 = vmul.f32 1.0, %v5153
    %v5156 = vrot.slane %v5072, 2
    %v5158 = vadd.f32 %v3123, %v5156
    %v5159 = vxor.u32 %v5158, 2147483648
    %v5160 = vmul.f32 %v5159, 1.442695
    %v5161 = vpow.pop %v5160
    %v5162 = vadd.f32 %v5161, 1.0
    %v5163 = vrcp.pop %v5162
    %v5164 = vmul.f32 1.0, %v5163
    %v5166 = vrot.slane %v5142, 2
    %v5168 = vmul.f32 %v5154, %v5166
    %v5169 = vadd.f32 %v3211, %v5168
    %v5170 = vtanh.pop %v5169
    %v5171 = vsub.f32 1.0, %v5164
    %v5172 = vmul.f32 %v5171, %v5170
    %v5173 = vrot.slane %v4930, 6
    %v5175 = vmul.f32 %v5164, %v5173
    %v5176 = vadd.f32 %v5172, %v5175
    %v5177 = vsel %vm2937, %v3466, %v3711
    %v5178 = vsel %vm2939, %v5177, %v3957
    %v5179 = vsel %vm2941, %v5178, %v4203
    %v5180 = vsel %vm2937, %v4439, %v4684
    %v5181 = vsel %vm2939, %v5180, %v4930
    %v5182 = vsel %vm2941, %v5181, %v5176
    %v5183 = vld [vmem:[%s8] sm:$0xff]
    %v5184 = vld [vmem:[%s8 + $0x8] sm:$0xff]
    %v5185 = vld [vmem:[%s8 + $0x10] sm:$0xff]
    %v5186 = vld [vmem:[%s8 + $0x18] sm:$0xff]
    %v5187 = vld [vmem:[%s9] sm:$0x1]
    %v5189 = vlaneseq
    %v5190 = vshrl.u32 %v5189, 7
    %v5191 = vsub.s32 0, %v5190
    %v5192 = vrot.slane %v5187, %v5191
    %v5195 = vsel %vm713, %v5179, 0
    %v5198 = vsel %vm713, %v5182, 0
    %5200 = vmatprep.subr.mxu0 0.0
    %5201 = vmatpush1.msra.mxu0 %v5183
    %5202 = vmatprep.subr.mxu0 0.0
    %5203 = vmatpush1.msra.mxu0 %v5184
    %5204 = vmatprep.subr.mxu0 0.0
    %5205 = vmatpush1.msra.mxu0 %v5185
    %5206 = vmatprep.subr.mxu0 0.0
    %5207 = vmatpush1.msra.mxu0 %v5186
    %5208 = vmatprep.subr.mxu0 0.0
    %5209 = vmatpush1.msra.mxu0 0.0
    %5210 = vmatprep.subr.mxu0 0.0
    %5211 = vmatpush1.msra.mxu0 0.0
    %5212 = vmatprep.subr.mxu0 0.0
    %5213 = vmatpush1.msra.mxu0 0.0
    %5214 = vmatprep.subr.mxu0 0.0
    %5215 = vmatpush1.msra.mxu0 0.0
    %5216 = vmatprep.subr.mxu0 0.0
    %5217 = vmatpush1.msra.mxu0 0.0
    %5218 = vmatprep.subr.mxu0 0.0
    %5219 = vmatpush1.msra.mxu0 0.0
    %5220 = vmatprep.subr.mxu0 0.0
    %5221 = vmatpush1.msra.mxu0 0.0
    %5222 = vmatprep.subr.mxu0 0.0
    %5223 = vmatpush1.msra.mxu0 0.0
    %5224 = vmatprep.subr.mxu0 0.0
    %5225 = vmatpush1.msra.mxu0 0.0
    %5226 = vmatprep.subr.mxu0 0.0
    %5227 = vmatpush1.msra.mxu0 0.0
    %5228 = vmatprep.subr.mxu0 0.0
    %5229 = vmatpush1.msra.mxu0 0.0
    %5230 = vmatprep.subr.mxu0 0.0
    %5231 = vmatpush1.msra.mxu0 0.0
    %5232 = vmatprep.subr.mxu0 0.0
    %5233 = vmatpush1.msra.mxu0 0.0
    %5234 = vmatprep.subr.mxu0 0.0
    %5235 = vmatpush1.msra.mxu0 0.0
    %5236 = vmatprep.subr.mxu0 0.0
    %5237 = vmatpush1.msra.mxu0 0.0
    %5238 = vmatprep.subr.mxu0 0.0
    %5239 = vmatpush1.msra.mxu0 0.0
    %5240 = vmatprep.subr.mxu0 0.0
    %5241 = vmatpush1.msra.mxu0 0.0
    %5242 = vmatprep.subr.mxu0 0.0
    %5243 = vmatpush1.msra.mxu0 0.0
    %5244 = vmatprep.subr.mxu0 0.0
    %5245 = vmatpush1.msra.mxu0 0.0
    %5246 = vmatprep.subr.mxu0 0.0
    %5247 = vmatpush1.msra.mxu0 0.0
    %5248 = vmatprep.subr.mxu0 0.0
    %5249 = vmatpush1.msra.mxu0 0.0
    %5250 = vmatprep.subr.mxu0 0.0
    %5251 = vmatpush1.msra.mxu0 0.0
    %5252 = vmatprep.subr.mxu0 0.0
    %5253 = vmatpush1.msra.mxu0 0.0
    %5254 = vmatprep.subr.mxu0 0.0
    %5255 = vmatpush1.msra.mxu0 0.0
    %5256 = vmatprep.subr.mxu0 0.0
    %5257 = vmatpush1.msra.mxu0 0.0
    %5258 = vmatprep.subr.mxu0 0.0
    %5259 = vmatpush1.msra.mxu0 0.0
    %5260 = vmatprep.subr.mxu0 0.0
    %5261 = vmatpush1.msra.mxu0 0.0
    %5262 = vmatprep.subr.mxu0 0.0
    %5263 = vmatpush1.msra.mxu0 0.0
    %5264 = vmatprep.mubr.f32.mxu0 0.0
    %5265 = vmatmul.mubr.f32.gmra.mrb[0].mxu0 %v5195
    %v5266 = vpop.f32.mrb[0].mxu0
    %v5267 = vadd.f32 %v5192, %v5266
    %v5268 = vpop.f32.mrb[0].mxu0
    %5269 = vmatprep.mubr.f32.mxu0 0.0
    %5270 = vmatmul.mubr.f32.gmra.mrb[0].mxu0 %v5198
    %v5271 = vpop.f32.mrb[0].mxu0
    %v5272 = vadd.f32 %v5192, %v5271
    %v5273 = vpop.f32.mrb[0].mxu0
    %5274 = vdwg.mxu0
    %5275 = vst.msk [vmem:[#allocation10] sm:$0xff] %vm115, %v5267
    %5276 = vst.msk [vmem:[#allocation10 + $0x8] sm:$0xff] %vm115, %v5272
    // Predicated region
    $region58: #{tpu_custom_call.1} parent=1 // pred_check
      _
    $region59: #{tpu_custom_call.1} parent=1 // pred_check_branch
      %5278 = sbr.rel (0) target = $region61
    $region60: #{tpu_custom_call.1} parent=1 // pred_region
      %s5280 = ssub.s32 256, 256
      %5281 = vsyncadd [#allocation4], %s5280
      %s5282 = sshll.u32 [#allocation10], 4
      %s5283 = int_to_ptr.vmem [resolvable:$true] %s5282
      %5288 = dma.vmem_to_hbm [thread:$0]  %s5283, 256, %s10, [#allocation4], 128, 128, 8
    $region61: #{tpu_custom_call.1} parent=1 // pred_fallthru
      _
    // Predicated region
    $region62: #{tpu_custom_call.1} parent=1 // pred_check
      _
    $region63: #{tpu_custom_call.1} parent=1 // pred_check_branch
      %5290 = sbr.rel (0) target = $region65
    $region64: #{tpu_custom_call.1} parent=1 // pred_region
      %5291 = dma.done [#allocation4], 256
    $region65: #{tpu_custom_call.1} parent=1 // pred_fallthru
      _
    %5292 = vsyncpa [#allocation3], 1
    %5293 = vsyncpa [#allocation6], 1
    %5294 = vsyncpa [#allocation9], 1
    %5295 = vsyncpa [#allocation4], 1

</llo_original>
